<compile_context>
chip_gen: v7x
topology: tpu7x:2x2x1
jax: 0.10.0
libtpu: 0.0.40
codegen_flags: <defaults>
</compile_context>

<pallas_src>
import functools

import jax
import jax.numpy as jnp
from jax.experimental import pallas as pl
from jax.experimental.pallas import tpu as pltpu

EPS = 1e-5  # nn.GroupNorm default eps


# ----------------------------- in-kernel helpers ------------------------------

def _groupnorm_silu(x, gn, pool):
    # x: (C, T) f32; gn: (C, 2) f32 [gamma, beta]; pool: (C, C) f32 group-average
    # matrix with entries 1/(cg*T) for channels in the same group (precomputed in
    # the wrapper — hoisted out of the kernel body).
    s1 = jnp.sum(x, axis=1, keepdims=True)                          # (C,1) XLU reduce
    mean = jnp.dot(pool, s1, preferred_element_type=jnp.float32)    # (C,1) group mean
    xc = x - mean                                                   # two-pass GN
    var = jnp.dot(pool, jnp.sum(xc * xc, axis=1, keepdims=True),
                  preferred_element_type=jnp.float32)               # (C,1) >= 0
    scale = jax.lax.rsqrt(var + EPS) * gn[:, 0:1]
    y = xc * scale + gn[:, 1:2]
    return y * jax.nn.sigmoid(y)                                    # SiLU (EUP)


def _conv3_same(h, w_ref, bias_col, not_first, not_last):
    # h: (C, T) f32; w_ref: (3, O, C) bf16 ref, tap k multiplies x[t - 1 + k];
    # bias_col: (O, 1) f32. "same" padding (1/1), stride 1, dilation 1.
    # Shifts via pltpu.roll (XLU); boundary masks are the hoisted (1, T) lane masks.
    T = h.shape[1]
    h_prev = jnp.where(not_first, pltpu.roll(h, shift=1, axis=1), 0.0)      # x[t-1]
    h_next = jnp.where(not_last, pltpu.roll(h, shift=T - 1, axis=1), 0.0)   # x[t+1]
    # Three accumulating dots (no (3C,T) concat temporary), f32 accumulation.
    y = jnp.dot(w_ref[1], h.astype(jnp.bfloat16),
                preferred_element_type=jnp.float32)
    y = y + jnp.dot(w_ref[0], h_prev.astype(jnp.bfloat16),
                    preferred_element_type=jnp.float32)
    y = y + jnp.dot(w_ref[2], h_next.astype(jnp.bfloat16),
                    preferred_element_type=jnp.float32)
    return y + bias_col


# ---------------------------------- kernel ------------------------------------

def resnet_block_kernel(x_ref, gn1_ref, pool_in_ref, w1_ref,
                        gn2_ref, pool_out_ref, w2_ref, *rest, has_projection):
    if has_projection:
        wout_ref, bias_ref, o_ref = rest
    else:
        bias_ref, o_ref = rest
        wout_ref = None

    x = x_ref[0]                                         # (Cin, T) f32
    T = x.shape[1]
    biases = bias_ref[...]                               # (Cout, 3)

    # Boundary lane masks: built ONCE per grid step, reused by both convs.
    t_idx = jax.lax.broadcasted_iota(jnp.int32, (1, T), 1)
    not_first = t_idx != 0
    not_last = t_idx != (T - 1)

    h = _groupnorm_silu(x, gn1_ref[...], pool_in_ref[...])          # block1 GN+SiLU
    h = _conv3_same(h, w1_ref, biases[:, 0:1], not_first, not_last)
    h = _groupnorm_silu(h, gn2_ref[...], pool_out_ref[...])         # block2 GN+SiLU
    h = _conv3_same(h, w2_ref, biases[:, 1:2], not_first, not_last)

    if has_projection:                                   # to_out = Conv1d(k=1)
        skip = jnp.dot(wout_ref[...], x.astype(jnp.bfloat16),
                       preferred_element_type=jnp.float32) + biases[:, 2:3]
    else:                                                # to_out = Identity
        skip = x

    o_ref[0] = (h + skip).astype(o_ref.dtype)


# --------------------------------- wrapper ------------------------------------

def _group_pool_matrix(C, num_groups, T):
    # Block-diagonal group-average matrix: pool @ per_channel_sum -> per-channel
    # broadcast of the group mean. Entries 1/(cg*T).
    cg = C // num_groups
    g = jnp.arange(C, dtype=jnp.int32) // cg
    return (g[:, None] == g[None, :]).astype(jnp.float32) * (1.0 / (cg * T))


def resnet_block1d_forward(x, params, *, num_groups, out_dtype=None):
    B, cin, T = x.shape
    cout = params["conv1_w"].shape[0]
    has_projection = "to_out_w" in params
    out_dtype = x.dtype if out_dtype is None else out_dtype

    assert cin % num_groups == 0 and cout % num_groups == 0, (
        "num_groups must divide both in_channels and out_channels",
        cin, cout, num_groups)

    # --- wrapper-side parameter packing (layout glue, done once) ---
    # Conv weights: PyTorch (O, I, 3) -> per-tap slabs (3, O, I), bf16 for the MXU.
    w1 = jnp.transpose(params["conv1_w"], (2, 0, 1)).astype(jnp.bfloat16)
    w2 = jnp.transpose(params["conv2_w"], (2, 0, 1)).astype(jnp.bfloat16)
    gn1 = jnp.stack([params["gn1_w"], params["gn1_b"]], axis=1).astype(jnp.float32)
    gn2 = jnp.stack([params["gn2_w"], params["gn2_b"]], axis=1).astype(jnp.float32)
    pool_in = _group_pool_matrix(cin, num_groups, T)
    pool_out = _group_pool_matrix(cout, num_groups, T)
    to_out_b = params.get("to_out_b", jnp.zeros((cout,), jnp.float32))
    biases = jnp.stack([params["conv1_b"], params["conv2_b"], to_out_b],
                       axis=1).astype(jnp.float32)                  # (Cout, 3)

    const_args = [gn1, pool_in, w1, gn2, pool_out, w2]
    wout_size = 0
    if has_projection:
        wout = params["to_out_w"][..., 0].astype(jnp.bfloat16)      # (Cout, Cin)
        wout_size = wout.size
        const_args.append(wout)
    const_args.append(biases)

    flops = 2 * B * T * (3 * cin * cout + 3 * cout * cout
                         + (cin * cout if has_projection else 0)) \
            + 4 * B * (cin * cin + cout * cout)
    cost = pl.CostEstimate(
        flops=int(flops),
        transcendentals=int(B * T * (cin + cout)),
        bytes_accessed=int(x.dtype.itemsize * B * cin * T
                           + jnp.dtype(out_dtype).itemsize * B * cout * T
                           + 2 * (w1.size + w2.size + wout_size)
                           + 4 * (gn1.size + gn2.size + biases.size
                                  + pool_in.size + pool_out.size)),
    )

    kernel = functools.partial(resnet_block_kernel, has_projection=has_projection)

    def build(single_buffer_params):
        def const_spec(shape):
            idx_map = lambda b, _s=shape: (0,) * len(_s)
            if single_buffer_params:
                # Grid-invariant inputs: no need for double buffering.
                return pl.BlockSpec(shape, idx_map, pipeline_mode=pl.Buffered(1))
            return pl.BlockSpec(shape, idx_map)

        in_specs = [pl.BlockSpec((1, cin, T), lambda b: (b, 0, 0))]
        in_specs += [const_spec(a.shape) for a in const_args]
        return pl.pallas_call(
            kernel,
            grid=(B,),
            in_specs=in_specs,
            out_specs=pl.BlockSpec((1, cout, T), lambda b: (b, 0, 0)),
            out_shape=jax.ShapeDtypeStruct((B, cout, T), out_dtype),
            compiler_params=pltpu.CompilerParams(
                dimension_semantics=("parallel",),
                vmem_limit_bytes=64 * 1024 * 1024),
            cost_estimate=cost,
        )

    try:
        return build(True)(x, *const_args)
    except Exception:
        # Fallback for jax versions / backends without BlockSpec pipeline_mode
        # support: identical kernel with default (double) buffering.
        return build(False)(x, *const_args)


# ------------------------------ pure-JAX reference ----------------------------

def _ref_groupnorm(x, w, b, num_groups):
    B, C, T = x.shape
    xg = x.reshape(B, num_groups, -1)
    mu = xg.mean(-1, keepdims=True)
    var = ((xg - mu) ** 2).mean(-1, keepdims=True)
    xn = ((xg - mu) * jax.lax.rsqrt(var + EPS)).reshape(B, C, T)
    return xn * w[None, :, None] + b[None, :, None]


def _ref_conv(x, w, b, rnd):
    # w: (O, I, K) PyTorch layout. "same" pad for K=3 (pad 1/1), none for K=1,
    # matching the module's Conv1d.forward with stride=1, dilation=1, causal=False.
    K = w.shape[-1]
    pad = (K - 1) // 2
    y = jax.lax.conv_general_dilated(
        rnd(x), rnd(w), window_strides=(1,), padding=[(pad, pad)],
        dimension_numbers=("NCH", "OIH", "NCH"),
        precision=jax.lax.Precision.HIGHEST,
        preferred_element_type=jnp.float32)
    return y + b[None, :, None]


def ref_resnet_block(x, p, *, num_groups, rnd=lambda a: a):
    h = _ref_groupnorm(x, p["gn1_w"], p["gn1_b"], num_groups)
    h = jax.nn.silu(h)
    h = _ref_conv(h, p["conv1_w"], p["conv1_b"], rnd)
    h = _ref_groupnorm(h, p["gn2_w"], p["gn2_b"], num_groups)
    h = jax.nn.silu(h)
    h = _ref_conv(h, p["conv2_w"], p["conv2_b"], rnd)
    if "to_out_w" in p:
        skip = _ref_conv(x, p["to_out_w"], p["to_out_b"], rnd)
    else:
        skip = x
    return h + skip


# ----------------------------------- main -------------------------------------

if __name__ == "__main__":
    B, T, NUM_GROUPS = 2, 256, 4   # T multiple of 128 -> lane-dense output stores

    key = jax.random.PRNGKey(0)

    def nrm(k, shape, scale=0.1):
        return (scale * jax.random.normal(k, shape)).astype(jnp.float32)

    def make_params(k, cin, cout, with_projection):
        ks = jax.random.split(k, 10)
        p = {
            "gn1_w": 1.0 + nrm(ks[0], (cin,)), "gn1_b": nrm(ks[1], (cin,)),
            "conv1_w": nrm(ks[2], (cout, cin, 3)), "conv1_b": nrm(ks[3], (cout,)),
            "gn2_w": 1.0 + nrm(ks[4], (cout,)), "gn2_b": nrm(ks[5], (cout,)),
            "conv2_w": nrm(ks[6], (cout, cout, 3)), "conv2_b": nrm(ks[7], (cout,)),
        }
        if with_projection:
            p["to_out_w"] = nrm(ks[8], (cout, cin, 1))
            p["to_out_b"] = nrm(ks[9], (cout,))
        return p

    rnd_bf16 = lambda a: a.astype(jnp.bfloat16).astype(jnp.float32)

    # (in_channels, out_channels, to_out-is-1x1-conv)
    cases = [(16, 16, False),   # to_out = Identity
             (8, 16, True)]     # to_out = Conv1d(kernel=1)

    for idx, (cin, cout, proj) in enumerate(cases):
        kp, kx = jax.random.split(jax.random.fold_in(key, idx))
        params = make_params(kp, cin, cout, proj)
        x = jax.random.normal(kx, (B, cin, T), dtype=jnp.float32)

        y = jax.block_until_ready(
            resnet_block1d_forward(x, params, num_groups=NUM_GROUPS))
        assert y.shape == (B, cout, T), (idx, y.shape)

        # Reference with matmul operands rounded to bf16 (matches the kernel's
        # MXU precision): tight check.
        y_bf = jax.block_until_ready(
            ref_resnet_block(x, params, num_groups=NUM_GROUPS, rnd=rnd_bf16))
        err_bf = float(jnp.max(jnp.abs(y - y_bf)))
        assert err_bf <= 1e-2, (idx, err_bf)

        # Strict f32 reference: loose sanity check (bf16 matmul operands only).
        y_f32 = jax.block_until_ready(
            ref_resnet_block(x, params, num_groups=NUM_GROUPS))
        err_f32 = float(jnp.max(jnp.abs(y - y_f32)))
        assert err_f32 <= 6e-2, (idx, err_f32)

    print("KERNEL_OK")
</pallas_src>

<mosaic_0001>
module attributes {stable_mosaic.version = 11 : i64} {
  func.func @resnet_block_kernel(%arg0: i32, %arg1: memref<1x16x256xf32, #tpu.memory_space<vmem>>, %arg2: memref<16x2xf32, #tpu.memory_space<vmem>>, %arg3: memref<16x16xf32, #tpu.memory_space<vmem>>, %arg4: memref<3x16x16xbf16, #tpu.memory_space<vmem>>, %arg5: memref<16x2xf32, #tpu.memory_space<vmem>>, %arg6: memref<16x16xf32, #tpu.memory_space<vmem>>, %arg7: memref<3x16x16xbf16, #tpu.memory_space<vmem>>, %arg8: memref<16x3xf32, #tpu.memory_space<vmem>>, %arg9: memref<1x16x256xf32, #tpu.memory_space<vmem>>) attributes {dimension_semantics = [#tpu.dimension_semantics<parallel>], iteration_bounds = array<i64: 2>, scalar_prefetch = 0 : i64, scratch_operands = 0 : i64, tpu.core_type = #tpu.core_type<tc>, window_params = [{transform_indices = @transform_0, window_bounds = array<i64: 1, 16, 256>}, {pipeline_mode = #tpu.pipeline_mode<synchronous>, transform_indices = @transform_1, window_bounds = array<i64: 16, 2>}, {pipeline_mode = #tpu.pipeline_mode<synchronous>, transform_indices = @transform_2, window_bounds = array<i64: 16, 16>}, {pipeline_mode = #tpu.pipeline_mode<synchronous>, transform_indices = @transform_3, window_bounds = array<i64: 3, 16, 16>}, {pipeline_mode = #tpu.pipeline_mode<synchronous>, transform_indices = @transform_4, window_bounds = array<i64: 16, 2>}, {pipeline_mode = #tpu.pipeline_mode<synchronous>, transform_indices = @transform_5, window_bounds = array<i64: 16, 16>}, {pipeline_mode = #tpu.pipeline_mode<synchronous>, transform_indices = @transform_6, window_bounds = array<i64: 3, 16, 16>}, {pipeline_mode = #tpu.pipeline_mode<synchronous>, transform_indices = @transform_7, window_bounds = array<i64: 16, 3>}, {transform_indices = @transform_8, window_bounds = array<i64: 1, 16, 256>}]} {
    %c0 = arith.constant 0 : index
    %c0_0 = arith.constant 0 : index
    %c0_1 = arith.constant 0 : index
    %0 = vector.load %arg1[%c0, %c0_0, %c0_1] : memref<1x16x256xf32, #tpu.memory_space<vmem>>, vector<1x16x256xf32>
    %1 = vector.shape_cast %0 : vector<1x16x256xf32> to vector<16x256xf32>
    %c0_2 = arith.constant 0 : index
    %c0_3 = arith.constant 0 : index
    %2 = vector.load %arg8[%c0_2, %c0_3] : memref<16x3xf32, #tpu.memory_space<vmem>>, vector<16x3xf32>
    %3 = tpu.iota {dimensions = array<i32: 1>} : vector<1x256xi32>
    %c0_i32 = arith.constant 0 : i32
    %4 = vector.broadcast %c0_i32 : i32 to vector<1x256xi32>
    %5 = arith.cmpi ne, %3, %4 : vector<1x256xi32>
    %c255_i32 = arith.constant 255 : i32
    %6 = vector.broadcast %c255_i32 : i32 to vector<1x256xi32>
    %7 = arith.cmpi ne, %3, %6 : vector<1x256xi32>
    %c0_4 = arith.constant 0 : index
    %c0_5 = arith.constant 0 : index
    %8 = vector.load %arg2[%c0_4, %c0_5] : memref<16x2xf32, #tpu.memory_space<vmem>>, vector<16x2xf32>
    %c0_6 = arith.constant 0 : index
    %c0_7 = arith.constant 0 : index
    %9 = vector.load %arg3[%c0_6, %c0_7] : memref<16x16xf32, #tpu.memory_space<vmem>>, vector<16x16xf32>
    %cst = arith.constant dense<0.000000e+00> : vector<16xf32>
    %10 = vector.multi_reduction <add>, %1, %cst [1] : vector<16x256xf32> to vector<16xf32>
    %11 = vector.shape_cast %10 : vector<16xf32> to vector<16x1xf32>
    %cst_8 = arith.constant dense<0.000000e+00> : vector<16x1xf32>
    %12 = tpu.matmul %9, %11, %cst_8 {dimension_numbers = #tpu.dot_dimension_numbers<[1], [0], [0], [1], [0, 0, 1, 1], [], []>} : vector<16x16xf32>, vector<16x1xf32>, vector<16x1xf32> -> vector<16x1xf32>
    %13 = vector.broadcast %12 : vector<16x1xf32> to vector<16x256xf32>
    %14 = arith.subf %1, %13 : vector<16x256xf32>
    %15 = arith.mulf %14, %14 : vector<16x256xf32>
    %cst_9 = arith.constant dense<0.000000e+00> : vector<16xf32>
    %16 = vector.multi_reduction <add>, %15, %cst_9 [1] : vector<16x256xf32> to vector<16xf32>
    %17 = vector.shape_cast %16 : vector<16xf32> to vector<16x1xf32>
    %cst_10 = arith.constant dense<0.000000e+00> : vector<16x1xf32>
    %18 = tpu.matmul %9, %17, %cst_10 {dimension_numbers = #tpu.dot_dimension_numbers<[1], [0], [0], [1], [0, 0, 1, 1], [], []>} : vector<16x16xf32>, vector<16x1xf32>, vector<16x1xf32> -> vector<16x1xf32>
    %cst_11 = arith.constant 9.99999974E-6 : f32
    %19 = vector.broadcast %cst_11 : f32 to vector<16x1xf32>
    %20 = arith.addf %18, %19 : vector<16x1xf32>
    %21 = math.rsqrt %20 : vector<16x1xf32>
    %22 = vector.extract_strided_slice %8 {offsets = [0, 0], sizes = [16, 1], strides = [1, 1]} : vector<16x2xf32> to vector<16x1xf32>
    %23 = arith.mulf %21, %22 : vector<16x1xf32>
    %24 = vector.broadcast %23 : vector<16x1xf32> to vector<16x256xf32>
    %25 = arith.mulf %14, %24 : vector<16x256xf32>
    %26 = vector.extract_strided_slice %8 {offsets = [0, 1], sizes = [16, 1], strides = [1, 1]} : vector<16x2xf32> to vector<16x1xf32>
    %27 = vector.broadcast %26 : vector<16x1xf32> to vector<16x256xf32>
    %28 = arith.addf %25, %27 : vector<16x256xf32>
    %29 = arith.negf %28 : vector<16x256xf32>
    %30 = math.exp %29 : vector<16x256xf32>
    %cst_12 = arith.constant 1.000000e+00 : f32
    %31 = vector.broadcast %cst_12 : f32 to vector<16x256xf32>
    %32 = arith.addf %31, %30 : vector<16x256xf32>
    %33 = arith.divf %31, %32 : vector<16x256xf32>
    %34 = arith.mulf %28, %33 : vector<16x256xf32>
    %35 = vector.extract_strided_slice %2 {offsets = [0, 0], sizes = [16, 1], strides = [1, 1]} : vector<16x3xf32> to vector<16x1xf32>
    %c1_i32 = arith.constant 1 : i32
    %36 = tpu.dynamic_rotate %34 by %c1_i32 dim 1 : vector<16x256xf32>, i32 -> vector<16x256xf32>
    %cst_13 = arith.constant 0.000000e+00 : f32
    %37 = vector.shape_cast %5 : vector<1x256xi1> to vector<1x256xi1>
    %38 = vector.broadcast %37 : vector<1x256xi1> to vector<16x256xi1>
    %39 = vector.broadcast %cst_13 : f32 to vector<16x256xf32>
    %40 = arith.select %38, %36, %39 : vector<16x256xi1>, vector<16x256xf32>
    %c255_i32_14 = arith.constant 255 : i32
    %41 = tpu.dynamic_rotate %34 by %c255_i32_14 dim 1 : vector<16x256xf32>, i32 -> vector<16x256xf32>
    %cst_15 = arith.constant 0.000000e+00 : f32
    %42 = vector.shape_cast %7 : vector<1x256xi1> to vector<1x256xi1>
    %43 = vector.broadcast %42 : vector<1x256xi1> to vector<16x256xi1>
    %44 = vector.broadcast %cst_15 : f32 to vector<16x256xf32>
    %45 = arith.select %43, %41, %44 : vector<16x256xi1>, vector<16x256xf32>
    %c1 = arith.constant 1 : index
    %c0_16 = arith.constant 0 : index
    %c0_17 = arith.constant 0 : index
    %46 = vector.load %arg4[%c1, %c0_16, %c0_17] : memref<3x16x16xbf16, #tpu.memory_space<vmem>>, vector<1x16x16xbf16>
    %47 = vector.shape_cast %46 : vector<1x16x16xbf16> to vector<16x16xbf16>
    %48 = arith.truncf %34 : vector<16x256xf32> to vector<16x256xbf16>
    %cst_18 = arith.constant dense<0.000000e+00> : vector<16x256xf32>
    %49 = tpu.matmul %47, %48, %cst_18 {dimension_numbers = #tpu.dot_dimension_numbers<[1], [0], [0], [1], [0, 0, 1, 1], [], []>} : vector<16x16xbf16>, vector<16x256xbf16>, vector<16x256xf32> -> vector<16x256xf32>
    %c0_19 = arith.constant 0 : index
    %c0_20 = arith.constant 0 : index
    %c0_21 = arith.constant 0 : index
    %50 = vector.load %arg4[%c0_19, %c0_20, %c0_21] : memref<3x16x16xbf16, #tpu.memory_space<vmem>>, vector<1x16x16xbf16>
    %51 = vector.shape_cast %50 : vector<1x16x16xbf16> to vector<16x16xbf16>
    %52 = arith.truncf %40 : vector<16x256xf32> to vector<16x256xbf16>
    %cst_22 = arith.constant dense<0.000000e+00> : vector<16x256xf32>
    %53 = tpu.matmul %51, %52, %cst_22 {dimension_numbers = #tpu.dot_dimension_numbers<[1], [0], [0], [1], [0, 0, 1, 1], [], []>} : vector<16x16xbf16>, vector<16x256xbf16>, vector<16x256xf32> -> vector<16x256xf32>
    %54 = arith.addf %49, %53 : vector<16x256xf32>
    %c2 = arith.constant 2 : index
    %c0_23 = arith.constant 0 : index
    %c0_24 = arith.constant 0 : index
    %55 = vector.load %arg4[%c2, %c0_23, %c0_24] : memref<3x16x16xbf16, #tpu.memory_space<vmem>>, vector<1x16x16xbf16>
    %56 = vector.shape_cast %55 : vector<1x16x16xbf16> to vector<16x16xbf16>
    %57 = arith.truncf %45 : vector<16x256xf32> to vector<16x256xbf16>
    %cst_25 = arith.constant dense<0.000000e+00> : vector<16x256xf32>
    %58 = tpu.matmul %56, %57, %cst_25 {dimension_numbers = #tpu.dot_dimension_numbers<[1], [0], [0], [1], [0, 0, 1, 1], [], []>} : vector<16x16xbf16>, vector<16x256xbf16>, vector<16x256xf32> -> vector<16x256xf32>
    %59 = arith.addf %54, %58 : vector<16x256xf32>
    %60 = vector.broadcast %35 : vector<16x1xf32> to vector<16x256xf32>
    %61 = arith.addf %59, %60 : vector<16x256xf32>
    %c0_26 = arith.constant 0 : index
    %c0_27 = arith.constant 0 : index
    %62 = vector.load %arg5[%c0_26, %c0_27] : memref<16x2xf32, #tpu.memory_space<vmem>>, vector<16x2xf32>
    %c0_28 = arith.constant 0 : index
    %c0_29 = arith.constant 0 : index
    %63 = vector.load %arg6[%c0_28, %c0_29] : memref<16x16xf32, #tpu.memory_space<vmem>>, vector<16x16xf32>
    %cst_30 = arith.constant dense<0.000000e+00> : vector<16xf32>
    %64 = vector.multi_reduction <add>, %61, %cst_30 [1] : vector<16x256xf32> to vector<16xf32>
    %65 = vector.shape_cast %64 : vector<16xf32> to vector<16x1xf32>
    %cst_31 = arith.constant dense<0.000000e+00> : vector<16x1xf32>
    %66 = tpu.matmul %63, %65, %cst_31 {dimension_numbers = #tpu.dot_dimension_numbers<[1], [0], [0], [1], [0, 0, 1, 1], [], []>} : vector<16x16xf32>, vector<16x1xf32>, vector<16x1xf32> -> vector<16x1xf32>
    %67 = vector.broadcast %66 : vector<16x1xf32> to vector<16x256xf32>
    %68 = arith.subf %61, %67 : vector<16x256xf32>
    %69 = arith.mulf %68, %68 : vector<16x256xf32>
    %cst_32 = arith.constant dense<0.000000e+00> : vector<16xf32>
    %70 = vector.multi_reduction <add>, %69, %cst_32 [1] : vector<16x256xf32> to vector<16xf32>
    %71 = vector.shape_cast %70 : vector<16xf32> to vector<16x1xf32>
    %cst_33 = arith.constant dense<0.000000e+00> : vector<16x1xf32>
    %72 = tpu.matmul %63, %71, %cst_33 {dimension_numbers = #tpu.dot_dimension_numbers<[1], [0], [0], [1], [0, 0, 1, 1], [], []>} : vector<16x16xf32>, vector<16x1xf32>, vector<16x1xf32> -> vector<16x1xf32>
    %cst_34 = arith.constant 9.99999974E-6 : f32
    %73 = vector.broadcast %cst_34 : f32 to vector<16x1xf32>
    %74 = arith.addf %72, %73 : vector<16x1xf32>
    %75 = math.rsqrt %74 : vector<16x1xf32>
    %76 = vector.extract_strided_slice %62 {offsets = [0, 0], sizes = [16, 1], strides = [1, 1]} : vector<16x2xf32> to vector<16x1xf32>
    %77 = arith.mulf %75, %76 : vector<16x1xf32>
    %78 = vector.broadcast %77 : vector<16x1xf32> to vector<16x256xf32>
    %79 = arith.mulf %68, %78 : vector<16x256xf32>
    %80 = vector.extract_strided_slice %62 {offsets = [0, 1], sizes = [16, 1], strides = [1, 1]} : vector<16x2xf32> to vector<16x1xf32>
    %81 = vector.broadcast %80 : vector<16x1xf32> to vector<16x256xf32>
    %82 = arith.addf %79, %81 : vector<16x256xf32>
    %83 = arith.negf %82 : vector<16x256xf32>
    %84 = math.exp %83 : vector<16x256xf32>
    %cst_35 = arith.constant 1.000000e+00 : f32
    %85 = vector.broadcast %cst_35 : f32 to vector<16x256xf32>
    %86 = arith.addf %85, %84 : vector<16x256xf32>
    %87 = arith.divf %85, %86 : vector<16x256xf32>
    %88 = arith.mulf %82, %87 : vector<16x256xf32>
    %89 = vector.extract_strided_slice %2 {offsets = [0, 1], sizes = [16, 1], strides = [1, 1]} : vector<16x3xf32> to vector<16x1xf32>
    %c1_i32_36 = arith.constant 1 : i32
    %90 = tpu.dynamic_rotate %88 by %c1_i32_36 dim 1 : vector<16x256xf32>, i32 -> vector<16x256xf32>
    %cst_37 = arith.constant 0.000000e+00 : f32
    %91 = vector.shape_cast %5 : vector<1x256xi1> to vector<1x256xi1>
    %92 = vector.broadcast %91 : vector<1x256xi1> to vector<16x256xi1>
    %93 = vector.broadcast %cst_37 : f32 to vector<16x256xf32>
    %94 = arith.select %92, %90, %93 : vector<16x256xi1>, vector<16x256xf32>
    %c255_i32_38 = arith.constant 255 : i32
    %95 = tpu.dynamic_rotate %88 by %c255_i32_38 dim 1 : vector<16x256xf32>, i32 -> vector<16x256xf32>
    %cst_39 = arith.constant 0.000000e+00 : f32
    %96 = vector.shape_cast %7 : vector<1x256xi1> to vector<1x256xi1>
    %97 = vector.broadcast %96 : vector<1x256xi1> to vector<16x256xi1>
    %98 = vector.broadcast %cst_39 : f32 to vector<16x256xf32>
    %99 = arith.select %97, %95, %98 : vector<16x256xi1>, vector<16x256xf32>
    %c1_40 = arith.constant 1 : index
    %c0_41 = arith.constant 0 : index
    %c0_42 = arith.constant 0 : index
    %100 = vector.load %arg7[%c1_40, %c0_41, %c0_42] : memref<3x16x16xbf16, #tpu.memory_space<vmem>>, vector<1x16x16xbf16>
    %101 = vector.shape_cast %100 : vector<1x16x16xbf16> to vector<16x16xbf16>
    %102 = arith.truncf %88 : vector<16x256xf32> to vector<16x256xbf16>
    %cst_43 = arith.constant dense<0.000000e+00> : vector<16x256xf32>
    %103 = tpu.matmul %101, %102, %cst_43 {dimension_numbers = #tpu.dot_dimension_numbers<[1], [0], [0], [1], [0, 0, 1, 1], [], []>} : vector<16x16xbf16>, vector<16x256xbf16>, vector<16x256xf32> -> vector<16x256xf32>
    %c0_44 = arith.constant 0 : index
    %c0_45 = arith.constant 0 : index
    %c0_46 = arith.constant 0 : index
    %104 = vector.load %arg7[%c0_44, %c0_45, %c0_46] : memref<3x16x16xbf16, #tpu.memory_space<vmem>>, vector<1x16x16xbf16>
    %105 = vector.shape_cast %104 : vector<1x16x16xbf16> to vector<16x16xbf16>
    %106 = arith.truncf %94 : vector<16x256xf32> to vector<16x256xbf16>
    %cst_47 = arith.constant dense<0.000000e+00> : vector<16x256xf32>
    %107 = tpu.matmul %105, %106, %cst_47 {dimension_numbers = #tpu.dot_dimension_numbers<[1], [0], [0], [1], [0, 0, 1, 1], [], []>} : vector<16x16xbf16>, vector<16x256xbf16>, vector<16x256xf32> -> vector<16x256xf32>
    %108 = arith.addf %103, %107 : vector<16x256xf32>
    %c2_48 = arith.constant 2 : index
    %c0_49 = arith.constant 0 : index
    %c0_50 = arith.constant 0 : index
    %109 = vector.load %arg7[%c2_48, %c0_49, %c0_50] : memref<3x16x16xbf16, #tpu.memory_space<vmem>>, vector<1x16x16xbf16>
    %110 = vector.shape_cast %109 : vector<1x16x16xbf16> to vector<16x16xbf16>
    %111 = arith.truncf %99 : vector<16x256xf32> to vector<16x256xbf16>
    %cst_51 = arith.constant dense<0.000000e+00> : vector<16x256xf32>
    %112 = tpu.matmul %110, %111, %cst_51 {dimension_numbers = #tpu.dot_dimension_numbers<[1], [0], [0], [1], [0, 0, 1, 1], [], []>} : vector<16x16xbf16>, vector<16x256xbf16>, vector<16x256xf32> -> vector<16x256xf32>
    %113 = arith.addf %108, %112 : vector<16x256xf32>
    %114 = vector.broadcast %89 : vector<16x1xf32> to vector<16x256xf32>
    %115 = arith.addf %113, %114 : vector<16x256xf32>
    %116 = arith.addf %115, %1 : vector<16x256xf32>
    %c0_52 = arith.constant 0 : index
    %c0_53 = arith.constant 0 : index
    %c0_54 = arith.constant 0 : index
    %117 = vector.load %arg9[%c0_52, %c0_53, %c0_54] : memref<1x16x256xf32, #tpu.memory_space<vmem>>, vector<1x16x256xf32>
    %118 = vector.shape_cast %117 : vector<1x16x256xf32> to vector<16x256xf32>
    %119 = vector.shape_cast %116 : vector<16x256xf32> to vector<1x16x256xf32>
    tpu.vector_store %arg9[%c0_52, %c0_53, %c0_54], %119 {strides = array<i32>} : memref<1x16x256xf32, #tpu.memory_space<vmem>>, vector<1x16x256xf32>,
    return
  }
  func.func @transform_0(%arg0: i32) -> (i32, i32, i32) {
    %c0_i32 = arith.constant 0 : i32
    %c0_i32_0 = arith.constant 0 : i32
    %c0_i32_1 = arith.constant 0 : i32
    return %arg0, %c0_i32, %c0_i32_0 : i32, i32, i32
  }
  func.func @transform_1(%arg0: i32) -> (i32, i32) {
    %c0_i32 = arith.constant 0 : i32
    %c0_i32_0 = arith.constant 0 : i32
    %c0_i32_1 = arith.constant 0 : i32
    return %c0_i32, %c0_i32_0 : i32, i32
  }
  func.func @transform_2(%arg0: i32) -> (i32, i32) {
    %c0_i32 = arith.constant 0 : i32
    %c0_i32_0 = arith.constant 0 : i32
    %c0_i32_1 = arith.constant 0 : i32
    return %c0_i32, %c0_i32_0 : i32, i32
  }
  func.func @transform_3(%arg0: i32) -> (i32, i32, i32) {
    %c0_i32 = arith.constant 0 : i32
    %c0_i32_0 = arith.constant 0 : i32
    %c0_i32_1 = arith.constant 0 : i32
    %c0_i32_2 = arith.constant 0 : i32
    return %c0_i32, %c0_i32_0, %c0_i32_1 : i32, i32, i32
  }
  func.func @transform_4(%arg0: i32) -> (i32, i32) {
    %c0_i32 = arith.constant 0 : i32
    %c0_i32_0 = arith.constant 0 : i32
    %c0_i32_1 = arith.constant 0 : i32
    return %c0_i32, %c0_i32_0 : i32, i32
  }
  func.func @transform_5(%arg0: i32) -> (i32, i32) {
    %c0_i32 = arith.constant 0 : i32
    %c0_i32_0 = arith.constant 0 : i32
    %c0_i32_1 = arith.constant 0 : i32
    return %c0_i32, %c0_i32_0 : i32, i32
  }
  func.func @transform_6(%arg0: i32) -> (i32, i32, i32) {
    %c0_i32 = arith.constant 0 : i32
    %c0_i32_0 = arith.constant 0 : i32
    %c0_i32_1 = arith.constant 0 : i32
    %c0_i32_2 = arith.constant 0 : i32
    return %c0_i32, %c0_i32_0, %c0_i32_1 : i32, i32, i32
  }
  func.func @transform_7(%arg0: i32) -> (i32, i32) {
    %c0_i32 = arith.constant 0 : i32
    %c0_i32_0 = arith.constant 0 : i32
    %c0_i32_1 = arith.constant 0 : i32
    return %c0_i32, %c0_i32_0 : i32, i32
  }
  func.func @transform_8(%arg0: i32) -> (i32, i32, i32) {
    %c0_i32 = arith.constant 0 : i32
    %c0_i32_0 = arith.constant 0 : i32
    %c0_i32_1 = arith.constant 0 : i32
    return %arg0, %c0_i32, %c0_i32_0 : i32, i32, i32
  }
}

module attributes {stable_mosaic.version = 11 : i64} {
  func.func @resnet_block_kernel(%arg0: i32, %arg1: memref<1x16x256xf32, #tpu.memory_space<vmem>>, %arg2: memref<16x2xf32, #tpu.memory_space<vmem>>, %arg3: memref<16x16xf32, #tpu.memory_space<vmem>>, %arg4: memref<3x16x16xbf16, #tpu.memory_space<vmem>>, %arg5: memref<16x2xf32, #tpu.memory_space<vmem>>, %arg6: memref<16x16xf32, #tpu.memory_space<vmem>>, %arg7: memref<3x16x16xbf16, #tpu.memory_space<vmem>>, %arg8: memref<16x3xf32, #tpu.memory_space<vmem>>, %arg9: memref<1x16x256xf32, #tpu.memory_space<vmem>>) attributes {dimension_semantics = [#tpu.dimension_semantics<parallel>], iteration_bounds = array<i64: 2>, scalar_prefetch = 0 : i64, scratch_operands = 0 : i64, tpu.core_type = #tpu.core_type<tc>, window_params = [{transform_indices = @transform_0, window_bounds = array<i64: 1, 16, 256>}, {pipeline_mode = #tpu.pipeline_mode<synchronous>, transform_indices = @transform_1, window_bounds = array<i64: 16, 2>}, {pipeline_mode = #tpu.pipeline_mode<synchronous>, transform_indices = @transform_2, window_bounds = array<i64: 16, 16>}, {pipeline_mode = #tpu.pipeline_mode<synchronous>, transform_indices = @transform_3, window_bounds = array<i64: 3, 16, 16>}, {pipeline_mode = #tpu.pipeline_mode<synchronous>, transform_indices = @transform_4, window_bounds = array<i64: 16, 2>}, {pipeline_mode = #tpu.pipeline_mode<synchronous>, transform_indices = @transform_5, window_bounds = array<i64: 16, 16>}, {pipeline_mode = #tpu.pipeline_mode<synchronous>, transform_indices = @transform_6, window_bounds = array<i64: 3, 16, 16>}, {pipeline_mode = #tpu.pipeline_mode<synchronous>, transform_indices = @transform_7, window_bounds = array<i64: 16, 3>}, {transform_indices = @transform_8, window_bounds = array<i64: 1, 16, 256>}]} {
    %c0 = arith.constant 0 : index
    %c0_0 = arith.constant 0 : index
    %c0_1 = arith.constant 0 : index
    %0 = vector.load %arg1[%c0, %c0_0, %c0_1] : memref<1x16x256xf32, #tpu.memory_space<vmem>>, vector<1x16x256xf32>
    %1 = vector.shape_cast %0 : vector<1x16x256xf32> to vector<16x256xf32>
    %c0_2 = arith.constant 0 : index
    %c0_3 = arith.constant 0 : index
    %2 = vector.load %arg8[%c0_2, %c0_3] : memref<16x3xf32, #tpu.memory_space<vmem>>, vector<16x3xf32>
    %3 = tpu.iota {dimensions = array<i32: 1>} : vector<1x256xi32>
    %c0_i32 = arith.constant 0 : i32
    %4 = vector.broadcast %c0_i32 : i32 to vector<1x256xi32>
    %5 = arith.cmpi ne, %3, %4 : vector<1x256xi32>
    %c255_i32 = arith.constant 255 : i32
    %6 = vector.broadcast %c255_i32 : i32 to vector<1x256xi32>
    %7 = arith.cmpi ne, %3, %6 : vector<1x256xi32>
    %c0_4 = arith.constant 0 : index
    %c0_5 = arith.constant 0 : index
    %8 = vector.load %arg2[%c0_4, %c0_5] : memref<16x2xf32, #tpu.memory_space<vmem>>, vector<16x2xf32>
    %c0_6 = arith.constant 0 : index
    %c0_7 = arith.constant 0 : index
    %9 = vector.load %arg3[%c0_6, %c0_7] : memref<16x16xf32, #tpu.memory_space<vmem>>, vector<16x16xf32>
    %cst = arith.constant dense<0.000000e+00> : vector<16xf32>
    %10 = vector.multi_reduction <add>, %1, %cst [1] : vector<16x256xf32> to vector<16xf32>
    %11 = vector.shape_cast %10 : vector<16xf32> to vector<16x1xf32>
    %cst_8 = arith.constant dense<0.000000e+00> : vector<16x1xf32>
    %12 = tpu.matmul %9, %11, %cst_8 {dimension_numbers = #tpu.dot_dimension_numbers<[1], [0], [0], [1], [0, 0, 1, 1], [], []>} : vector<16x16xf32>, vector<16x1xf32>, vector<16x1xf32> -> vector<16x1xf32>
    %13 = vector.broadcast %12 : vector<16x1xf32> to vector<16x256xf32>
    %14 = arith.subf %1, %13 : vector<16x256xf32>
    %15 = arith.mulf %14, %14 : vector<16x256xf32>
    %cst_9 = arith.constant dense<0.000000e+00> : vector<16xf32>
    %16 = vector.multi_reduction <add>, %15, %cst_9 [1] : vector<16x256xf32> to vector<16xf32>
    %17 = vector.shape_cast %16 : vector<16xf32> to vector<16x1xf32>
    %cst_10 = arith.constant dense<0.000000e+00> : vector<16x1xf32>
    %18 = tpu.matmul %9, %17, %cst_10 {dimension_numbers = #tpu.dot_dimension_numbers<[1], [0], [0], [1], [0, 0, 1, 1], [], []>} : vector<16x16xf32>, vector<16x1xf32>, vector<16x1xf32> -> vector<16x1xf32>
    %cst_11 = arith.constant 9.99999974E-6 : f32
    %19 = vector.broadcast %cst_11 : f32 to vector<16x1xf32>
    %20 = arith.addf %18, %19 : vector<16x1xf32>
    %21 = math.rsqrt %20 : vector<16x1xf32>
    %22 = vector.extract_strided_slice %8 {offsets = [0, 0], sizes = [16, 1], strides = [1, 1]} : vector<16x2xf32> to vector<16x1xf32>
    %23 = arith.mulf %21, %22 : vector<16x1xf32>
    %24 = vector.broadcast %23 : vector<16x1xf32> to vector<16x256xf32>
    %25 = arith.mulf %14, %24 : vector<16x256xf32>
    %26 = vector.extract_strided_slice %8 {offsets = [0, 1], sizes = [16, 1], strides = [1, 1]} : vector<16x2xf32> to vector<16x1xf32>
    %27 = vector.broadcast %26 : vector<16x1xf32> to vector<16x256xf32>
    %28 = arith.addf %25, %27 : vector<16x256xf32>
    %29 = arith.negf %28 : vector<16x256xf32>
    %30 = math.exp %29 : vector<16x256xf32>
    %cst_12 = arith.constant 1.000000e+00 : f32
    %31 = vector.broadcast %cst_12 : f32 to vector<16x256xf32>
    %32 = arith.addf %31, %30 : vector<16x256xf32>
    %33 = arith.divf %31, %32 : vector<16x256xf32>
    %34 = arith.mulf %28, %33 : vector<16x256xf32>
    %35 = vector.extract_strided_slice %2 {offsets = [0, 0], sizes = [16, 1], strides = [1, 1]} : vector<16x3xf32> to vector<16x1xf32>
    %c1_i32 = arith.constant 1 : i32
    %36 = tpu.dynamic_rotate %34 by %c1_i32 dim 1 : vector<16x256xf32>, i32 -> vector<16x256xf32>
    %cst_13 = arith.constant 0.000000e+00 : f32
    %37 = vector.shape_cast %5 : vector<1x256xi1> to vector<1x256xi1>
    %38 = vector.broadcast %37 : vector<1x256xi1> to vector<16x256xi1>
    %39 = vector.broadcast %cst_13 : f32 to vector<16x256xf32>
    %40 = arith.select %38, %36, %39 : vector<16x256xi1>, vector<16x256xf32>
    %c255_i32_14 = arith.constant 255 : i32
    %41 = tpu.dynamic_rotate %34 by %c255_i32_14 dim 1 : vector<16x256xf32>, i32 -> vector<16x256xf32>
    %cst_15 = arith.constant 0.000000e+00 : f32
    %42 = vector.shape_cast %7 : vector<1x256xi1> to vector<1x256xi1>
    %43 = vector.broadcast %42 : vector<1x256xi1> to vector<16x256xi1>
    %44 = vector.broadcast %cst_15 : f32 to vector<16x256xf32>
    %45 = arith.select %43, %41, %44 : vector<16x256xi1>, vector<16x256xf32>
    %c1 = arith.constant 1 : index
    %c0_16 = arith.constant 0 : index
    %c0_17 = arith.constant 0 : index
    %46 = vector.load %arg4[%c1, %c0_16, %c0_17] : memref<3x16x16xbf16, #tpu.memory_space<vmem>>, vector<1x16x16xbf16>
    %47 = vector.shape_cast %46 : vector<1x16x16xbf16> to vector<16x16xbf16>
    %48 = arith.truncf %34 : vector<16x256xf32> to vector<16x256xbf16>
    %cst_18 = arith.constant dense<0.000000e+00> : vector<16x256xf32>
    %49 = tpu.matmul %47, %48, %cst_18 {dimension_numbers = #tpu.dot_dimension_numbers<[1], [0], [0], [1], [0, 0, 1, 1], [], []>} : vector<16x16xbf16>, vector<16x256xbf16>, vector<16x256xf32> -> vector<16x256xf32>
    %c0_19 = arith.constant 0 : index
    %c0_20 = arith.constant 0 : index
    %c0_21 = arith.constant 0 : index
    %50 = vector.load %arg4[%c0_19, %c0_20, %c0_21] : memref<3x16x16xbf16, #tpu.memory_space<vmem>>, vector<1x16x16xbf16>
    %51 = vector.shape_cast %50 : vector<1x16x16xbf16> to vector<16x16xbf16>
    %52 = arith.truncf %40 : vector<16x256xf32> to vector<16x256xbf16>
    %cst_22 = arith.constant dense<0.000000e+00> : vector<16x256xf32>
    %53 = tpu.matmul %51, %52, %cst_22 {dimension_numbers = #tpu.dot_dimension_numbers<[1], [0], [0], [1], [0, 0, 1, 1], [], []>} : vector<16x16xbf16>, vector<16x256xbf16>, vector<16x256xf32> -> vector<16x256xf32>
    %54 = arith.addf %49, %53 : vector<16x256xf32>
    %c2 = arith.constant 2 : index
    %c0_23 = arith.constant 0 : index
    %c0_24 = arith.constant 0 : index
    %55 = vector.load %arg4[%c2, %c0_23, %c0_24] : memref<3x16x16xbf16, #tpu.memory_space<vmem>>, vector<1x16x16xbf16>
    %56 = vector.shape_cast %55 : vector<1x16x16xbf16> to vector<16x16xbf16>
    %57 = arith.truncf %45 : vector<16x256xf32> to vector<16x256xbf16>
    %cst_25 = arith.constant dense<0.000000e+00> : vector<16x256xf32>
    %58 = tpu.matmul %56, %57, %cst_25 {dimension_numbers = #tpu.dot_dimension_numbers<[1], [0], [0], [1], [0, 0, 1, 1], [], []>} : vector<16x16xbf16>, vector<16x256xbf16>, vector<16x256xf32> -> vector<16x256xf32>
    %59 = arith.addf %54, %58 : vector<16x256xf32>
    %60 = vector.broadcast %35 : vector<16x1xf32> to vector<16x256xf32>
    %61 = arith.addf %59, %60 : vector<16x256xf32>
    %c0_26 = arith.constant 0 : index
    %c0_27 = arith.constant 0 : index
    %62 = vector.load %arg5[%c0_26, %c0_27] : memref<16x2xf32, #tpu.memory_space<vmem>>, vector<16x2xf32>
    %c0_28 = arith.constant 0 : index
    %c0_29 = arith.constant 0 : index
    %63 = vector.load %arg6[%c0_28, %c0_29] : memref<16x16xf32, #tpu.memory_space<vmem>>, vector<16x16xf32>
    %cst_30 = arith.constant dense<0.000000e+00> : vector<16xf32>
    %64 = vector.multi_reduction <add>, %61, %cst_30 [1] : vector<16x256xf32> to vector<16xf32>
    %65 = vector.shape_cast %64 : vector<16xf32> to vector<16x1xf32>
    %cst_31 = arith.constant dense<0.000000e+00> : vector<16x1xf32>
    %66 = tpu.matmul %63, %65, %cst_31 {dimension_numbers = #tpu.dot_dimension_numbers<[1], [0], [0], [1], [0, 0, 1, 1], [], []>} : vector<16x16xf32>, vector<16x1xf32>, vector<16x1xf32> -> vector<16x1xf32>
    %67 = vector.broadcast %66 : vector<16x1xf32> to vector<16x256xf32>
    %68 = arith.subf %61, %67 : vector<16x256xf32>
    %69 = arith.mulf %68, %68 : vector<16x256xf32>
    %cst_32 = arith.constant dense<0.000000e+00> : vector<16xf32>
    %70 = vector.multi_reduction <add>, %69, %cst_32 [1] : vector<16x256xf32> to vector<16xf32>
    %71 = vector.shape_cast %70 : vector<16xf32> to vector<16x1xf32>
    %cst_33 = arith.constant dense<0.000000e+00> : vector<16x1xf32>
    %72 = tpu.matmul %63, %71, %cst_33 {dimension_numbers = #tpu.dot_dimension_numbers<[1], [0], [0], [1], [0, 0, 1, 1], [], []>} : vector<16x16xf32>, vector<16x1xf32>, vector<16x1xf32> -> vector<16x1xf32>
    %cst_34 = arith.constant 9.99999974E-6 : f32
    %73 = vector.broadcast %cst_34 : f32 to vector<16x1xf32>
    %74 = arith.addf %72, %73 : vector<16x1xf32>
    %75 = math.rsqrt %74 : vector<16x1xf32>
    %76 = vector.extract_strided_slice %62 {offsets = [0, 0], sizes = [16, 1], strides = [1, 1]} : vector<16x2xf32> to vector<16x1xf32>
    %77 = arith.mulf %75, %76 : vector<16x1xf32>
    %78 = vector.broadcast %77 : vector<16x1xf32> to vector<16x256xf32>
    %79 = arith.mulf %68, %78 : vector<16x256xf32>
    %80 = vector.extract_strided_slice %62 {offsets = [0, 1], sizes = [16, 1], strides = [1, 1]} : vector<16x2xf32> to vector<16x1xf32>
    %81 = vector.broadcast %80 : vector<16x1xf32> to vector<16x256xf32>
    %82 = arith.addf %79, %81 : vector<16x256xf32>
    %83 = arith.negf %82 : vector<16x256xf32>
    %84 = math.exp %83 : vector<16x256xf32>
    %cst_35 = arith.constant 1.000000e+00 : f32
    %85 = vector.broadcast %cst_35 : f32 to vector<16x256xf32>
    %86 = arith.addf %85, %84 : vector<16x256xf32>
    %87 = arith.divf %85, %86 : vector<16x256xf32>
    %88 = arith.mulf %82, %87 : vector<16x256xf32>
    %89 = vector.extract_strided_slice %2 {offsets = [0, 1], sizes = [16, 1], strides = [1, 1]} : vector<16x3xf32> to vector<16x1xf32>
    %c1_i32_36 = arith.constant 1 : i32
    %90 = tpu.dynamic_rotate %88 by %c1_i32_36 dim 1 : vector<16x256xf32>, i32 -> vector<16x256xf32>
    %cst_37 = arith.constant 0.000000e+00 : f32
    %91 = vector.shape_cast %5 : vector<1x256xi1> to vector<1x256xi1>
    %92 = vector.broadcast %91 : vector<1x256xi1> to vector<16x256xi1>
    %93 = vector.broadcast %cst_37 : f32 to vector<16x256xf32>
    %94 = arith.select %92, %90, %93 : vector<16x256xi1>, vector<16x256xf32>
    %c255_i32_38 = arith.constant 255 : i32
    %95 = tpu.dynamic_rotate %88 by %c255_i32_38 dim 1 : vector<16x256xf32>, i32 -> vector<16x256xf32>
    %cst_39 = arith.constant 0.000000e+00 : f32
    %96 = vector.shape_cast %7 : vector<1x256xi1> to vector<1x256xi1>
    %97 = vector.broadcast %96 : vector<1x256xi1> to vector<16x256xi1>
    %98 = vector.broadcast %cst_39 : f32 to vector<16x256xf32>
    %99 = arith.select %97, %95, %98 : vector<16x256xi1>, vector<16x256xf32>
    %c1_40 = arith.constant 1 : index
    %c0_41 = arith.constant 0 : index
    %c0_42 = arith.constant 0 : index
    %100 = vector.load %arg7[%c1_40, %c0_41, %c0_42] : memref<3x16x16xbf16, #tpu.memory_space<vmem>>, vector<1x16x16xbf16>
    %101 = vector.shape_cast %100 : vector<1x16x16xbf16> to vector<16x16xbf16>
    %102 = arith.truncf %88 : vector<16x256xf32> to vector<16x256xbf16>
    %cst_43 = arith.constant dense<0.000000e+00> : vector<16x256xf32>
    %103 = tpu.matmul %101, %102, %cst_43 {dimension_numbers = #tpu.dot_dimension_numbers<[1], [0], [0], [1], [0, 0, 1, 1], [], []>} : vector<16x16xbf16>, vector<16x256xbf16>, vector<16x256xf32> -> vector<16x256xf32>
    %c0_44 = arith.constant 0 : index
    %c0_45 = arith.constant 0 : index
    %c0_46 = arith.constant 0 : index
    %104 = vector.load %arg7[%c0_44, %c0_45, %c0_46] : memref<3x16x16xbf16, #tpu.memory_space<vmem>>, vector<1x16x16xbf16>
    %105 = vector.shape_cast %104 : vector<1x16x16xbf16> to vector<16x16xbf16>
    %106 = arith.truncf %94 : vector<16x256xf32> to vector<16x256xbf16>
    %cst_47 = arith.constant dense<0.000000e+00> : vector<16x256xf32>
    %107 = tpu.matmul %105, %106, %cst_47 {dimension_numbers = #tpu.dot_dimension_numbers<[1], [0], [0], [1], [0, 0, 1, 1], [], []>} : vector<16x16xbf16>, vector<16x256xbf16>, vector<16x256xf32> -> vector<16x256xf32>
    %108 = arith.addf %103, %107 : vector<16x256xf32>
    %c2_48 = arith.constant 2 : index
    %c0_49 = arith.constant 0 : index
    %c0_50 = arith.constant 0 : index
    %109 = vector.load %arg7[%c2_48, %c0_49, %c0_50] : memref<3x16x16xbf16, #tpu.memory_space<vmem>>, vector<1x16x16xbf16>
    %110 = vector.shape_cast %109 : vector<1x16x16xbf16> to vector<16x16xbf16>
    %111 = arith.truncf %99 : vector<16x256xf32> to vector<16x256xbf16>
    %cst_51 = arith.constant dense<0.000000e+00> : vector<16x256xf32>
    %112 = tpu.matmul %110, %111, %cst_51 {dimension_numbers = #tpu.dot_dimension_numbers<[1], [0], [0], [1], [0, 0, 1, 1], [], []>} : vector<16x16xbf16>, vector<16x256xbf16>, vector<16x256xf32> -> vector<16x256xf32>
    %113 = arith.addf %108, %112 : vector<16x256xf32>
    %114 = vector.broadcast %89 : vector<16x1xf32> to vector<16x256xf32>
    %115 = arith.addf %113, %114 : vector<16x256xf32>
    %116 = arith.addf %115, %1 : vector<16x256xf32>
    %c0_52 = arith.constant 0 : index
    %c0_53 = arith.constant 0 : index
    %c0_54 = arith.constant 0 : index
    %117 = vector.load %arg9[%c0_52, %c0_53, %c0_54] : memref<1x16x256xf32, #tpu.memory_space<vmem>>, vector<1x16x256xf32>
    %118 = vector.shape_cast %117 : vector<1x16x256xf32> to vector<16x256xf32>
    %119 = vector.shape_cast %116 : vector<16x256xf32> to vector<1x16x256xf32>
    tpu.vector_store %arg9[%c0_52, %c0_53, %c0_54], %119 {strides = array<i32>} : memref<1x16x256xf32, #tpu.memory_space<vmem>>, vector<1x16x256xf32>,
    return
  }
  func.func @transform_0(%arg0: i32) -> (i32, i32, i32) {
    %c0_i32 = arith.constant 0 : i32
    %c0_i32_0 = arith.constant 0 : i32
    %c0_i32_1 = arith.constant 0 : i32
    return %arg0, %c0_i32, %c0_i32_0 : i32, i32, i32
  }
  func.func @transform_1(%arg0: i32) -> (i32, i32) {
    %c0_i32 = arith.constant 0 : i32
    %c0_i32_0 = arith.constant 0 : i32
    %c0_i32_1 = arith.constant 0 : i32
    return %c0_i32, %c0_i32_0 : i32, i32
  }
  func.func @transform_2(%arg0: i32) -> (i32, i32) {
    %c0_i32 = arith.constant 0 : i32
    %c0_i32_0 = arith.constant 0 : i32
    %c0_i32_1 = arith.constant 0 : i32
    return %c0_i32, %c0_i32_0 : i32, i32
  }
  func.func @transform_3(%arg0: i32) -> (i32, i32, i32) {
    %c0_i32 = arith.constant 0 : i32
    %c0_i32_0 = arith.constant 0 : i32
    %c0_i32_1 = arith.constant 0 : i32
    %c0_i32_2 = arith.constant 0 : i32
    return %c0_i32, %c0_i32_0, %c0_i32_1 : i32, i32, i32
  }
  func.func @transform_4(%arg0: i32) -> (i32, i32) {
    %c0_i32 = arith.constant 0 : i32
    %c0_i32_0 = arith.constant 0 : i32
    %c0_i32_1 = arith.constant 0 : i32
    return %c0_i32, %c0_i32_0 : i32, i32
  }
  func.func @transform_5(%arg0: i32) -> (i32, i32) {
    %c0_i32 = arith.constant 0 : i32
    %c0_i32_0 = arith.constant 0 : i32
    %c0_i32_1 = arith.constant 0 : i32
    return %c0_i32, %c0_i32_0 : i32, i32
  }
  func.func @transform_6(%arg0: i32) -> (i32, i32, i32) {
    %c0_i32 = arith.constant 0 : i32
    %c0_i32_0 = arith.constant 0 : i32
    %c0_i32_1 = arith.constant 0 : i32
    %c0_i32_2 = arith.constant 0 : i32
    return %c0_i32, %c0_i32_0, %c0_i32_1 : i32, i32, i32
  }
  func.func @transform_7(%arg0: i32) -> (i32, i32) {
    %c0_i32 = arith.constant 0 : i32
    %c0_i32_0 = arith.constant 0 : i32
    %c0_i32_1 = arith.constant 0 : i32
    return %c0_i32, %c0_i32_0 : i32, i32
  }
  func.func @transform_8(%arg0: i32) -> (i32, i32, i32) {
    %c0_i32 = arith.constant 0 : i32
    %c0_i32_0 = arith.constant 0 : i32
    %c0_i32_1 = arith.constant 0 : i32
    return %arg0, %c0_i32, %c0_i32_0 : i32, i32, i32
  }
}

</mosaic_0001>

<llo_original>
// kernel: tpu_custom_call.1
$region0: #{tpu_custom_call.1}
  #allocation0 [shape = 'u32[]', space=smem, size = 0x4, offset = 0x4, fixed_abs, tag = 'smem constant byte address 0x4 - core index']
  #allocation1 [shape = 'u32[144,128]{1,0:T(1,128)}', space=vmem, size = 0x12000, scoped, tag = 'internal scratch']
  %s0 = inlined_call_operand.hbm [shape: f32[2,16,256], index: 0, kind: input, shape index: {}]
  %s1 = inlined_call_operand.hbm [shape: f32[16,2], index: 1, kind: input, shape index: {}]
  %s2 = inlined_call_operand.hbm [shape: f32[16,16], index: 2, kind: input, shape index: {}]
  %s3 = inlined_call_operand.hbm [shape: bf16[3,16,16], index: 3, kind: input, shape index: {}]
  %s4 = inlined_call_operand.hbm [shape: f32[16,2], index: 4, kind: input, shape index: {}]
  %s5 = inlined_call_operand.hbm [shape: f32[16,16], index: 5, kind: input, shape index: {}]
  %s6 = inlined_call_operand.hbm [shape: bf16[3,16,16], index: 6, kind: input, shape index: {}]
  %s7 = inlined_call_operand.hbm [shape: f32[16,3], index: 7, kind: input, shape index: {}]
  %s8 = inlined_call_operand.hbm [shape: f32[2,16,256], index: 8, kind: output, shape index: {}]
  %s9 = sld [smem:[#allocation0]]
  $region97: #{tpu_custom_call.1} parent=0
    _
  %s11 = ssub.s32 1, %s9
  %s12 = scalar_select 0, %s11, %s9
  $region1: #{tpu_custom_call.1} parent=0
    #allocation2 [shape = 'u8[32768]{0}', space=vmem, size = 0x8000, scoped, tag = 'input window, operand 0']
    #allocation3 [shape = 's32[2]{0}', space=sflag, size = 0x8, scoped, tag = 'scoped memory for tpu_custom_call.1']
    #allocation4 [shape = 's32[2]{0}', space=sflag, size = 0x8, scoped, tag = 'scoped memory for tpu_custom_call.1']
    #allocation5 [shape = 'u8[8192]{0}', space=vmem, size = 0x2000, scoped, tag = 'input window, operand 1, single buffered']
    #allocation6 [shape = 's32[1]{0}', space=sflag, size = 0x4, scoped, tag = 'scoped memory for tpu_custom_call.1']
    #allocation7 [shape = 'u8[8192]{0}', space=vmem, size = 0x2000, scoped, tag = 'input window, operand 2, single buffered']
    #allocation8 [shape = 'u8[12288]{0}', space=vmem, size = 0x3000, scoped, tag = 'input window, operand 3, single buffered']
    #allocation9 [shape = 's32[1]{0}', space=sflag, size = 0x4, scoped, tag = 'scoped memory for tpu_custom_call.1']
    #allocation10 [shape = 'u8[8192]{0}', space=vmem, size = 0x2000, scoped, tag = 'input window, operand 4, single buffered']
    #allocation11 [shape = 'u8[8192]{0}', space=vmem, size = 0x2000, scoped, tag = 'input window, operand 5, single buffered']
    #allocation12 [shape = 's32[1]{0}', space=sflag, size = 0x4, scoped, tag = 'scoped memory for tpu_custom_call.1']
    #allocation13 [shape = 'u8[12288]{0}', space=vmem, size = 0x3000, scoped, tag = 'input window, operand 6, single buffered']
    #allocation14 [shape = 'u8[8192]{0}', space=vmem, size = 0x2000, scoped, tag = 'input window, operand 7, single buffered']
    #allocation15 [shape = 's32[1]{0}', space=sflag, size = 0x4, scoped, tag = 'scoped memory for tpu_custom_call.1']
    #allocation16 [shape = 'u8[32768]{0}', space=vmem, size = 0x8000, scoped, tag = 'output window, operand 0']
    %13 = vsyncpa [#allocation3], 0
    %s14 = scalar_lea.sflag [#allocation3], 1
    %15 = vsyncpa %s14, 0
    %16 = vsyncpa [#allocation6], 0
    %17 = vsyncpa [#allocation9], 0
    %18 = vsyncpa [#allocation12], 0
    %19 = vsyncpa [#allocation15], 0
    %20 = vsyncpa [#allocation4], 0
    %s21 = scalar_lea.sflag [#allocation4], 1
    %22 = vsyncpa %s21, 0
    loop: start=0, step=1, limit=4
    $region2: #{tpu_custom_call.1} parent=1 // loop_pre_header
      _
    $region3: #{tpu_custom_call.1} parent=1 // loop_header
      %s24 = sphi 0, %s28
      %p25 = scmp.ge.s32.totalorder %s24, 4
      %s34 = sphi 0, %s36
      %s37 = sphi 0, %s34
      %s38 = sphi 0, %s37
      %s54 = sphi 0, %s38
      %s58 = sphi 0, %s58
      %s60 = sphi 0, %s58
      %s61 = sphi 0, %s60
      %s75 = sphi 0, %s61
      %s79 = sphi 0, %s79
      %s81 = sphi 0, %s79
      %s82 = sphi 0, %s81
      %s96 = sphi 0, %s82
      %s100 = sphi 0, %s100
      %s102 = sphi 0, %s100
      %s103 = sphi 0, %s102
      %s117 = sphi 0, %s103
      %s121 = sphi 0, %s121
      %s123 = sphi 0, %s121
      %s124 = sphi 0, %s123
      %s138 = sphi 0, %s124
      %s142 = sphi 0, %s142
      %s144 = sphi 0, %s142
      %s145 = sphi 0, %s144
      %s159 = sphi 0, %s145
      %s163 = sphi 0, %s163
      %s165 = sphi 0, %s163
      %s166 = sphi 0, %s165
      %s180 = sphi 0, %s166
      %s184 = sphi 0, %s184
      %s186 = sphi 0, %s184
      %s187 = sphi 0, %s186
      %s201 = sphi 0, %s187
      %s207 = sphi 0, %s209
      %s210 = sphi 0, %s207
      %s211 = sphi 0, %s210
      %s227 = sphi 0, %s211
    $region4: #{tpu_custom_call.1} parent=1 // loop_header_branch
      %27 = sbr.rel (%p25) target = $region8
    $region5: #{tpu_custom_call.1} parent=1 // loop_body
      %s29 = ssub.s32 %s24, 1
      %s30 = ssub.s32 %s24, 2
      %s31 = sadd.s32 %s24, 1
      %s32 = ssub.s32 %s24, %s31
      %p33 = scmp.eq.s32.totalorder %s32, 0
      %s35 = sadd.s32 %s34, 1
      %s36 = scalar_select %p33, %s34, %s35
      %p39 = pneg %p33
      %p40 = scmp.eq.s32.totalorder %s24, 1
      %p41 = por %p39, %p40
      %p42 = scmp.ne.s32.totalorder %s34, %s37
      %p43 = scmp.eq.s32.totalorder %s24, 0
      %p44 = por %p42, %p43
      %p45 = scmp.ne.s32.totalorder %s34, %s37
      %p46 = scmp.eq.s32.totalorder %s29, 1
      %p47 = por %p45, %p46
      %p48 = scmp.ne.s32.totalorder %s37, %s38
      %p49 = scmp.eq.s32.totalorder %s29, 0
      %p50 = por %p48, %p49
      %p51 = scmp.ne.s32.totalorder %s37, %s38
      %p52 = scmp.eq.s32.totalorder %s30, 1
      %p53 = por %p51, %p52
      %p55 = scmp.ne.s32.totalorder %s38, %s54
      %p56 = scmp.eq.s32.totalorder %s30, 0
      %p57 = por %p55, %p56
      %s59 = sadd.s32 %s58, 1
      %p62 = scmp.eq.s32.totalorder %s24, 1
      %p63 = scmp.ne.s32.totalorder %s58, %s60
      %p64 = scmp.eq.s32.totalorder %s24, 0
      %p65 = por %p63, %p64
      %p66 = scmp.ne.s32.totalorder %s58, %s60
      %p67 = scmp.eq.s32.totalorder %s29, 1
      %p68 = por %p66, %p67
      %p69 = scmp.ne.s32.totalorder %s60, %s61
      %p70 = scmp.eq.s32.totalorder %s29, 0
      %p71 = por %p69, %p70
      %p72 = scmp.ne.s32.totalorder %s60, %s61
      %p73 = scmp.eq.s32.totalorder %s30, 1
      %p74 = por %p72, %p73
      %p76 = scmp.ne.s32.totalorder %s61, %s75
      %p77 = scmp.eq.s32.totalorder %s30, 0
      %p78 = por %p76, %p77
      %s80 = sadd.s32 %s79, 1
      %p83 = scmp.eq.s32.totalorder %s24, 1
      %p84 = scmp.ne.s32.totalorder %s79, %s81
      %p85 = scmp.eq.s32.totalorder %s24, 0
      %p86 = por %p84, %p85
      %p87 = scmp.ne.s32.totalorder %s79, %s81
      %p88 = scmp.eq.s32.totalorder %s29, 1
      %p89 = por %p87, %p88
      %p90 = scmp.ne.s32.totalorder %s81, %s82
      %p91 = scmp.eq.s32.totalorder %s29, 0
      %p92 = por %p90, %p91
      %p93 = scmp.ne.s32.totalorder %s81, %s82
      %p94 = scmp.eq.s32.totalorder %s30, 1
      %p95 = por %p93, %p94
      %p97 = scmp.ne.s32.totalorder %s82, %s96
      %p98 = scmp.eq.s32.totalorder %s30, 0
      %p99 = por %p97, %p98
      %s101 = sadd.s32 %s100, 1
      %p104 = scmp.eq.s32.totalorder %s24, 1
      %p105 = scmp.ne.s32.totalorder %s100, %s102
      %p106 = scmp.eq.s32.totalorder %s24, 0
      %p107 = por %p105, %p106
      %p108 = scmp.ne.s32.totalorder %s100, %s102
      %p109 = scmp.eq.s32.totalorder %s29, 1
      %p110 = por %p108, %p109
      %p111 = scmp.ne.s32.totalorder %s102, %s103
      %p112 = scmp.eq.s32.totalorder %s29, 0
      %p113 = por %p111, %p112
      %p114 = scmp.ne.s32.totalorder %s102, %s103
      %p115 = scmp.eq.s32.totalorder %s30, 1
      %p116 = por %p114, %p115
      %p118 = scmp.ne.s32.totalorder %s103, %s117
      %p119 = scmp.eq.s32.totalorder %s30, 0
      %p120 = por %p118, %p119
      %s122 = sadd.s32 %s121, 1
      %p125 = scmp.eq.s32.totalorder %s24, 1
      %p126 = scmp.ne.s32.totalorder %s121, %s123
      %p127 = scmp.eq.s32.totalorder %s24, 0
      %p128 = por %p126, %p127
      %p129 = scmp.ne.s32.totalorder %s121, %s123
      %p130 = scmp.eq.s32.totalorder %s29, 1
      %p131 = por %p129, %p130
      %p132 = scmp.ne.s32.totalorder %s123, %s124
      %p133 = scmp.eq.s32.totalorder %s29, 0
      %p134 = por %p132, %p133
      %p135 = scmp.ne.s32.totalorder %s123, %s124
      %p136 = scmp.eq.s32.totalorder %s30, 1
      %p137 = por %p135, %p136
      %p139 = scmp.ne.s32.totalorder %s124, %s138
      %p140 = scmp.eq.s32.totalorder %s30, 0
      %p141 = por %p139, %p140
      %s143 = sadd.s32 %s142, 1
      %p146 = scmp.eq.s32.totalorder %s24, 1
      %p147 = scmp.ne.s32.totalorder %s142, %s144
      %p148 = scmp.eq.s32.totalorder %s24, 0
      %p149 = por %p147, %p148
      %p150 = scmp.ne.s32.totalorder %s142, %s144
      %p151 = scmp.eq.s32.totalorder %s29, 1
      %p152 = por %p150, %p151
      %p153 = scmp.ne.s32.totalorder %s144, %s145
      %p154 = scmp.eq.s32.totalorder %s29, 0
      %p155 = por %p153, %p154
      %p156 = scmp.ne.s32.totalorder %s144, %s145
      %p157 = scmp.eq.s32.totalorder %s30, 1
      %p158 = por %p156, %p157
      %p160 = scmp.ne.s32.totalorder %s145, %s159
      %p161 = scmp.eq.s32.totalorder %s30, 0
      %p162 = por %p160, %p161
      %s164 = sadd.s32 %s163, 1
      %p167 = scmp.eq.s32.totalorder %s24, 1
      %p168 = scmp.ne.s32.totalorder %s163, %s165
      %p169 = scmp.eq.s32.totalorder %s24, 0
      %p170 = por %p168, %p169
      %p171 = scmp.ne.s32.totalorder %s163, %s165
      %p172 = scmp.eq.s32.totalorder %s29, 1
      %p173 = por %p171, %p172
      %p174 = scmp.ne.s32.totalorder %s165, %s166
      %p175 = scmp.eq.s32.totalorder %s29, 0
      %p176 = por %p174, %p175
      %p177 = scmp.ne.s32.totalorder %s165, %s166
      %p178 = scmp.eq.s32.totalorder %s30, 1
      %p179 = por %p177, %p178
      %p181 = scmp.ne.s32.totalorder %s166, %s180
      %p182 = scmp.eq.s32.totalorder %s30, 0
      %p183 = por %p181, %p182
      %s185 = sadd.s32 %s184, 1
      %p188 = scmp.eq.s32.totalorder %s24, 1
      %p189 = scmp.ne.s32.totalorder %s184, %s186
      %p190 = scmp.eq.s32.totalorder %s24, 0
      %p191 = por %p189, %p190
      %p192 = scmp.ne.s32.totalorder %s184, %s186
      %p193 = scmp.eq.s32.totalorder %s29, 1
      %p194 = por %p192, %p193
      %p195 = scmp.ne.s32.totalorder %s186, %s187
      %p196 = scmp.eq.s32.totalorder %s29, 0
      %p197 = por %p195, %p196
      %p198 = scmp.ne.s32.totalorder %s186, %s187
      %p199 = scmp.eq.s32.totalorder %s30, 1
      %p200 = por %p198, %p199
      %p202 = scmp.ne.s32.totalorder %s187, %s201
      %p203 = scmp.eq.s32.totalorder %s30, 0
      %p204 = por %p202, %p203
      %s205 = ssub.s32 %s24, %s31
      %p206 = scmp.eq.s32.totalorder %s205, 0
      %s208 = sadd.s32 %s207, 1
      %s209 = scalar_select %p206, %s207, %s208
      %p212 = pneg %p206
      %p213 = scmp.eq.s32.totalorder %s24, 1
      %p214 = por %p212, %p213
      %p215 = scmp.ne.s32.totalorder %s207, %s210
      %p216 = scmp.eq.s32.totalorder %s24, 0
      %p217 = por %p215, %p216
      %p218 = scmp.ne.s32.totalorder %s207, %s210
      %p219 = scmp.eq.s32.totalorder %s29, 1
      %p220 = por %p218, %p219
      %p221 = scmp.ne.s32.totalorder %s210, %s211
      %p222 = scmp.eq.s32.totalorder %s29, 0
      %p223 = por %p221, %p222
      %p224 = scmp.ne.s32.totalorder %s210, %s211
      %p225 = scmp.eq.s32.totalorder %s30, 1
      %p226 = por %p224, %p225
      %p228 = scmp.ne.s32.totalorder %s211, %s227
      %p229 = scmp.eq.s32.totalorder %s30, 0
      %p230 = por %p228, %p229
      %p231 = scmp.le.s32.totalorder 1, %s24
      %p232 = scmp.lt.s32.totalorder %s24, 3
      %p233 = pnand %p231, %p232
      %p234 = pneg %p233
      // Predicated region
      $region9: #{tpu_custom_call.1} parent=5 // pred_check
        _
      $region10: #{tpu_custom_call.1} parent=5 // pred_check_branch
        %236 = sbr.rel (%p233) target = $region12
      $region11: #{tpu_custom_call.1} parent=5 // pred_region
        %s237 = ssub.s32 %s24, 1
        // Predicated region
        $region13: #{tpu_custom_call.1} parent=11 // pred_check
          %p238 = pneg %p71
        $region14: #{tpu_custom_call.1} parent=11 // pred_check_branch
          %240 = sbr.rel (%p238) target = $region16
        $region15: #{tpu_custom_call.1} parent=11 // pred_region
          %s242 = ssub.s32 256, 256
          %243 = vsyncadd [#allocation6], %s242
          %s244 = sshll.u32 [#allocation5], 4
          %s245 = int_to_ptr.vmem [resolvable:$true] %s244
          %250 = dma.hbm_to_vmem [thread:$0]  %s1, 256, %s245, [#allocation6], 128, 128, 8
        $region16: #{tpu_custom_call.1} parent=11 // pred_fallthru
          _
        // Predicated region
        $region17: #{tpu_custom_call.1} parent=11 // pred_check
          %p251 = pneg %p92
        $region18: #{tpu_custom_call.1} parent=11 // pred_check_branch
          %253 = sbr.rel (%p251) target = $region20
        $region19: #{tpu_custom_call.1} parent=11 // pred_region
          %s255 = ssub.s32 256, 256
          %256 = vsyncadd [#allocation6], %s255
          %s257 = sshll.u32 [#allocation7], 4
          %s258 = int_to_ptr.vmem [resolvable:$true] %s257
          %263 = dma.hbm_to_vmem [thread:$0]  %s2, 256, %s258, [#allocation6], 128, 128, 8
        $region20: #{tpu_custom_call.1} parent=11 // pred_fallthru
          _
        // Predicated region
        $region21: #{tpu_custom_call.1} parent=11 // pred_check
          %p264 = pneg %p113
        $region22: #{tpu_custom_call.1} parent=11 // pred_check_branch
          %266 = sbr.rel (%p264) target = $region24
        $region23: #{tpu_custom_call.1} parent=11 // pred_region
          %s268 = ssub.s32 384, 384
          %269 = vsyncadd [#allocation9], %s268
          %s270 = sshll.u32 [#allocation8], 4
          %s271 = int_to_ptr.vmem [resolvable:$true] %s270
          %276 = dma.hbm_to_vmem [thread:$0]  %s3, 384, %s271, [#allocation9], 64, 64, 4
        $region24: #{tpu_custom_call.1} parent=11 // pred_fallthru
          _
        // Predicated region
        $region25: #{tpu_custom_call.1} parent=11 // pred_check
          %p277 = pneg %p134
        $region26: #{tpu_custom_call.1} parent=11 // pred_check_branch
          %279 = sbr.rel (%p277) target = $region28
        $region27: #{tpu_custom_call.1} parent=11 // pred_region
          %s281 = ssub.s32 256, 256
          %282 = vsyncadd [#allocation9], %s281
          %s283 = sshll.u32 [#allocation10], 4
          %s284 = int_to_ptr.vmem [resolvable:$true] %s283
          %289 = dma.hbm_to_vmem [thread:$0]  %s4, 256, %s284, [#allocation9], 128, 128, 8
        $region28: #{tpu_custom_call.1} parent=11 // pred_fallthru
          _
        // Predicated region
        $region29: #{tpu_custom_call.1} parent=11 // pred_check
          %p290 = pneg %p155
        $region30: #{tpu_custom_call.1} parent=11 // pred_check_branch
          %292 = sbr.rel (%p290) target = $region32
        $region31: #{tpu_custom_call.1} parent=11 // pred_region
          %s294 = ssub.s32 256, 256
          %295 = vsyncadd [#allocation12], %s294
          %s296 = sshll.u32 [#allocation11], 4
          %s297 = int_to_ptr.vmem [resolvable:$true] %s296
          %302 = dma.hbm_to_vmem [thread:$0]  %s5, 256, %s297, [#allocation12], 128, 128, 8
        $region32: #{tpu_custom_call.1} parent=11 // pred_fallthru
          _
        // Predicated region
        $region33: #{tpu_custom_call.1} parent=11 // pred_check
          %p303 = pneg %p176
        $region34: #{tpu_custom_call.1} parent=11 // pred_check_branch
          %305 = sbr.rel (%p303) target = $region36
        $region35: #{tpu_custom_call.1} parent=11 // pred_region
          %s307 = ssub.s32 384, 384
          %308 = vsyncadd [#allocation12], %s307
          %s309 = sshll.u32 [#allocation13], 4
          %s310 = int_to_ptr.vmem [resolvable:$true] %s309
          %315 = dma.hbm_to_vmem [thread:$0]  %s6, 384, %s310, [#allocation12], 64, 64, 4
        $region36: #{tpu_custom_call.1} parent=11 // pred_fallthru
          _
        // Predicated region
        $region37: #{tpu_custom_call.1} parent=11 // pred_check
          %p316 = pneg %p197
        $region38: #{tpu_custom_call.1} parent=11 // pred_check_branch
          %318 = sbr.rel (%p316) target = $region40
        $region39: #{tpu_custom_call.1} parent=11 // pred_region
          %s320 = ssub.s32 256, 256
          %321 = vsyncadd [#allocation15], %s320
          %s322 = sshll.u32 [#allocation14], 4
          %s323 = int_to_ptr.vmem [resolvable:$true] %s322
          %328 = dma.hbm_to_vmem [thread:$0]  %s7, 256, %s323, [#allocation15], 128, 128, 8
        $region40: #{tpu_custom_call.1} parent=11 // pred_fallthru
          _
      $region12: #{tpu_custom_call.1} parent=5 // pred_fallthru
        _
      %p329 = scmp.lt.s32.totalorder %s24, 2
      // Predicated region
      $region41: #{tpu_custom_call.1} parent=5 // pred_check
        %p330 = pneg %p329
      $region42: #{tpu_custom_call.1} parent=5 // pred_check_branch
        %332 = sbr.rel (%p330) target = $region44
      $region43: #{tpu_custom_call.1} parent=5 // pred_region
        // Predicated region
        $region45: #{tpu_custom_call.1} parent=43 // pred_check
          %p333 = pneg %p44
        $region46: #{tpu_custom_call.1} parent=43 // pred_check_branch
          %335 = sbr.rel (%p333) target = $region48
        $region47: #{tpu_custom_call.1} parent=43 // pred_region
          %s336 = sand.u32 %s34, 1
          %s337 = scalar_lea.sflag [#allocation3], %s336
          %s338 = sand.u32 %s34, 1
          %s339 = smul.addr %s338, 32
          %s340 = scalar_lea.vmem [#allocation2], %s339
          %s342 = ssub.s32 512, 512
          %343 = vsyncadd %s337, %s342
          %s344 = smul.addr %s24, 4
          %s345 = smul.addr %s344, 128
          %s346 = scalar_lea.hbm %s0, %s345
          %s347 = sshll.u32 %s340, 4
          %s348 = int_to_ptr.vmem [resolvable:$true] %s347
          %353 = dma.hbm_to_vmem [thread:$0]  %s346, 512, %s348, %s337, 256, 256, 16
        $region48: #{tpu_custom_call.1} parent=43 // pred_fallthru
          _
      $region44: #{tpu_custom_call.1} parent=5 // pred_fallthru
        _
      %p354 = scmp.le.s32.totalorder 1, %s24
      %p355 = scmp.lt.s32.totalorder %s24, 3
      %p356 = pnand %p354, %p355
      %p357 = pneg %p356
      // Predicated region
      $region49: #{tpu_custom_call.1} parent=5 // pred_check
        _
      $region50: #{tpu_custom_call.1} parent=5 // pred_check_branch
        %359 = sbr.rel (%p356) target = $region52
      $region51: #{tpu_custom_call.1} parent=5 // pred_region
        %s360 = ssub.s32 %s24, 1
        %s361 = sand.u32 %s37, 1
        %s362 = scalar_lea.sflag [#allocation3], %s361
        %s363 = sand.u32 %s37, 1
        %s364 = smul.addr %s363, 32
        %s365 = scalar_lea.vmem [#allocation2], %s364
        // Predicated region
        $region53: #{tpu_custom_call.1} parent=51 // pred_check
          %p366 = pneg %p50
        $region54: #{tpu_custom_call.1} parent=51 // pred_check_branch
          %368 = sbr.rel (%p366) target = $region56
        $region55: #{tpu_custom_call.1} parent=51 // pred_region
          %369 = dma.done %s362, 512
        $region56: #{tpu_custom_call.1} parent=51 // pred_fallthru
          _
        // Predicated region
        $region57: #{tpu_custom_call.1} parent=51 // pred_check
          %p370 = pneg %p71
        $region58: #{tpu_custom_call.1} parent=51 // pred_check_branch
          %372 = sbr.rel (%p370) target = $region60
        $region59: #{tpu_custom_call.1} parent=51 // pred_region
          %373 = dma.done [#allocation6], 256
        $region60: #{tpu_custom_call.1} parent=51 // pred_fallthru
          _
        // Predicated region
        $region61: #{tpu_custom_call.1} parent=51 // pred_check
          %p374 = pneg %p92
        $region62: #{tpu_custom_call.1} parent=51 // pred_check_branch
          %376 = sbr.rel (%p374) target = $region64
        $region63: #{tpu_custom_call.1} parent=51 // pred_region
          %377 = dma.done [#allocation6], 256
        $region64: #{tpu_custom_call.1} parent=51 // pred_fallthru
          _
        // Predicated region
        $region65: #{tpu_custom_call.1} parent=51 // pred_check
          %p378 = pneg %p113
        $region66: #{tpu_custom_call.1} parent=51 // pred_check_branch
          %380 = sbr.rel (%p378) target = $region68
        $region67: #{tpu_custom_call.1} parent=51 // pred_region
          %381 = dma.done [#allocation9], 384
        $region68: #{tpu_custom_call.1} parent=51 // pred_fallthru
          _
        // Predicated region
        $region69: #{tpu_custom_call.1} parent=51 // pred_check
          %p382 = pneg %p134
        $region70: #{tpu_custom_call.1} parent=51 // pred_check_branch
          %384 = sbr.rel (%p382) target = $region72
        $region71: #{tpu_custom_call.1} parent=51 // pred_region
          %385 = dma.done [#allocation9], 256
        $region72: #{tpu_custom_call.1} parent=51 // pred_fallthru
          _
        // Predicated region
        $region73: #{tpu_custom_call.1} parent=51 // pred_check
          %p386 = pneg %p155
        $region74: #{tpu_custom_call.1} parent=51 // pred_check_branch
          %388 = sbr.rel (%p386) target = $region76
        $region75: #{tpu_custom_call.1} parent=51 // pred_region
          %389 = dma.done [#allocation12], 256
        $region76: #{tpu_custom_call.1} parent=51 // pred_fallthru
          _
        // Predicated region
        $region77: #{tpu_custom_call.1} parent=51 // pred_check
          %p390 = pneg %p176
        $region78: #{tpu_custom_call.1} parent=51 // pred_check_branch
          %392 = sbr.rel (%p390) target = $region80
        $region79: #{tpu_custom_call.1} parent=51 // pred_region
          %393 = dma.done [#allocation12], 384
        $region80: #{tpu_custom_call.1} parent=51 // pred_fallthru
          _
        // Predicated region
        $region81: #{tpu_custom_call.1} parent=51 // pred_check
          %p394 = pneg %p197
        $region82: #{tpu_custom_call.1} parent=51 // pred_check_branch
          %396 = sbr.rel (%p394) target = $region84
        $region83: #{tpu_custom_call.1} parent=51 // pred_region
          %397 = dma.done [#allocation15], 256
        $region84: #{tpu_custom_call.1} parent=51 // pred_fallthru
          _
        %s398 = sand.u32 %s37, 1
        %s399 = scalar_lea.sflag [#allocation3], %s398
        %s400 = sand.u32 %s37, 1
        %s401 = smul.addr %s400, 32
        %s402 = scalar_lea.vmem [#allocation2], %s401
        %p403 = pneg %p50
        %p404 = pneg %p47
        %p405 = pneg %p71
        %p406 = pneg %p68
        %p407 = pneg %p92
        %p408 = pneg %p89
        %p409 = pneg %p113
        %p410 = pneg %p110
        %p411 = pneg %p134
        %p412 = pneg %p131
        %p413 = pneg %p155
        %p414 = pneg %p152
        %p415 = pneg %p176
        %p416 = pneg %p173
        %p417 = pneg %p197
        %p418 = pneg %p194
        %p419 = pneg %p223
        %p420 = pneg %p220
        %s421 = sand.u32 %s210, 1
        %s422 = scalar_lea.sflag [#allocation4], %s421
        %s423 = sand.u32 %s210, 1
        %s424 = smul.addr %s423, 32
        %s425 = scalar_lea.vmem [#allocation16], %s424
        %v427 = vld [vmem:[%s365] sm:$0xff]
        %v428 = vld [vmem:[%s365 + $0x8] sm:$0xff]
        %v429 = vld [vmem:[%s365 + $0x10] sm:$0xff]
        %v430 = vld [vmem:[%s365 + $0x18] sm:$0xff]
        %v431 = vld [vmem:[#allocation14] sm:$0xff]
        %v432 = vld [vmem:[#allocation14 + $0x8] sm:$0xff]
        %v433 = vlaneseq
        %v434 = vand.u32 %v433, 127
        %v435 = vadd.s32 %v434, 128
        %vm436 = vcmp.ne.s32.totalorder %v434, 0
        %vm437 = vcmp.ne.s32.totalorder %v435, 0
        %vm438 = vcmp.ne.s32.totalorder %v434, 255
        %vm439 = vcmp.ne.s32.totalorder %v435, 255
        %v440 = vld [vmem:[#allocation5] sm:$0xff]
        %v441 = vld [vmem:[#allocation5 + $0x8] sm:$0xff]
        %v442 = vld [vmem:[#allocation7] sm:$0xff]
        %v443 = vld [vmem:[#allocation7 + $0x8] sm:$0xff]
        %v444 = vadd.f32 %v427, %v428
        %445 = vadd.xlane.f32.xlu0 %v444
        %v446 = vpop.xlane.xlu0 %445
        %v447 = vadd.f32 %v429, %v430
        %448 = vadd.xlane.f32.xlu0 %v447
        %v449 = vpop.xlane.xlu0 %448
        %vm450 = vcmask 130048
        %v452 = vsel %vm450, %v442, 0
        %v455 = vsel %vm450, %v443, 0
        %457 = vmatprep.subr.mxu0 0.0
        %458 = vmatpush1.msra.mxu0 %v446
        %459 = vmatprep.subr.mxu0 0.0
        %460 = vmatpush1.msra.mxu0 %v449
        %461 = vmatprep.subr.mxu0 0.0
        %462 = vmatpush1.msra.mxu0 0.0
        %463 = vmatprep.subr.mxu0 0.0
        %464 = vmatpush1.msra.mxu0 0.0
        %465 = vmatprep.subr.mxu0 0.0
        %466 = vmatpush1.msra.mxu0 0.0
        %467 = vmatprep.subr.mxu0 0.0
        %468 = vmatpush1.msra.mxu0 0.0
        %469 = vmatprep.subr.mxu0 0.0
        %470 = vmatpush1.msra.mxu0 0.0
        %471 = vmatprep.subr.mxu0 0.0
        %472 = vmatpush1.msra.mxu0 0.0
        %473 = vmatprep.subr.mxu0 0.0
        %474 = vmatpush1.msra.mxu0 0.0
        %475 = vmatprep.subr.mxu0 0.0
        %476 = vmatpush1.msra.mxu0 0.0
        %477 = vmatprep.subr.mxu0 0.0
        %478 = vmatpush1.msra.mxu0 0.0
        %479 = vmatprep.subr.mxu0 0.0
        %480 = vmatpush1.msra.mxu0 0.0
        %481 = vmatprep.subr.mxu0 0.0
        %482 = vmatpush1.msra.mxu0 0.0
        %483 = vmatprep.subr.mxu0 0.0
        %484 = vmatpush1.msra.mxu0 0.0
        %485 = vmatprep.subr.mxu0 0.0
        %486 = vmatpush1.msra.mxu0 0.0
        %487 = vmatprep.subr.mxu0 0.0
        %488 = vmatpush1.msra.mxu0 0.0
        %489 = vmatprep.subr.mxu0 0.0
        %490 = vmatpush1.msra.mxu0 0.0
        %491 = vmatprep.subr.mxu0 0.0
        %492 = vmatpush1.msra.mxu0 0.0
        %493 = vmatprep.subr.mxu0 0.0
        %494 = vmatpush1.msra.mxu0 0.0
        %495 = vmatprep.subr.mxu0 0.0
        %496 = vmatpush1.msra.mxu0 0.0
        %497 = vmatprep.subr.mxu0 0.0
        %498 = vmatpush1.msra.mxu0 0.0
        %499 = vmatprep.subr.mxu0 0.0
        %500 = vmatpush1.msra.mxu0 0.0
        %501 = vmatprep.subr.mxu0 0.0
        %502 = vmatpush1.msra.mxu0 0.0
        %503 = vmatprep.subr.mxu0 0.0
        %504 = vmatpush1.msra.mxu0 0.0
        %505 = vmatprep.subr.mxu0 0.0
        %506 = vmatpush1.msra.mxu0 0.0
        %507 = vmatprep.subr.mxu0 0.0
        %508 = vmatpush1.msra.mxu0 0.0
        %509 = vmatprep.subr.mxu0 0.0
        %510 = vmatpush1.msra.mxu0 0.0
        %511 = vmatprep.subr.mxu0 0.0
        %512 = vmatpush1.msra.mxu0 0.0
        %513 = vmatprep.subr.mxu0 0.0
        %514 = vmatpush1.msra.mxu0 0.0
        %515 = vmatprep.subr.mxu0 0.0
        %516 = vmatpush1.msra.mxu0 0.0
        %517 = vmatprep.subr.mxu0 0.0
        %518 = vmatpush1.msra.mxu0 0.0
        %519 = vmatprep.subr.mxu0 0.0
        %520 = vmatpush1.msra.mxu0 0.0
        %521 = vmatprep.mubr.f32.mxu0 0.0
        %522 = vmatmul.mubr.f32.gmra.mrb[0].mxu0 %v452
        %v523 = vpop.f32.mrb[0].mxu0
        %v524 = vadd.f32 0.0, %v523
        %v525 = vpop.f32.mrb[0].mxu0
        %526 = vmatprep.mubr.f32.mxu0 0.0
        %527 = vmatmul.mubr.f32.gmra.mrb[0].mxu0 %v455
        %v528 = vpop.f32.mrb[0].mxu0
        %v529 = vadd.f32 0.0, %v528
        %v530 = vpop.f32.mrb[0].mxu0
        %531 = vdwg.mxu0
        %533 = vset.pattern.permute.xlu0 0
        %534 = vperm.xlu0 %533, %v524
        %v535 = vpop.permute.xlu0 %534
        %538 = vset.pattern.permute.xlu0 0
        %539 = vperm.xlu0 %538, %v529
        %v540 = vpop.permute.xlu0 %539
        %v542 = vsub.f32 %v427, %v535
        %v543 = vsub.f32 %v428, %v535
        %v544 = vsub.f32 %v429, %v540
        %v545 = vsub.f32 %v430, %v540
        %v546 = vmul.f32 %v542, %v542
        %v547 = vmul.f32 %v543, %v543
        %v548 = vmul.f32 %v544, %v544
        %v549 = vmul.f32 %v545, %v545
        %v550 = vadd.f32 %v546, %v547
        %551 = vadd.xlane.f32.xlu0 %v550
        %v552 = vpop.xlane.xlu0 %551
        %v553 = vadd.f32 %v548, %v549
        %554 = vadd.xlane.f32.xlu0 %v553
        %v555 = vpop.xlane.xlu0 %554
        %556 = vmatprep.subr.mxu0 0.0
        %557 = vmatpush1.msra.mxu0 %v552
        %558 = vmatprep.subr.mxu0 0.0
        %559 = vmatpush1.msra.mxu0 %v555
        %560 = vmatprep.subr.mxu0 0.0
        %561 = vmatpush1.msra.mxu0 0.0
        %562 = vmatprep.subr.mxu0 0.0
        %563 = vmatpush1.msra.mxu0 0.0
        %564 = vmatprep.subr.mxu0 0.0
        %565 = vmatpush1.msra.mxu0 0.0
        %566 = vmatprep.subr.mxu0 0.0
        %567 = vmatpush1.msra.mxu0 0.0
        %568 = vmatprep.subr.mxu0 0.0
        %569 = vmatpush1.msra.mxu0 0.0
        %570 = vmatprep.subr.mxu0 0.0
        %571 = vmatpush1.msra.mxu0 0.0
        %572 = vmatprep.subr.mxu0 0.0
        %573 = vmatpush1.msra.mxu0 0.0
        %574 = vmatprep.subr.mxu0 0.0
        %575 = vmatpush1.msra.mxu0 0.0
        %576 = vmatprep.subr.mxu0 0.0
        %577 = vmatpush1.msra.mxu0 0.0
        %578 = vmatprep.subr.mxu0 0.0
        %579 = vmatpush1.msra.mxu0 0.0
        %580 = vmatprep.subr.mxu0 0.0
        %581 = vmatpush1.msra.mxu0 0.0
        %582 = vmatprep.subr.mxu0 0.0
        %583 = vmatpush1.msra.mxu0 0.0
        %584 = vmatprep.subr.mxu0 0.0
        %585 = vmatpush1.msra.mxu0 0.0
        %586 = vmatprep.subr.mxu0 0.0
        %587 = vmatpush1.msra.mxu0 0.0
        %588 = vmatprep.subr.mxu0 0.0
        %589 = vmatpush1.msra.mxu0 0.0
        %590 = vmatprep.subr.mxu0 0.0
        %591 = vmatpush1.msra.mxu0 0.0
        %592 = vmatprep.subr.mxu0 0.0
        %593 = vmatpush1.msra.mxu0 0.0
        %594 = vmatprep.subr.mxu0 0.0
        %595 = vmatpush1.msra.mxu0 0.0
        %596 = vmatprep.subr.mxu0 0.0
        %597 = vmatpush1.msra.mxu0 0.0
        %598 = vmatprep.subr.mxu0 0.0
        %599 = vmatpush1.msra.mxu0 0.0
        %600 = vmatprep.subr.mxu0 0.0
        %601 = vmatpush1.msra.mxu0 0.0
        %602 = vmatprep.subr.mxu0 0.0
        %603 = vmatpush1.msra.mxu0 0.0
        %604 = vmatprep.subr.mxu0 0.0
        %605 = vmatpush1.msra.mxu0 0.0
        %606 = vmatprep.subr.mxu0 0.0
        %607 = vmatpush1.msra.mxu0 0.0
        %608 = vmatprep.subr.mxu0 0.0
        %609 = vmatpush1.msra.mxu0 0.0
        %610 = vmatprep.subr.mxu0 0.0
        %611 = vmatpush1.msra.mxu0 0.0
        %612 = vmatprep.subr.mxu0 0.0
        %613 = vmatpush1.msra.mxu0 0.0
        %614 = vmatprep.subr.mxu0 0.0
        %615 = vmatpush1.msra.mxu0 0.0
        %616 = vmatprep.subr.mxu0 0.0
        %617 = vmatpush1.msra.mxu0 0.0
        %618 = vmatprep.subr.mxu0 0.0
        %619 = vmatpush1.msra.mxu0 0.0
        %620 = vmatprep.mubr.f32.mxu0 0.0
        %621 = vmatmul.mubr.f32.gmra.mrb[0].mxu0 %v452
        %v622 = vpop.f32.mrb[0].mxu0
        %v623 = vadd.f32 1e-05, %v622
        %v624 = vpop.f32.mrb[0].mxu0
        %625 = vmatprep.mubr.f32.mxu0 0.0
        %626 = vmatmul.mubr.f32.gmra.mrb[0].mxu0 %v455
        %v627 = vpop.f32.mrb[0].mxu0
        %v628 = vadd.f32 1e-05, %v627
        %v629 = vpop.f32.mrb[0].mxu0
        %630 = vdwg.mxu0
        %v631 = vrsqrt.pop %v623
        %v632 = vrsqrt.pop %v628
        %v633 = vmul.f32 %v631, %v440
        %v634 = vmul.f32 %v632, %v441
        %636 = vset.pattern.permute.xlu0 0
        %637 = vperm.xlu0 %636, %v633
        %v638 = vpop.permute.xlu0 %637
        %641 = vset.pattern.permute.xlu0 0
        %642 = vperm.xlu0 %641, %v634
        %v643 = vpop.permute.xlu0 %642
        %v645 = vmul.f32 %v542, %v638
        %v646 = vmul.f32 %v543, %v638
        %v647 = vmul.f32 %v544, %v643
        %v648 = vmul.f32 %v545, %v643
        %650 = vset.pattern.permute.xlu0 1
        %651 = vperm.xlu0 %650, %v440
        %v652 = vpop.permute.xlu0 %651
        %655 = vset.pattern.permute.xlu0 1
        %656 = vperm.xlu0 %655, %v441
        %v657 = vpop.permute.xlu0 %656
        %v659 = vadd.f32 %v645, %v652
        %v660 = vadd.f32 %v646, %v652
        %v661 = vadd.f32 %v647, %v657
        %v662 = vadd.f32 %v648, %v657
        %v663 = vxor.u32 %v659, 2147483648
        %v664 = vxor.u32 %v660, 2147483648
        %v665 = vxor.u32 %v661, 2147483648
        %v666 = vxor.u32 %v662, 2147483648
        %v667 = vmul.f32 %v663, 1.442695
        %v668 = vpow.pop %v667
        %v669 = vmul.f32 %v664, 1.442695
        %v670 = vpow.pop %v669
        %v671 = vmul.f32 %v665, 1.442695
        %v672 = vpow.pop %v671
        %v673 = vmul.f32 %v666, 1.442695
        %v674 = vpow.pop %v673
        %v675 = vadd.f32 %v668, 1.0
        %v676 = vadd.f32 %v670, 1.0
        %v677 = vadd.f32 %v672, 1.0
        %v678 = vadd.f32 %v674, 1.0
        %v679 = vrcp.pop %v675
        %v680 = vmul.f32 1.0, %v679
        %v681 = vrcp.pop %v676
        %v682 = vmul.f32 1.0, %v681
        %v683 = vrcp.pop %v677
        %v684 = vmul.f32 1.0, %v683
        %v685 = vrcp.pop %v678
        %v686 = vmul.f32 1.0, %v685
        %v687 = vmul.f32 %v659, %v680
        %v688 = vmul.f32 %v660, %v682
        %v689 = vmul.f32 %v661, %v684
        %v690 = vmul.f32 %v662, %v686
        %691 = vrot.lane.b32.xlu0 %v687, 1
        %v692 = vpop.permute.xlu0 %691
        %693 = vrot.lane.b32.xlu0 %v689, 1
        %v694 = vpop.permute.xlu0 %693
        %695 = vrot.lane.b32.xlu0 %v688, 1
        %v696 = vpop.permute.xlu0 %695
        %697 = vrot.lane.b32.xlu0 %v690, 1
        %v698 = vpop.permute.xlu0 %697
        %vm699 = vcmp.lt.s32.totalorder %v434, 1
        %v700 = vsel %vm699, %v692, %v696
        %v701 = vsel %vm699, %v694, %v698
        %v702 = vsel %vm699, %v696, %v692
        %v703 = vsel %vm699, %v698, %v694
        %v704 = vsel %vm436, 1, 0
        %v705 = vsel %vm437, 1, 0
        %vm706 = vcmp.eq.s32.totalorder %v704, 1
        %vm707 = vcmp.eq.s32.totalorder %v705, 1
        %v708 = vsel %vm706, %v702, 0.0
        %v709 = vsel %vm707, %v700, 0.0
        %v710 = vsel %vm706, %v703, 0.0
        %v711 = vsel %vm707, %v701, 0.0
        %712 = vrot.lane.b32.xlu0 %v687, 127
        %v713 = vpop.permute.xlu0 %712
        %714 = vrot.lane.b32.xlu0 %v689, 127
        %v715 = vpop.permute.xlu0 %714
        %716 = vrot.lane.b32.xlu0 %v688, 127
        %v717 = vpop.permute.xlu0 %716
        %718 = vrot.lane.b32.xlu0 %v690, 127
        %v719 = vpop.permute.xlu0 %718
        %vm720 = vcmp.lt.s32.totalorder %v434, 127
        %v721 = vsel %vm720, %v713, %v717
        %v722 = vsel %vm720, %v715, %v719
        %v723 = vsel %vm720, %v717, %v713
        %v724 = vsel %vm720, %v719, %v715
        %v725 = vsel %vm438, 1, 0
        %v726 = vsel %vm439, 1, 0
        %vm727 = vcmp.eq.s32.totalorder %v725, 1
        %vm728 = vcmp.eq.s32.totalorder %v726, 1
        %v729 = vsel %vm727, %v721, 0.0
        %v730 = vsel %vm728, %v723, 0.0
        %v731 = vsel %vm727, %v722, 0.0
        %v732 = vsel %vm728, %v724, 0.0
        %s733 = scalar_lea.vmem [#allocation8], 8
        %v734 = vld [vmem:[%s733] sm:$0xf]
        %v735 = vld [vmem:[%s733 + $0x4] sm:$0xf]
        %v736 = vpack.c.bf16 %v689, %v687
        %v737 = vpack.c.bf16 %v690, %v688
        %v738 = vld [vmem:[#allocation8] sm:$0xf]
        %v739 = vld [vmem:[#allocation8 + $0x4] sm:$0xf]
        %v740 = vpack.c.bf16 %v710, %v708
        %v741 = vpack.c.bf16 %v711, %v709
        %v744 = vunpack.c.l.b16 %v738
        %v745 = vunpack.c.l.b16 %v739
        %v746 = vpack.c.b16 %v745, %v744
        %v748 = vsel %vm450, %v746, 0
        %750 = vmatprep.subr.bf16.mxu0 %v741
        %751 = vmatpush1.bf16.msra.mxu0 %v740
        %752 = vmatprep.subr.bf16.mxu0 0
        %753 = vmatpush1.bf16.msra.mxu0 0
        %754 = vmatprep.subr.bf16.mxu0 0
        %755 = vmatpush1.bf16.msra.mxu0 0
        %756 = vmatprep.subr.bf16.mxu0 0
        %757 = vmatpush1.bf16.msra.mxu0 0
        %758 = vmatprep.subr.bf16.mxu0 0
        %759 = vmatpush1.bf16.msra.mxu0 0
        %760 = vmatprep.subr.bf16.mxu0 0
        %761 = vmatpush1.bf16.msra.mxu0 0
        %762 = vmatprep.subr.bf16.mxu0 0
        %763 = vmatpush1.bf16.msra.mxu0 0
        %764 = vmatprep.subr.bf16.mxu0 0
        %765 = vmatpush1.bf16.msra.mxu0 0
        %766 = vmatprep.subr.bf16.mxu0 0
        %767 = vmatpush1.bf16.msra.mxu0 0
        %768 = vmatprep.subr.bf16.mxu0 0
        %769 = vmatpush1.bf16.msra.mxu0 0
        %770 = vmatprep.subr.bf16.mxu0 0
        %771 = vmatpush1.bf16.msra.mxu0 0
        %772 = vmatprep.subr.bf16.mxu0 0
        %773 = vmatpush1.bf16.msra.mxu0 0
        %774 = vmatprep.subr.bf16.mxu0 0
        %775 = vmatpush1.bf16.msra.mxu0 0
        %776 = vmatprep.subr.bf16.mxu0 0
        %777 = vmatpush1.bf16.msra.mxu0 0
        %778 = vmatprep.subr.bf16.mxu0 0
        %779 = vmatpush1.bf16.msra.mxu0 0
        %780 = vmatprep.subr.bf16.mxu0 0
        %781 = vmatpush1.bf16.msra.mxu0 0
        %782 = vmatprep.mubr.bf16.mxu0 0
        %783 = vmatmul.mubr.bf16.gmra.mrb[0].mxu0 %v748
        %v784 = vpop.f32.mrb[0].mxu0
        %v785 = vadd.f32 0.0, %v784
        %v786 = vpop.f32.mrb[0].mxu0
        %v787 = vadd.f32 0.0, %v786
        %v788 = vpop.f32.mrb[0].mxu0
        %v789 = vadd.f32 0.0, %v788
        %v790 = vpop.f32.mrb[0].mxu0
        %v791 = vadd.f32 0.0, %v790
        %792 = vdwg.mxu0
        %v795 = vunpack.c.l.b16 %v734
        %v796 = vunpack.c.l.b16 %v735
        %v797 = vpack.c.b16 %v796, %v795
        %v799 = vsel %vm450, %v797, 0
        %801 = vmatprep.subr.bf16.mxu0 %v737
        %802 = vmatpush1.bf16.msra.mxu0 %v736
        %803 = vmatprep.subr.bf16.mxu0 0
        %804 = vmatpush1.bf16.msra.mxu0 0
        %805 = vmatprep.subr.bf16.mxu0 0
        %806 = vmatpush1.bf16.msra.mxu0 0
        %807 = vmatprep.subr.bf16.mxu0 0
        %808 = vmatpush1.bf16.msra.mxu0 0
        %809 = vmatprep.subr.bf16.mxu0 0
        %810 = vmatpush1.bf16.msra.mxu0 0
        %811 = vmatprep.subr.bf16.mxu0 0
        %812 = vmatpush1.bf16.msra.mxu0 0
        %813 = vmatprep.subr.bf16.mxu0 0
        %814 = vmatpush1.bf16.msra.mxu0 0
        %815 = vmatprep.subr.bf16.mxu0 0
        %816 = vmatpush1.bf16.msra.mxu0 0
        %817 = vmatprep.subr.bf16.mxu0 0
        %818 = vmatpush1.bf16.msra.mxu0 0
        %819 = vmatprep.subr.bf16.mxu0 0
        %820 = vmatpush1.bf16.msra.mxu0 0
        %821 = vmatprep.subr.bf16.mxu0 0
        %822 = vmatpush1.bf16.msra.mxu0 0
        %823 = vmatprep.subr.bf16.mxu0 0
        %824 = vmatpush1.bf16.msra.mxu0 0
        %825 = vmatprep.subr.bf16.mxu0 0
        %826 = vmatpush1.bf16.msra.mxu0 0
        %827 = vmatprep.subr.bf16.mxu0 0
        %828 = vmatpush1.bf16.msra.mxu0 0
        %829 = vmatprep.subr.bf16.mxu0 0
        %830 = vmatpush1.bf16.msra.mxu0 0
        %831 = vmatprep.subr.bf16.mxu0 0
        %832 = vmatpush1.bf16.msra.mxu0 0
        %833 = vmatprep.mubr.bf16.mxu0 0
        %834 = vmatmul.mubr.bf16.gmra.mrb[0].mxu0 %v799
        %v835 = vpop.f32.mrb[0].mxu0
        %v836 = vadd.f32 %v785, %v835
        %v837 = vpop.f32.mrb[0].mxu0
        %v838 = vadd.f32 %v787, %v837
        %v839 = vpop.f32.mrb[0].mxu0
        %v840 = vadd.f32 %v789, %v839
        %v841 = vpop.f32.mrb[0].mxu0
        %v842 = vadd.f32 %v791, %v841
        %843 = vdwg.mxu0
        %s844 = scalar_lea.vmem [#allocation8], 16
        %v845 = vld [vmem:[%s844] sm:$0xf]
        %v846 = vld [vmem:[%s844 + $0x4] sm:$0xf]
        %v847 = vpack.c.bf16 %v731, %v729
        %v848 = vpack.c.bf16 %v732, %v730
        %v851 = vunpack.c.l.b16 %v845
        %v852 = vunpack.c.l.b16 %v846
        %v853 = vpack.c.b16 %v852, %v851
        %v855 = vsel %vm450, %v853, 0
        %857 = vmatprep.subr.bf16.mxu0 %v848
        %858 = vmatpush1.bf16.msra.mxu0 %v847
        %859 = vmatprep.subr.bf16.mxu0 0
        %860 = vmatpush1.bf16.msra.mxu0 0
        %861 = vmatprep.subr.bf16.mxu0 0
        %862 = vmatpush1.bf16.msra.mxu0 0
        %863 = vmatprep.subr.bf16.mxu0 0
        %864 = vmatpush1.bf16.msra.mxu0 0
        %865 = vmatprep.subr.bf16.mxu0 0
        %866 = vmatpush1.bf16.msra.mxu0 0
        %867 = vmatprep.subr.bf16.mxu0 0
        %868 = vmatpush1.bf16.msra.mxu0 0
        %869 = vmatprep.subr.bf16.mxu0 0
        %870 = vmatpush1.bf16.msra.mxu0 0
        %871 = vmatprep.subr.bf16.mxu0 0
        %872 = vmatpush1.bf16.msra.mxu0 0
        %873 = vmatprep.subr.bf16.mxu0 0
        %874 = vmatpush1.bf16.msra.mxu0 0
        %875 = vmatprep.subr.bf16.mxu0 0
        %876 = vmatpush1.bf16.msra.mxu0 0
        %877 = vmatprep.subr.bf16.mxu0 0
        %878 = vmatpush1.bf16.msra.mxu0 0
        %879 = vmatprep.subr.bf16.mxu0 0
        %880 = vmatpush1.bf16.msra.mxu0 0
        %881 = vmatprep.subr.bf16.mxu0 0
        %882 = vmatpush1.bf16.msra.mxu0 0
        %883 = vmatprep.subr.bf16.mxu0 0
        %884 = vmatpush1.bf16.msra.mxu0 0
        %885 = vmatprep.subr.bf16.mxu0 0
        %886 = vmatpush1.bf16.msra.mxu0 0
        %887 = vmatprep.subr.bf16.mxu0 0
        %888 = vmatpush1.bf16.msra.mxu0 0
        %889 = vmatprep.mubr.bf16.mxu0 0
        %890 = vmatmul.mubr.bf16.gmra.mrb[0].mxu0 %v855
        %v891 = vpop.f32.mrb[0].mxu0
        %v892 = vadd.f32 0.0, %v891
        %v893 = vpop.f32.mrb[0].mxu0
        %v894 = vadd.f32 0.0, %v893
        %v895 = vpop.f32.mrb[0].mxu0
        %v896 = vadd.f32 0.0, %v895
        %v897 = vpop.f32.mrb[0].mxu0
        %v898 = vadd.f32 0.0, %v897
        %899 = vdwg.mxu0
        %v900 = vadd.f32 %v836, %v892
        %v901 = vadd.f32 %v838, %v894
        %v902 = vadd.f32 %v840, %v896
        %v903 = vadd.f32 %v842, %v898
        %905 = vset.pattern.permute.xlu0 0
        %906 = vperm.xlu0 %905, %v431
        %v907 = vpop.permute.xlu0 %906
        %910 = vset.pattern.permute.xlu0 0
        %911 = vperm.xlu0 %910, %v432
        %v912 = vpop.permute.xlu0 %911
        %v914 = vadd.f32 %v900, %v907
        %v915 = vadd.f32 %v901, %v907
        %v916 = vadd.f32 %v902, %v912
        %v917 = vadd.f32 %v903, %v912
        %v918 = vld [vmem:[#allocation10] sm:$0xff]
        %v919 = vld [vmem:[#allocation10 + $0x8] sm:$0xff]
        %v920 = vld [vmem:[#allocation11] sm:$0xff]
        %v921 = vld [vmem:[#allocation11 + $0x8] sm:$0xff]
        %v922 = vadd.f32 %v914, %v915
        %923 = vadd.xlane.f32.xlu0 %v922
        %v924 = vpop.xlane.xlu0 %923
        %v925 = vadd.f32 %v916, %v917
        %926 = vadd.xlane.f32.xlu0 %v925
        %v927 = vpop.xlane.xlu0 %926
        %v929 = vsel %vm450, %v920, 0
        %v932 = vsel %vm450, %v921, 0
        %934 = vmatprep.subr.mxu0 0.0
        %935 = vmatpush1.msra.mxu0 %v924
        %936 = vmatprep.subr.mxu0 0.0
        %937 = vmatpush1.msra.mxu0 %v927
        %938 = vmatprep.subr.mxu0 0.0
        %939 = vmatpush1.msra.mxu0 0.0
        %940 = vmatprep.subr.mxu0 0.0
        %941 = vmatpush1.msra.mxu0 0.0
        %942 = vmatprep.subr.mxu0 0.0
        %943 = vmatpush1.msra.mxu0 0.0
        %944 = vmatprep.subr.mxu0 0.0
        %945 = vmatpush1.msra.mxu0 0.0
        %946 = vmatprep.subr.mxu0 0.0
        %947 = vmatpush1.msra.mxu0 0.0
        %948 = vmatprep.subr.mxu0 0.0
        %949 = vmatpush1.msra.mxu0 0.0
        %950 = vmatprep.subr.mxu0 0.0
        %951 = vmatpush1.msra.mxu0 0.0
        %952 = vmatprep.subr.mxu0 0.0
        %953 = vmatpush1.msra.mxu0 0.0
        %954 = vmatprep.subr.mxu0 0.0
        %955 = vmatpush1.msra.mxu0 0.0
        %956 = vmatprep.subr.mxu0 0.0
        %957 = vmatpush1.msra.mxu0 0.0
        %958 = vmatprep.subr.mxu0 0.0
        %959 = vmatpush1.msra.mxu0 0.0
        %960 = vmatprep.subr.mxu0 0.0
        %961 = vmatpush1.msra.mxu0 0.0
        %962 = vmatprep.subr.mxu0 0.0
        %963 = vmatpush1.msra.mxu0 0.0
        %964 = vmatprep.subr.mxu0 0.0
        %965 = vmatpush1.msra.mxu0 0.0
        %966 = vmatprep.subr.mxu0 0.0
        %967 = vmatpush1.msra.mxu0 0.0
        %968 = vmatprep.subr.mxu0 0.0
        %969 = vmatpush1.msra.mxu0 0.0
        %970 = vmatprep.subr.mxu0 0.0
        %971 = vmatpush1.msra.mxu0 0.0
        %972 = vmatprep.subr.mxu0 0.0
        %973 = vmatpush1.msra.mxu0 0.0
        %974 = vmatprep.subr.mxu0 0.0
        %975 = vmatpush1.msra.mxu0 0.0
        %976 = vmatprep.subr.mxu0 0.0
        %977 = vmatpush1.msra.mxu0 0.0
        %978 = vmatprep.subr.mxu0 0.0
        %979 = vmatpush1.msra.mxu0 0.0
        %980 = vmatprep.subr.mxu0 0.0
        %981 = vmatpush1.msra.mxu0 0.0
        %982 = vmatprep.subr.mxu0 0.0
        %983 = vmatpush1.msra.mxu0 0.0
        %984 = vmatprep.subr.mxu0 0.0
        %985 = vmatpush1.msra.mxu0 0.0
        %986 = vmatprep.subr.mxu0 0.0
        %987 = vmatpush1.msra.mxu0 0.0
        %988 = vmatprep.subr.mxu0 0.0
        %989 = vmatpush1.msra.mxu0 0.0
        %990 = vmatprep.subr.mxu0 0.0
        %991 = vmatpush1.msra.mxu0 0.0
        %992 = vmatprep.subr.mxu0 0.0
        %993 = vmatpush1.msra.mxu0 0.0
        %994 = vmatprep.subr.mxu0 0.0
        %995 = vmatpush1.msra.mxu0 0.0
        %996 = vmatprep.subr.mxu0 0.0
        %997 = vmatpush1.msra.mxu0 0.0
        %998 = vmatprep.mubr.f32.mxu0 0.0
        %999 = vmatmul.mubr.f32.gmra.mrb[0].mxu0 %v929
        %v1000 = vpop.f32.mrb[0].mxu0
        %v1001 = vadd.f32 0.0, %v1000
        %v1002 = vpop.f32.mrb[0].mxu0
        %1003 = vmatprep.mubr.f32.mxu0 0.0
        %1004 = vmatmul.mubr.f32.gmra.mrb[0].mxu0 %v932
        %v1005 = vpop.f32.mrb[0].mxu0
        %v1006 = vadd.f32 0.0, %v1005
        %v1007 = vpop.f32.mrb[0].mxu0
        %1008 = vdwg.mxu0
        %1010 = vset.pattern.permute.xlu0 0
        %1011 = vperm.xlu0 %1010, %v1001
        %v1012 = vpop.permute.xlu0 %1011
        %1015 = vset.pattern.permute.xlu0 0
        %1016 = vperm.xlu0 %1015, %v1006
        %v1017 = vpop.permute.xlu0 %1016
        %v1019 = vsub.f32 %v914, %v1012
        %v1020 = vsub.f32 %v915, %v1012
        %v1021 = vsub.f32 %v916, %v1017
        %v1022 = vsub.f32 %v917, %v1017
        %v1023 = vmul.f32 %v1019, %v1019
        %v1024 = vmul.f32 %v1020, %v1020
        %v1025 = vmul.f32 %v1021, %v1021
        %v1026 = vmul.f32 %v1022, %v1022
        %v1027 = vadd.f32 %v1023, %v1024
        %1028 = vadd.xlane.f32.xlu0 %v1027
        %v1029 = vpop.xlane.xlu0 %1028
        %v1030 = vadd.f32 %v1025, %v1026
        %1031 = vadd.xlane.f32.xlu0 %v1030
        %v1032 = vpop.xlane.xlu0 %1031
        %1033 = vmatprep.subr.mxu0 0.0
        %1034 = vmatpush1.msra.mxu0 %v1029
        %1035 = vmatprep.subr.mxu0 0.0
        %1036 = vmatpush1.msra.mxu0 %v1032
        %1037 = vmatprep.subr.mxu0 0.0
        %1038 = vmatpush1.msra.mxu0 0.0
        %1039 = vmatprep.subr.mxu0 0.0
        %1040 = vmatpush1.msra.mxu0 0.0
        %1041 = vmatprep.subr.mxu0 0.0
        %1042 = vmatpush1.msra.mxu0 0.0
        %1043 = vmatprep.subr.mxu0 0.0
        %1044 = vmatpush1.msra.mxu0 0.0
        %1045 = vmatprep.subr.mxu0 0.0
        %1046 = vmatpush1.msra.mxu0 0.0
        %1047 = vmatprep.subr.mxu0 0.0
        %1048 = vmatpush1.msra.mxu0 0.0
        %1049 = vmatprep.subr.mxu0 0.0
        %1050 = vmatpush1.msra.mxu0 0.0
        %1051 = vmatprep.subr.mxu0 0.0
        %1052 = vmatpush1.msra.mxu0 0.0
        %1053 = vmatprep.subr.mxu0 0.0
        %1054 = vmatpush1.msra.mxu0 0.0
        %1055 = vmatprep.subr.mxu0 0.0
        %1056 = vmatpush1.msra.mxu0 0.0
        %1057 = vmatprep.subr.mxu0 0.0
        %1058 = vmatpush1.msra.mxu0 0.0
        %1059 = vmatprep.subr.mxu0 0.0
        %1060 = vmatpush1.msra.mxu0 0.0
        %1061 = vmatprep.subr.mxu0 0.0
        %1062 = vmatpush1.msra.mxu0 0.0
        %1063 = vmatprep.subr.mxu0 0.0
        %1064 = vmatpush1.msra.mxu0 0.0
        %1065 = vmatprep.subr.mxu0 0.0
        %1066 = vmatpush1.msra.mxu0 0.0
        %1067 = vmatprep.subr.mxu0 0.0
        %1068 = vmatpush1.msra.mxu0 0.0
        %1069 = vmatprep.subr.mxu0 0.0
        %1070 = vmatpush1.msra.mxu0 0.0
        %1071 = vmatprep.subr.mxu0 0.0
        %1072 = vmatpush1.msra.mxu0 0.0
        %1073 = vmatprep.subr.mxu0 0.0
        %1074 = vmatpush1.msra.mxu0 0.0
        %1075 = vmatprep.subr.mxu0 0.0
        %1076 = vmatpush1.msra.mxu0 0.0
        %1077 = vmatprep.subr.mxu0 0.0
        %1078 = vmatpush1.msra.mxu0 0.0
        %1079 = vmatprep.subr.mxu0 0.0
        %1080 = vmatpush1.msra.mxu0 0.0
        %1081 = vmatprep.subr.mxu0 0.0
        %1082 = vmatpush1.msra.mxu0 0.0
        %1083 = vmatprep.subr.mxu0 0.0
        %1084 = vmatpush1.msra.mxu0 0.0
        %1085 = vmatprep.subr.mxu0 0.0
        %1086 = vmatpush1.msra.mxu0 0.0
        %1087 = vmatprep.subr.mxu0 0.0
        %1088 = vmatpush1.msra.mxu0 0.0
        %1089 = vmatprep.subr.mxu0 0.0
        %1090 = vmatpush1.msra.mxu0 0.0
        %1091 = vmatprep.subr.mxu0 0.0
        %1092 = vmatpush1.msra.mxu0 0.0
        %1093 = vmatprep.subr.mxu0 0.0
        %1094 = vmatpush1.msra.mxu0 0.0
        %1095 = vmatprep.subr.mxu0 0.0
        %1096 = vmatpush1.msra.mxu0 0.0
        %1097 = vmatprep.mubr.f32.mxu0 0.0
        %1098 = vmatmul.mubr.f32.gmra.mrb[0].mxu0 %v929
        %v1099 = vpop.f32.mrb[0].mxu0
        %v1100 = vadd.f32 1e-05, %v1099
        %v1101 = vpop.f32.mrb[0].mxu0
        %1102 = vmatprep.mubr.f32.mxu0 0.0
        %1103 = vmatmul.mubr.f32.gmra.mrb[0].mxu0 %v932
        %v1104 = vpop.f32.mrb[0].mxu0
        %v1105 = vadd.f32 1e-05, %v1104
        %v1106 = vpop.f32.mrb[0].mxu0
        %1107 = vdwg.mxu0
        %v1108 = vrsqrt.pop %v1100
        %v1109 = vrsqrt.pop %v1105
        %v1110 = vmul.f32 %v1108, %v918
        %v1111 = vmul.f32 %v1109, %v919
        %1113 = vset.pattern.permute.xlu0 0
        %1114 = vperm.xlu0 %1113, %v1110
        %v1115 = vpop.permute.xlu0 %1114
        %1118 = vset.pattern.permute.xlu0 0
        %1119 = vperm.xlu0 %1118, %v1111
        %v1120 = vpop.permute.xlu0 %1119
        %v1122 = vmul.f32 %v1019, %v1115
        %v1123 = vmul.f32 %v1020, %v1115
        %v1124 = vmul.f32 %v1021, %v1120
        %v1125 = vmul.f32 %v1022, %v1120
        %1127 = vset.pattern.permute.xlu0 1
        %1128 = vperm.xlu0 %1127, %v918
        %v1129 = vpop.permute.xlu0 %1128
        %1132 = vset.pattern.permute.xlu0 1
        %1133 = vperm.xlu0 %1132, %v919
        %v1134 = vpop.permute.xlu0 %1133
        %v1136 = vadd.f32 %v1122, %v1129
        %v1137 = vadd.f32 %v1123, %v1129
        %v1138 = vadd.f32 %v1124, %v1134
        %v1139 = vadd.f32 %v1125, %v1134
        %v1140 = vxor.u32 %v1136, 2147483648
        %v1141 = vxor.u32 %v1137, 2147483648
        %v1142 = vxor.u32 %v1138, 2147483648
        %v1143 = vxor.u32 %v1139, 2147483648
        %v1144 = vmul.f32 %v1140, 1.442695
        %v1145 = vpow.pop %v1144
        %v1146 = vmul.f32 %v1141, 1.442695
        %v1147 = vpow.pop %v1146
        %v1148 = vmul.f32 %v1142, 1.442695
        %v1149 = vpow.pop %v1148
        %v1150 = vmul.f32 %v1143, 1.442695
        %v1151 = vpow.pop %v1150
        %v1152 = vadd.f32 %v1145, 1.0
        %v1153 = vadd.f32 %v1147, 1.0
        %v1154 = vadd.f32 %v1149, 1.0
        %v1155 = vadd.f32 %v1151, 1.0
        %v1156 = vrcp.pop %v1152
        %v1157 = vmul.f32 1.0, %v1156
        %v1158 = vrcp.pop %v1153
        %v1159 = vmul.f32 1.0, %v1158
        %v1160 = vrcp.pop %v1154
        %v1161 = vmul.f32 1.0, %v1160
        %v1162 = vrcp.pop %v1155
        %v1163 = vmul.f32 1.0, %v1162
        %v1164 = vmul.f32 %v1136, %v1157
        %v1165 = vmul.f32 %v1137, %v1159
        %v1166 = vmul.f32 %v1138, %v1161
        %v1167 = vmul.f32 %v1139, %v1163
        %1168 = vrot.lane.b32.xlu0 %v1164, 1
        %v1169 = vpop.permute.xlu0 %1168
        %1170 = vrot.lane.b32.xlu0 %v1166, 1
        %v1171 = vpop.permute.xlu0 %1170
        %1172 = vrot.lane.b32.xlu0 %v1165, 1
        %v1173 = vpop.permute.xlu0 %1172
        %1174 = vrot.lane.b32.xlu0 %v1167, 1
        %v1175 = vpop.permute.xlu0 %1174
        %v1176 = vsel %vm699, %v1169, %v1173
        %v1177 = vsel %vm699, %v1171, %v1175
        %v1178 = vsel %vm699, %v1173, %v1169
        %v1179 = vsel %vm699, %v1175, %v1171
        %v1180 = vsel %vm706, %v1178, 0.0
        %v1181 = vsel %vm707, %v1176, 0.0
        %v1182 = vsel %vm706, %v1179, 0.0
        %v1183 = vsel %vm707, %v1177, 0.0
        %1184 = vrot.lane.b32.xlu0 %v1164, 127
        %v1185 = vpop.permute.xlu0 %1184
        %1186 = vrot.lane.b32.xlu0 %v1166, 127
        %v1187 = vpop.permute.xlu0 %1186
        %1188 = vrot.lane.b32.xlu0 %v1165, 127
        %v1189 = vpop.permute.xlu0 %1188
        %1190 = vrot.lane.b32.xlu0 %v1167, 127
        %v1191 = vpop.permute.xlu0 %1190
        %v1192 = vsel %vm720, %v1185, %v1189
        %v1193 = vsel %vm720, %v1187, %v1191
        %v1194 = vsel %vm720, %v1189, %v1185
        %v1195 = vsel %vm720, %v1191, %v1187
        %v1196 = vsel %vm727, %v1192, 0.0
        %v1197 = vsel %vm728, %v1194, 0.0
        %v1198 = vsel %vm727, %v1193, 0.0
        %v1199 = vsel %vm728, %v1195, 0.0
        %s1200 = scalar_lea.vmem [#allocation13], 8
        %v1201 = vld [vmem:[%s1200] sm:$0xf]
        %v1202 = vld [vmem:[%s1200 + $0x4] sm:$0xf]
        %v1203 = vpack.c.bf16 %v1166, %v1164
        %v1204 = vpack.c.bf16 %v1167, %v1165
        %v1205 = vld [vmem:[#allocation13] sm:$0xf]
        %v1206 = vld [vmem:[#allocation13 + $0x4] sm:$0xf]
        %v1207 = vpack.c.bf16 %v1182, %v1180
        %v1208 = vpack.c.bf16 %v1183, %v1181
        %v1211 = vunpack.c.l.b16 %v1205
        %v1212 = vunpack.c.l.b16 %v1206
        %v1213 = vpack.c.b16 %v1212, %v1211
        %v1215 = vsel %vm450, %v1213, 0
        %1217 = vmatprep.subr.bf16.mxu0 %v1208
        %1218 = vmatpush1.bf16.msra.mxu0 %v1207
        %1219 = vmatprep.subr.bf16.mxu0 0
        %1220 = vmatpush1.bf16.msra.mxu0 0
        %1221 = vmatprep.subr.bf16.mxu0 0
        %1222 = vmatpush1.bf16.msra.mxu0 0
        %1223 = vmatprep.subr.bf16.mxu0 0
        %1224 = vmatpush1.bf16.msra.mxu0 0
        %1225 = vmatprep.subr.bf16.mxu0 0
        %1226 = vmatpush1.bf16.msra.mxu0 0
        %1227 = vmatprep.subr.bf16.mxu0 0
        %1228 = vmatpush1.bf16.msra.mxu0 0
        %1229 = vmatprep.subr.bf16.mxu0 0
        %1230 = vmatpush1.bf16.msra.mxu0 0
        %1231 = vmatprep.subr.bf16.mxu0 0
        %1232 = vmatpush1.bf16.msra.mxu0 0
        %1233 = vmatprep.subr.bf16.mxu0 0
        %1234 = vmatpush1.bf16.msra.mxu0 0
        %1235 = vmatprep.subr.bf16.mxu0 0
        %1236 = vmatpush1.bf16.msra.mxu0 0
        %1237 = vmatprep.subr.bf16.mxu0 0
        %1238 = vmatpush1.bf16.msra.mxu0 0
        %1239 = vmatprep.subr.bf16.mxu0 0
        %1240 = vmatpush1.bf16.msra.mxu0 0
        %1241 = vmatprep.subr.bf16.mxu0 0
        %1242 = vmatpush1.bf16.msra.mxu0 0
        %1243 = vmatprep.subr.bf16.mxu0 0
        %1244 = vmatpush1.bf16.msra.mxu0 0
        %1245 = vmatprep.subr.bf16.mxu0 0
        %1246 = vmatpush1.bf16.msra.mxu0 0
        %1247 = vmatprep.subr.bf16.mxu0 0
        %1248 = vmatpush1.bf16.msra.mxu0 0
        %1249 = vmatprep.mubr.bf16.mxu0 0
        %1250 = vmatmul.mubr.bf16.gmra.mrb[0].mxu0 %v1215
        %v1251 = vpop.f32.mrb[0].mxu0
        %v1252 = vadd.f32 0.0, %v1251
        %v1253 = vpop.f32.mrb[0].mxu0
        %v1254 = vadd.f32 0.0, %v1253
        %v1255 = vpop.f32.mrb[0].mxu0
        %v1256 = vadd.f32 0.0, %v1255
        %v1257 = vpop.f32.mrb[0].mxu0
        %v1258 = vadd.f32 0.0, %v1257
        %1259 = vdwg.mxu0
        %v1262 = vunpack.c.l.b16 %v1201
        %v1263 = vunpack.c.l.b16 %v1202
        %v1264 = vpack.c.b16 %v1263, %v1262
        %v1266 = vsel %vm450, %v1264, 0
        %1268 = vmatprep.subr.bf16.mxu0 %v1204
        %1269 = vmatpush1.bf16.msra.mxu0 %v1203
        %1270 = vmatprep.subr.bf16.mxu0 0
        %1271 = vmatpush1.bf16.msra.mxu0 0
        %1272 = vmatprep.subr.bf16.mxu0 0
        %1273 = vmatpush1.bf16.msra.mxu0 0
        %1274 = vmatprep.subr.bf16.mxu0 0
        %1275 = vmatpush1.bf16.msra.mxu0 0
        %1276 = vmatprep.subr.bf16.mxu0 0
        %1277 = vmatpush1.bf16.msra.mxu0 0
        %1278 = vmatprep.subr.bf16.mxu0 0
        %1279 = vmatpush1.bf16.msra.mxu0 0
        %1280 = vmatprep.subr.bf16.mxu0 0
        %1281 = vmatpush1.bf16.msra.mxu0 0
        %1282 = vmatprep.subr.bf16.mxu0 0
        %1283 = vmatpush1.bf16.msra.mxu0 0
        %1284 = vmatprep.subr.bf16.mxu0 0
        %1285 = vmatpush1.bf16.msra.mxu0 0
        %1286 = vmatprep.subr.bf16.mxu0 0
        %1287 = vmatpush1.bf16.msra.mxu0 0
        %1288 = vmatprep.subr.bf16.mxu0 0
        %1289 = vmatpush1.bf16.msra.mxu0 0
        %1290 = vmatprep.subr.bf16.mxu0 0
        %1291 = vmatpush1.bf16.msra.mxu0 0
        %1292 = vmatprep.subr.bf16.mxu0 0
        %1293 = vmatpush1.bf16.msra.mxu0 0
        %1294 = vmatprep.subr.bf16.mxu0 0
        %1295 = vmatpush1.bf16.msra.mxu0 0
        %1296 = vmatprep.subr.bf16.mxu0 0
        %1297 = vmatpush1.bf16.msra.mxu0 0
        %1298 = vmatprep.subr.bf16.mxu0 0
        %1299 = vmatpush1.bf16.msra.mxu0 0
        %1300 = vmatprep.mubr.bf16.mxu0 0
        %1301 = vmatmul.mubr.bf16.gmra.mrb[0].mxu0 %v1266
        %v1302 = vpop.f32.mrb[0].mxu0
        %v1303 = vadd.f32 %v1252, %v1302
        %v1304 = vpop.f32.mrb[0].mxu0
        %v1305 = vadd.f32 %v1254, %v1304
        %v1306 = vpop.f32.mrb[0].mxu0
        %v1307 = vadd.f32 %v1256, %v1306
        %v1308 = vpop.f32.mrb[0].mxu0
        %v1309 = vadd.f32 %v1258, %v1308
        %1310 = vdwg.mxu0
        %s1311 = scalar_lea.vmem [#allocation13], 16
        %v1312 = vld [vmem:[%s1311] sm:$0xf]
        %v1313 = vld [vmem:[%s1311 + $0x4] sm:$0xf]
        %v1314 = vpack.c.bf16 %v1198, %v1196
        %v1315 = vpack.c.bf16 %v1199, %v1197
        %v1318 = vunpack.c.l.b16 %v1312
        %v1319 = vunpack.c.l.b16 %v1313
        %v1320 = vpack.c.b16 %v1319, %v1318
        %v1322 = vsel %vm450, %v1320, 0
        %1324 = vmatprep.subr.bf16.mxu0 %v1315
        %1325 = vmatpush1.bf16.msra.mxu0 %v1314
        %1326 = vmatprep.subr.bf16.mxu0 0
        %1327 = vmatpush1.bf16.msra.mxu0 0
        %1328 = vmatprep.subr.bf16.mxu0 0
        %1329 = vmatpush1.bf16.msra.mxu0 0
        %1330 = vmatprep.subr.bf16.mxu0 0
        %1331 = vmatpush1.bf16.msra.mxu0 0
        %1332 = vmatprep.subr.bf16.mxu0 0
        %1333 = vmatpush1.bf16.msra.mxu0 0
        %1334 = vmatprep.subr.bf16.mxu0 0
        %1335 = vmatpush1.bf16.msra.mxu0 0
        %1336 = vmatprep.subr.bf16.mxu0 0
        %1337 = vmatpush1.bf16.msra.mxu0 0
        %1338 = vmatprep.subr.bf16.mxu0 0
        %1339 = vmatpush1.bf16.msra.mxu0 0
        %1340 = vmatprep.subr.bf16.mxu0 0
        %1341 = vmatpush1.bf16.msra.mxu0 0
        %1342 = vmatprep.subr.bf16.mxu0 0
        %1343 = vmatpush1.bf16.msra.mxu0 0
        %1344 = vmatprep.subr.bf16.mxu0 0
        %1345 = vmatpush1.bf16.msra.mxu0 0
        %1346 = vmatprep.subr.bf16.mxu0 0
        %1347 = vmatpush1.bf16.msra.mxu0 0
        %1348 = vmatprep.subr.bf16.mxu0 0
        %1349 = vmatpush1.bf16.msra.mxu0 0
        %1350 = vmatprep.subr.bf16.mxu0 0
        %1351 = vmatpush1.bf16.msra.mxu0 0
        %1352 = vmatprep.subr.bf16.mxu0 0
        %1353 = vmatpush1.bf16.msra.mxu0 0
        %1354 = vmatprep.subr.bf16.mxu0 0
        %1355 = vmatpush1.bf16.msra.mxu0 0
        %1356 = vmatprep.mubr.bf16.mxu0 0
        %1357 = vmatmul.mubr.bf16.gmra.mrb[0].mxu0 %v1322
        %v1358 = vpop.f32.mrb[0].mxu0
        %v1359 = vadd.f32 0.0, %v1358
        %v1360 = vpop.f32.mrb[0].mxu0
        %v1361 = vadd.f32 0.0, %v1360
        %v1362 = vpop.f32.mrb[0].mxu0
        %v1363 = vadd.f32 0.0, %v1362
        %v1364 = vpop.f32.mrb[0].mxu0
        %v1365 = vadd.f32 0.0, %v1364
        %1366 = vdwg.mxu0
        %v1367 = vadd.f32 %v1303, %v1359
        %v1368 = vadd.f32 %v1305, %v1361
        %v1369 = vadd.f32 %v1307, %v1363
        %v1370 = vadd.f32 %v1309, %v1365
        %1371 = vset.pattern.permute.xlu0 1
        %1372 = vperm.xlu0 %1371, %v431
        %v1373 = vpop.permute.xlu0 %1372
        %1375 = vset.pattern.permute.xlu0 1
        %1376 = vperm.xlu0 %1375, %v432
        %v1377 = vpop.permute.xlu0 %1376
        %v1379 = vadd.f32 %v1367, %v1373
        %v1380 = vadd.f32 %v1368, %v1373
        %v1381 = vadd.f32 %v1369, %v1377
        %v1382 = vadd.f32 %v1370, %v1377
        %v1383 = vadd.f32 %v1379, %v427
        %v1384 = vadd.f32 %v1380, %v428
        %v1385 = vadd.f32 %v1381, %v429
        %v1386 = vadd.f32 %v1382, %v430
        %1387 = vst [vmem:[%s425] sm:$0xff] %v1383
        %1388 = vst [vmem:[%s425 + $0x8] sm:$0xff] %v1384
        %1389 = vst [vmem:[%s425 + $0x10] sm:$0xff] %v1385
        %1390 = vst [vmem:[%s425 + $0x18] sm:$0xff] %v1386
        %s1391 = sand.u32 %s210, 1
        %s1392 = scalar_lea.sflag [#allocation4], %s1391
        %s1393 = sand.u32 %s210, 1
        %s1394 = smul.addr %s1393, 32
        %s1395 = scalar_lea.vmem [#allocation16], %s1394
        // Predicated region
        $region85: #{tpu_custom_call.1} parent=51 // pred_check
          %p1396 = pneg %p220
        $region86: #{tpu_custom_call.1} parent=51 // pred_check_branch
          %1398 = sbr.rel (%p1396) target = $region88
        $region87: #{tpu_custom_call.1} parent=51 // pred_region
          %s1400 = ssub.s32 512, 512
          %1401 = vsyncadd %s1392, %s1400
          %s1402 = smul.addr %s29, 4
          %s1403 = smul.addr %s1402, 128
          %s1404 = scalar_lea.hbm %s8, %s1403
          %s1405 = sshll.u32 %s1395, 4
          %s1406 = int_to_ptr.vmem [resolvable:$true] %s1405
          %1411 = dma.vmem_to_hbm [thread:$0]  %s1406, 512, %s1404, %s1392, 256, 256, 16
        $region88: #{tpu_custom_call.1} parent=51 // pred_fallthru
          _
      $region52: #{tpu_custom_call.1} parent=5 // pred_fallthru
        _
      %p1412 = scmp.le.s32.totalorder 2, %s24
      // Predicated region
      $region89: #{tpu_custom_call.1} parent=5 // pred_check
        %p1413 = pneg %p1412
      $region90: #{tpu_custom_call.1} parent=5 // pred_check_branch
        %1415 = sbr.rel (%p1413) target = $region92
      $region91: #{tpu_custom_call.1} parent=5 // pred_region
        %s1416 = ssub.s32 %s24, 2
        // Predicated region
        $region93: #{tpu_custom_call.1} parent=91 // pred_check
          %p1417 = pneg %p226
        $region94: #{tpu_custom_call.1} parent=91 // pred_check_branch
          %1419 = sbr.rel (%p1417) target = $region96
        $region95: #{tpu_custom_call.1} parent=91 // pred_region
          %s1420 = sand.u32 %s211, 1
          %s1421 = scalar_lea.sflag [#allocation4], %s1420
          %s1422 = sand.u32 %s211, 1
          %s1423 = smul.addr %s1422, 32
          %s1424 = scalar_lea.vmem [#allocation16], %s1423
          %1425 = dma.done %s1421, 512
        $region96: #{tpu_custom_call.1} parent=91 // pred_fallthru
          _
      $region92: #{tpu_custom_call.1} parent=5 // pred_fallthru
        _
    $region6: #{tpu_custom_call.1} parent=1 // loop_footer
      %s28 = sadd.s32 1, %s24
    $region7: #{tpu_custom_call.1} parent=1 // loop_footer_branch
      %23 = sbr.rel target = $region3
    $region8: #{tpu_custom_call.1} parent=1 // loop_exit
      _
    %1426 = vsyncpa [#allocation3], 1
    %s1427 = scalar_lea.sflag [#allocation3], 1
    %1428 = vsyncpa %s1427, 1
    %1429 = vsyncpa [#allocation6], 1
    %1430 = vsyncpa [#allocation9], 1
    %1431 = vsyncpa [#allocation12], 1
    %1432 = vsyncpa [#allocation15], 1
    %1433 = vsyncpa [#allocation4], 1
    %s1434 = scalar_lea.sflag [#allocation4], 1
    %1435 = vsyncpa %s1434, 1

// kernel: tpu_custom_call.1
$region0: #{tpu_custom_call.1}
  #allocation0 [shape = 'u32[]', space=smem, size = 0x4, offset = 0x4, fixed_abs, tag = 'smem constant byte address 0x4 - core index']
  #allocation1 [shape = 'u32[144,128]{1,0:T(1,128)}', space=vmem, size = 0x12000, scoped, tag = 'internal scratch']
  %s0 = inlined_call_operand.hbm [shape: f32[2,16,256], index: 0, kind: input, shape index: {}]
  %s1 = inlined_call_operand.hbm [shape: f32[16,2], index: 1, kind: input, shape index: {}]
  %s2 = inlined_call_operand.hbm [shape: f32[16,16], index: 2, kind: input, shape index: {}]
  %s3 = inlined_call_operand.hbm [shape: bf16[3,16,16], index: 3, kind: input, shape index: {}]
  %s4 = inlined_call_operand.hbm [shape: f32[16,2], index: 4, kind: input, shape index: {}]
  %s5 = inlined_call_operand.hbm [shape: f32[16,16], index: 5, kind: input, shape index: {}]
  %s6 = inlined_call_operand.hbm [shape: bf16[3,16,16], index: 6, kind: input, shape index: {}]
  %s7 = inlined_call_operand.hbm [shape: f32[16,3], index: 7, kind: input, shape index: {}]
  %s8 = inlined_call_operand.hbm [shape: f32[2,16,256], index: 8, kind: output, shape index: {}]
  %s9 = sld [smem:[#allocation0]]
  $region97: #{tpu_custom_call.1} parent=0
    _
  %s11 = ssub.s32 1, %s9
  %s12 = scalar_select 0, %s11, %s9
  $region1: #{tpu_custom_call.1} parent=0
    #allocation2 [shape = 'u8[32768]{0}', space=vmem, size = 0x8000, scoped, tag = 'input window, operand 0']
    #allocation3 [shape = 's32[2]{0}', space=sflag, size = 0x8, scoped, tag = 'scoped memory for tpu_custom_call.1']
    #allocation4 [shape = 's32[2]{0}', space=sflag, size = 0x8, scoped, tag = 'scoped memory for tpu_custom_call.1']
    #allocation5 [shape = 'u8[8192]{0}', space=vmem, size = 0x2000, scoped, tag = 'input window, operand 1, single buffered']
    #allocation6 [shape = 's32[1]{0}', space=sflag, size = 0x4, scoped, tag = 'scoped memory for tpu_custom_call.1']
    #allocation7 [shape = 'u8[8192]{0}', space=vmem, size = 0x2000, scoped, tag = 'input window, operand 2, single buffered']
    #allocation8 [shape = 'u8[12288]{0}', space=vmem, size = 0x3000, scoped, tag = 'input window, operand 3, single buffered']
    #allocation9 [shape = 's32[1]{0}', space=sflag, size = 0x4, scoped, tag = 'scoped memory for tpu_custom_call.1']
    #allocation10 [shape = 'u8[8192]{0}', space=vmem, size = 0x2000, scoped, tag = 'input window, operand 4, single buffered']
    #allocation11 [shape = 'u8[8192]{0}', space=vmem, size = 0x2000, scoped, tag = 'input window, operand 5, single buffered']
    #allocation12 [shape = 's32[1]{0}', space=sflag, size = 0x4, scoped, tag = 'scoped memory for tpu_custom_call.1']
    #allocation13 [shape = 'u8[12288]{0}', space=vmem, size = 0x3000, scoped, tag = 'input window, operand 6, single buffered']
    #allocation14 [shape = 'u8[8192]{0}', space=vmem, size = 0x2000, scoped, tag = 'input window, operand 7, single buffered']
    #allocation15 [shape = 's32[1]{0}', space=sflag, size = 0x4, scoped, tag = 'scoped memory for tpu_custom_call.1']
    #allocation16 [shape = 'u8[32768]{0}', space=vmem, size = 0x8000, scoped, tag = 'output window, operand 0']
    %13 = vsyncpa [#allocation3], 0
    %s14 = scalar_lea.sflag [#allocation3], 1
    %15 = vsyncpa %s14, 0
    %16 = vsyncpa [#allocation6], 0
    %17 = vsyncpa [#allocation9], 0
    %18 = vsyncpa [#allocation12], 0
    %19 = vsyncpa [#allocation15], 0
    %20 = vsyncpa [#allocation4], 0
    %s21 = scalar_lea.sflag [#allocation4], 1
    %22 = vsyncpa %s21, 0
    loop: start=0, step=1, limit=4
    $region2: #{tpu_custom_call.1} parent=1 // loop_pre_header
      _
    $region3: #{tpu_custom_call.1} parent=1 // loop_header
      %s24 = sphi 0, %s28
      %p25 = scmp.ge.s32.totalorder %s24, 4
      %s34 = sphi 0, %s36
      %s37 = sphi 0, %s34
      %s38 = sphi 0, %s37
      %s54 = sphi 0, %s38
      %s58 = sphi 0, %s58
      %s60 = sphi 0, %s58
      %s61 = sphi 0, %s60
      %s75 = sphi 0, %s61
      %s79 = sphi 0, %s79
      %s81 = sphi 0, %s79
      %s82 = sphi 0, %s81
      %s96 = sphi 0, %s82
      %s100 = sphi 0, %s100
      %s102 = sphi 0, %s100
      %s103 = sphi 0, %s102
      %s117 = sphi 0, %s103
      %s121 = sphi 0, %s121
      %s123 = sphi 0, %s121
      %s124 = sphi 0, %s123
      %s138 = sphi 0, %s124
      %s142 = sphi 0, %s142
      %s144 = sphi 0, %s142
      %s145 = sphi 0, %s144
      %s159 = sphi 0, %s145
      %s163 = sphi 0, %s163
      %s165 = sphi 0, %s163
      %s166 = sphi 0, %s165
      %s180 = sphi 0, %s166
      %s184 = sphi 0, %s184
      %s186 = sphi 0, %s184
      %s187 = sphi 0, %s186
      %s201 = sphi 0, %s187
      %s207 = sphi 0, %s209
      %s210 = sphi 0, %s207
      %s211 = sphi 0, %s210
      %s227 = sphi 0, %s211
    $region4: #{tpu_custom_call.1} parent=1 // loop_header_branch
      %27 = sbr.rel (%p25) target = $region8
    $region5: #{tpu_custom_call.1} parent=1 // loop_body
      %s29 = ssub.s32 %s24, 1
      %s30 = ssub.s32 %s24, 2
      %s31 = sadd.s32 %s24, 1
      %s32 = ssub.s32 %s24, %s31
      %p33 = scmp.eq.s32.totalorder %s32, 0
      %s35 = sadd.s32 %s34, 1
      %s36 = scalar_select %p33, %s34, %s35
      %p39 = pneg %p33
      %p40 = scmp.eq.s32.totalorder %s24, 1
      %p41 = por %p39, %p40
      %p42 = scmp.ne.s32.totalorder %s34, %s37
      %p43 = scmp.eq.s32.totalorder %s24, 0
      %p44 = por %p42, %p43
      %p45 = scmp.ne.s32.totalorder %s34, %s37
      %p46 = scmp.eq.s32.totalorder %s29, 1
      %p47 = por %p45, %p46
      %p48 = scmp.ne.s32.totalorder %s37, %s38
      %p49 = scmp.eq.s32.totalorder %s29, 0
      %p50 = por %p48, %p49
      %p51 = scmp.ne.s32.totalorder %s37, %s38
      %p52 = scmp.eq.s32.totalorder %s30, 1
      %p53 = por %p51, %p52
      %p55 = scmp.ne.s32.totalorder %s38, %s54
      %p56 = scmp.eq.s32.totalorder %s30, 0
      %p57 = por %p55, %p56
      %s59 = sadd.s32 %s58, 1
      %p62 = scmp.eq.s32.totalorder %s24, 1
      %p63 = scmp.ne.s32.totalorder %s58, %s60
      %p64 = scmp.eq.s32.totalorder %s24, 0
      %p65 = por %p63, %p64
      %p66 = scmp.ne.s32.totalorder %s58, %s60
      %p67 = scmp.eq.s32.totalorder %s29, 1
      %p68 = por %p66, %p67
      %p69 = scmp.ne.s32.totalorder %s60, %s61
      %p70 = scmp.eq.s32.totalorder %s29, 0
      %p71 = por %p69, %p70
      %p72 = scmp.ne.s32.totalorder %s60, %s61
      %p73 = scmp.eq.s32.totalorder %s30, 1
      %p74 = por %p72, %p73
      %p76 = scmp.ne.s32.totalorder %s61, %s75
      %p77 = scmp.eq.s32.totalorder %s30, 0
      %p78 = por %p76, %p77
      %s80 = sadd.s32 %s79, 1
      %p83 = scmp.eq.s32.totalorder %s24, 1
      %p84 = scmp.ne.s32.totalorder %s79, %s81
      %p85 = scmp.eq.s32.totalorder %s24, 0
      %p86 = por %p84, %p85
      %p87 = scmp.ne.s32.totalorder %s79, %s81
      %p88 = scmp.eq.s32.totalorder %s29, 1
      %p89 = por %p87, %p88
      %p90 = scmp.ne.s32.totalorder %s81, %s82
      %p91 = scmp.eq.s32.totalorder %s29, 0
      %p92 = por %p90, %p91
      %p93 = scmp.ne.s32.totalorder %s81, %s82
      %p94 = scmp.eq.s32.totalorder %s30, 1
      %p95 = por %p93, %p94
      %p97 = scmp.ne.s32.totalorder %s82, %s96
      %p98 = scmp.eq.s32.totalorder %s30, 0
      %p99 = por %p97, %p98
      %s101 = sadd.s32 %s100, 1
      %p104 = scmp.eq.s32.totalorder %s24, 1
      %p105 = scmp.ne.s32.totalorder %s100, %s102
      %p106 = scmp.eq.s32.totalorder %s24, 0
      %p107 = por %p105, %p106
      %p108 = scmp.ne.s32.totalorder %s100, %s102
      %p109 = scmp.eq.s32.totalorder %s29, 1
      %p110 = por %p108, %p109
      %p111 = scmp.ne.s32.totalorder %s102, %s103
      %p112 = scmp.eq.s32.totalorder %s29, 0
      %p113 = por %p111, %p112
      %p114 = scmp.ne.s32.totalorder %s102, %s103
      %p115 = scmp.eq.s32.totalorder %s30, 1
      %p116 = por %p114, %p115
      %p118 = scmp.ne.s32.totalorder %s103, %s117
      %p119 = scmp.eq.s32.totalorder %s30, 0
      %p120 = por %p118, %p119
      %s122 = sadd.s32 %s121, 1
      %p125 = scmp.eq.s32.totalorder %s24, 1
      %p126 = scmp.ne.s32.totalorder %s121, %s123
      %p127 = scmp.eq.s32.totalorder %s24, 0
      %p128 = por %p126, %p127
      %p129 = scmp.ne.s32.totalorder %s121, %s123
      %p130 = scmp.eq.s32.totalorder %s29, 1
      %p131 = por %p129, %p130
      %p132 = scmp.ne.s32.totalorder %s123, %s124
      %p133 = scmp.eq.s32.totalorder %s29, 0
      %p134 = por %p132, %p133
      %p135 = scmp.ne.s32.totalorder %s123, %s124
      %p136 = scmp.eq.s32.totalorder %s30, 1
      %p137 = por %p135, %p136
      %p139 = scmp.ne.s32.totalorder %s124, %s138
      %p140 = scmp.eq.s32.totalorder %s30, 0
      %p141 = por %p139, %p140
      %s143 = sadd.s32 %s142, 1
      %p146 = scmp.eq.s32.totalorder %s24, 1
      %p147 = scmp.ne.s32.totalorder %s142, %s144
      %p148 = scmp.eq.s32.totalorder %s24, 0
      %p149 = por %p147, %p148
      %p150 = scmp.ne.s32.totalorder %s142, %s144
      %p151 = scmp.eq.s32.totalorder %s29, 1
      %p152 = por %p150, %p151
      %p153 = scmp.ne.s32.totalorder %s144, %s145
      %p154 = scmp.eq.s32.totalorder %s29, 0
      %p155 = por %p153, %p154
      %p156 = scmp.ne.s32.totalorder %s144, %s145
      %p157 = scmp.eq.s32.totalorder %s30, 1
      %p158 = por %p156, %p157
      %p160 = scmp.ne.s32.totalorder %s145, %s159
      %p161 = scmp.eq.s32.totalorder %s30, 0
      %p162 = por %p160, %p161
      %s164 = sadd.s32 %s163, 1
      %p167 = scmp.eq.s32.totalorder %s24, 1
      %p168 = scmp.ne.s32.totalorder %s163, %s165
      %p169 = scmp.eq.s32.totalorder %s24, 0
      %p170 = por %p168, %p169
      %p171 = scmp.ne.s32.totalorder %s163, %s165
      %p172 = scmp.eq.s32.totalorder %s29, 1
      %p173 = por %p171, %p172
      %p174 = scmp.ne.s32.totalorder %s165, %s166
      %p175 = scmp.eq.s32.totalorder %s29, 0
      %p176 = por %p174, %p175
      %p177 = scmp.ne.s32.totalorder %s165, %s166
      %p178 = scmp.eq.s32.totalorder %s30, 1
      %p179 = por %p177, %p178
      %p181 = scmp.ne.s32.totalorder %s166, %s180
      %p182 = scmp.eq.s32.totalorder %s30, 0
      %p183 = por %p181, %p182
      %s185 = sadd.s32 %s184, 1
      %p188 = scmp.eq.s32.totalorder %s24, 1
      %p189 = scmp.ne.s32.totalorder %s184, %s186
      %p190 = scmp.eq.s32.totalorder %s24, 0
      %p191 = por %p189, %p190
      %p192 = scmp.ne.s32.totalorder %s184, %s186
      %p193 = scmp.eq.s32.totalorder %s29, 1
      %p194 = por %p192, %p193
      %p195 = scmp.ne.s32.totalorder %s186, %s187
      %p196 = scmp.eq.s32.totalorder %s29, 0
      %p197 = por %p195, %p196
      %p198 = scmp.ne.s32.totalorder %s186, %s187
      %p199 = scmp.eq.s32.totalorder %s30, 1
      %p200 = por %p198, %p199
      %p202 = scmp.ne.s32.totalorder %s187, %s201
      %p203 = scmp.eq.s32.totalorder %s30, 0
      %p204 = por %p202, %p203
      %s205 = ssub.s32 %s24, %s31
      %p206 = scmp.eq.s32.totalorder %s205, 0
      %s208 = sadd.s32 %s207, 1
      %s209 = scalar_select %p206, %s207, %s208
      %p212 = pneg %p206
      %p213 = scmp.eq.s32.totalorder %s24, 1
      %p214 = por %p212, %p213
      %p215 = scmp.ne.s32.totalorder %s207, %s210
      %p216 = scmp.eq.s32.totalorder %s24, 0
      %p217 = por %p215, %p216
      %p218 = scmp.ne.s32.totalorder %s207, %s210
      %p219 = scmp.eq.s32.totalorder %s29, 1
      %p220 = por %p218, %p219
      %p221 = scmp.ne.s32.totalorder %s210, %s211
      %p222 = scmp.eq.s32.totalorder %s29, 0
      %p223 = por %p221, %p222
      %p224 = scmp.ne.s32.totalorder %s210, %s211
      %p225 = scmp.eq.s32.totalorder %s30, 1
      %p226 = por %p224, %p225
      %p228 = scmp.ne.s32.totalorder %s211, %s227
      %p229 = scmp.eq.s32.totalorder %s30, 0
      %p230 = por %p228, %p229
      %p231 = scmp.le.s32.totalorder 1, %s24
      %p232 = scmp.lt.s32.totalorder %s24, 3
      %p233 = pnand %p231, %p232
      %p234 = pneg %p233
      // Predicated region
      $region9: #{tpu_custom_call.1} parent=5 // pred_check
        _
      $region10: #{tpu_custom_call.1} parent=5 // pred_check_branch
        %236 = sbr.rel (%p233) target = $region12
      $region11: #{tpu_custom_call.1} parent=5 // pred_region
        %s237 = ssub.s32 %s24, 1
        // Predicated region
        $region13: #{tpu_custom_call.1} parent=11 // pred_check
          %p238 = pneg %p71
        $region14: #{tpu_custom_call.1} parent=11 // pred_check_branch
          %240 = sbr.rel (%p238) target = $region16
        $region15: #{tpu_custom_call.1} parent=11 // pred_region
          %s242 = ssub.s32 256, 256
          %243 = vsyncadd [#allocation6], %s242
          %s244 = sshll.u32 [#allocation5], 4
          %s245 = int_to_ptr.vmem [resolvable:$true] %s244
          %250 = dma.hbm_to_vmem [thread:$0]  %s1, 256, %s245, [#allocation6], 128, 128, 8
        $region16: #{tpu_custom_call.1} parent=11 // pred_fallthru
          _
        // Predicated region
        $region17: #{tpu_custom_call.1} parent=11 // pred_check
          %p251 = pneg %p92
        $region18: #{tpu_custom_call.1} parent=11 // pred_check_branch
          %253 = sbr.rel (%p251) target = $region20
        $region19: #{tpu_custom_call.1} parent=11 // pred_region
          %s255 = ssub.s32 256, 256
          %256 = vsyncadd [#allocation6], %s255
          %s257 = sshll.u32 [#allocation7], 4
          %s258 = int_to_ptr.vmem [resolvable:$true] %s257
          %263 = dma.hbm_to_vmem [thread:$0]  %s2, 256, %s258, [#allocation6], 128, 128, 8
        $region20: #{tpu_custom_call.1} parent=11 // pred_fallthru
          _
        // Predicated region
        $region21: #{tpu_custom_call.1} parent=11 // pred_check
          %p264 = pneg %p113
        $region22: #{tpu_custom_call.1} parent=11 // pred_check_branch
          %266 = sbr.rel (%p264) target = $region24
        $region23: #{tpu_custom_call.1} parent=11 // pred_region
          %s268 = ssub.s32 384, 384
          %269 = vsyncadd [#allocation9], %s268
          %s270 = sshll.u32 [#allocation8], 4
          %s271 = int_to_ptr.vmem [resolvable:$true] %s270
          %276 = dma.hbm_to_vmem [thread:$0]  %s3, 384, %s271, [#allocation9], 64, 64, 4
        $region24: #{tpu_custom_call.1} parent=11 // pred_fallthru
          _
        // Predicated region
        $region25: #{tpu_custom_call.1} parent=11 // pred_check
          %p277 = pneg %p134
        $region26: #{tpu_custom_call.1} parent=11 // pred_check_branch
          %279 = sbr.rel (%p277) target = $region28
        $region27: #{tpu_custom_call.1} parent=11 // pred_region
          %s281 = ssub.s32 256, 256
          %282 = vsyncadd [#allocation9], %s281
          %s283 = sshll.u32 [#allocation10], 4
          %s284 = int_to_ptr.vmem [resolvable:$true] %s283
          %289 = dma.hbm_to_vmem [thread:$0]  %s4, 256, %s284, [#allocation9], 128, 128, 8
        $region28: #{tpu_custom_call.1} parent=11 // pred_fallthru
          _
        // Predicated region
        $region29: #{tpu_custom_call.1} parent=11 // pred_check
          %p290 = pneg %p155
        $region30: #{tpu_custom_call.1} parent=11 // pred_check_branch
          %292 = sbr.rel (%p290) target = $region32
        $region31: #{tpu_custom_call.1} parent=11 // pred_region
          %s294 = ssub.s32 256, 256
          %295 = vsyncadd [#allocation12], %s294
          %s296 = sshll.u32 [#allocation11], 4
          %s297 = int_to_ptr.vmem [resolvable:$true] %s296
          %302 = dma.hbm_to_vmem [thread:$0]  %s5, 256, %s297, [#allocation12], 128, 128, 8
        $region32: #{tpu_custom_call.1} parent=11 // pred_fallthru
          _
        // Predicated region
        $region33: #{tpu_custom_call.1} parent=11 // pred_check
          %p303 = pneg %p176
        $region34: #{tpu_custom_call.1} parent=11 // pred_check_branch
          %305 = sbr.rel (%p303) target = $region36
        $region35: #{tpu_custom_call.1} parent=11 // pred_region
          %s307 = ssub.s32 384, 384
          %308 = vsyncadd [#allocation12], %s307
          %s309 = sshll.u32 [#allocation13], 4
          %s310 = int_to_ptr.vmem [resolvable:$true] %s309
          %315 = dma.hbm_to_vmem [thread:$0]  %s6, 384, %s310, [#allocation12], 64, 64, 4
        $region36: #{tpu_custom_call.1} parent=11 // pred_fallthru
          _
        // Predicated region
        $region37: #{tpu_custom_call.1} parent=11 // pred_check
          %p316 = pneg %p197
        $region38: #{tpu_custom_call.1} parent=11 // pred_check_branch
          %318 = sbr.rel (%p316) target = $region40
        $region39: #{tpu_custom_call.1} parent=11 // pred_region
          %s320 = ssub.s32 256, 256
          %321 = vsyncadd [#allocation15], %s320
          %s322 = sshll.u32 [#allocation14], 4
          %s323 = int_to_ptr.vmem [resolvable:$true] %s322
          %328 = dma.hbm_to_vmem [thread:$0]  %s7, 256, %s323, [#allocation15], 128, 128, 8
        $region40: #{tpu_custom_call.1} parent=11 // pred_fallthru
          _
      $region12: #{tpu_custom_call.1} parent=5 // pred_fallthru
        _
      %p329 = scmp.lt.s32.totalorder %s24, 2
      // Predicated region
      $region41: #{tpu_custom_call.1} parent=5 // pred_check
        %p330 = pneg %p329
      $region42: #{tpu_custom_call.1} parent=5 // pred_check_branch
        %332 = sbr.rel (%p330) target = $region44
      $region43: #{tpu_custom_call.1} parent=5 // pred_region
        // Predicated region
        $region45: #{tpu_custom_call.1} parent=43 // pred_check
          %p333 = pneg %p44
        $region46: #{tpu_custom_call.1} parent=43 // pred_check_branch
          %335 = sbr.rel (%p333) target = $region48
        $region47: #{tpu_custom_call.1} parent=43 // pred_region
          %s336 = sand.u32 %s34, 1
          %s337 = scalar_lea.sflag [#allocation3], %s336
          %s338 = sand.u32 %s34, 1
          %s339 = smul.addr %s338, 32
          %s340 = scalar_lea.vmem [#allocation2], %s339
          %s342 = ssub.s32 512, 512
          %343 = vsyncadd %s337, %s342
          %s344 = smul.addr %s24, 4
          %s345 = smul.addr %s344, 128
          %s346 = scalar_lea.hbm %s0, %s345
          %s347 = sshll.u32 %s340, 4
          %s348 = int_to_ptr.vmem [resolvable:$true] %s347
          %353 = dma.hbm_to_vmem [thread:$0]  %s346, 512, %s348, %s337, 256, 256, 16
        $region48: #{tpu_custom_call.1} parent=43 // pred_fallthru
          _
      $region44: #{tpu_custom_call.1} parent=5 // pred_fallthru
        _
      %p354 = scmp.le.s32.totalorder 1, %s24
      %p355 = scmp.lt.s32.totalorder %s24, 3
      %p356 = pnand %p354, %p355
      %p357 = pneg %p356
      // Predicated region
      $region49: #{tpu_custom_call.1} parent=5 // pred_check
        _
      $region50: #{tpu_custom_call.1} parent=5 // pred_check_branch
        %359 = sbr.rel (%p356) target = $region52
      $region51: #{tpu_custom_call.1} parent=5 // pred_region
        %s360 = ssub.s32 %s24, 1
        %s361 = sand.u32 %s37, 1
        %s362 = scalar_lea.sflag [#allocation3], %s361
        %s363 = sand.u32 %s37, 1
        %s364 = smul.addr %s363, 32
        %s365 = scalar_lea.vmem [#allocation2], %s364
        // Predicated region
        $region53: #{tpu_custom_call.1} parent=51 // pred_check
          %p366 = pneg %p50
        $region54: #{tpu_custom_call.1} parent=51 // pred_check_branch
          %368 = sbr.rel (%p366) target = $region56
        $region55: #{tpu_custom_call.1} parent=51 // pred_region
          %369 = dma.done %s362, 512
        $region56: #{tpu_custom_call.1} parent=51 // pred_fallthru
          _
        // Predicated region
        $region57: #{tpu_custom_call.1} parent=51 // pred_check
          %p370 = pneg %p71
        $region58: #{tpu_custom_call.1} parent=51 // pred_check_branch
          %372 = sbr.rel (%p370) target = $region60
        $region59: #{tpu_custom_call.1} parent=51 // pred_region
          %373 = dma.done [#allocation6], 256
        $region60: #{tpu_custom_call.1} parent=51 // pred_fallthru
          _
        // Predicated region
        $region61: #{tpu_custom_call.1} parent=51 // pred_check
          %p374 = pneg %p92
        $region62: #{tpu_custom_call.1} parent=51 // pred_check_branch
          %376 = sbr.rel (%p374) target = $region64
        $region63: #{tpu_custom_call.1} parent=51 // pred_region
          %377 = dma.done [#allocation6], 256
        $region64: #{tpu_custom_call.1} parent=51 // pred_fallthru
          _
        // Predicated region
        $region65: #{tpu_custom_call.1} parent=51 // pred_check
          %p378 = pneg %p113
        $region66: #{tpu_custom_call.1} parent=51 // pred_check_branch
          %380 = sbr.rel (%p378) target = $region68
        $region67: #{tpu_custom_call.1} parent=51 // pred_region
          %381 = dma.done [#allocation9], 384
        $region68: #{tpu_custom_call.1} parent=51 // pred_fallthru
          _
        // Predicated region
        $region69: #{tpu_custom_call.1} parent=51 // pred_check
          %p382 = pneg %p134
        $region70: #{tpu_custom_call.1} parent=51 // pred_check_branch
          %384 = sbr.rel (%p382) target = $region72
        $region71: #{tpu_custom_call.1} parent=51 // pred_region
          %385 = dma.done [#allocation9], 256
        $region72: #{tpu_custom_call.1} parent=51 // pred_fallthru
          _
        // Predicated region
        $region73: #{tpu_custom_call.1} parent=51 // pred_check
          %p386 = pneg %p155
        $region74: #{tpu_custom_call.1} parent=51 // pred_check_branch
          %388 = sbr.rel (%p386) target = $region76
        $region75: #{tpu_custom_call.1} parent=51 // pred_region
          %389 = dma.done [#allocation12], 256
        $region76: #{tpu_custom_call.1} parent=51 // pred_fallthru
          _
        // Predicated region
        $region77: #{tpu_custom_call.1} parent=51 // pred_check
          %p390 = pneg %p176
        $region78: #{tpu_custom_call.1} parent=51 // pred_check_branch
          %392 = sbr.rel (%p390) target = $region80
        $region79: #{tpu_custom_call.1} parent=51 // pred_region
          %393 = dma.done [#allocation12], 384
        $region80: #{tpu_custom_call.1} parent=51 // pred_fallthru
          _
        // Predicated region
        $region81: #{tpu_custom_call.1} parent=51 // pred_check
          %p394 = pneg %p197
        $region82: #{tpu_custom_call.1} parent=51 // pred_check_branch
          %396 = sbr.rel (%p394) target = $region84
        $region83: #{tpu_custom_call.1} parent=51 // pred_region
          %397 = dma.done [#allocation15], 256
        $region84: #{tpu_custom_call.1} parent=51 // pred_fallthru
          _
        %s398 = sand.u32 %s37, 1
        %s399 = scalar_lea.sflag [#allocation3], %s398
        %s400 = sand.u32 %s37, 1
        %s401 = smul.addr %s400, 32
        %s402 = scalar_lea.vmem [#allocation2], %s401
        %p403 = pneg %p50
        %p404 = pneg %p47
        %p405 = pneg %p71
        %p406 = pneg %p68
        %p407 = pneg %p92
        %p408 = pneg %p89
        %p409 = pneg %p113
        %p410 = pneg %p110
        %p411 = pneg %p134
        %p412 = pneg %p131
        %p413 = pneg %p155
        %p414 = pneg %p152
        %p415 = pneg %p176
        %p416 = pneg %p173
        %p417 = pneg %p197
        %p418 = pneg %p194
        %p419 = pneg %p223
        %p420 = pneg %p220
        %s421 = sand.u32 %s210, 1
        %s422 = scalar_lea.sflag [#allocation4], %s421
        %s423 = sand.u32 %s210, 1
        %s424 = smul.addr %s423, 32
        %s425 = scalar_lea.vmem [#allocation16], %s424
        %v427 = vld [vmem:[%s365] sm:$0xff]
        %v428 = vld [vmem:[%s365 + $0x8] sm:$0xff]
        %v429 = vld [vmem:[%s365 + $0x10] sm:$0xff]
        %v430 = vld [vmem:[%s365 + $0x18] sm:$0xff]
        %v431 = vld [vmem:[#allocation14] sm:$0xff]
        %v432 = vld [vmem:[#allocation14 + $0x8] sm:$0xff]
        %v433 = vlaneseq
        %v434 = vand.u32 %v433, 127
        %v435 = vadd.s32 %v434, 128
        %vm436 = vcmp.ne.s32.totalorder %v434, 0
        %vm437 = vcmp.ne.s32.totalorder %v435, 0
        %vm438 = vcmp.ne.s32.totalorder %v434, 255
        %vm439 = vcmp.ne.s32.totalorder %v435, 255
        %v440 = vld [vmem:[#allocation5] sm:$0xff]
        %v441 = vld [vmem:[#allocation5 + $0x8] sm:$0xff]
        %v442 = vld [vmem:[#allocation7] sm:$0xff]
        %v443 = vld [vmem:[#allocation7 + $0x8] sm:$0xff]
        %v444 = vadd.f32 %v427, %v428
        %445 = vadd.xlane.f32.xlu0 %v444
        %v446 = vpop.xlane.xlu0 %445
        %v447 = vadd.f32 %v429, %v430
        %448 = vadd.xlane.f32.xlu0 %v447
        %v449 = vpop.xlane.xlu0 %448
        %vm450 = vcmask 130048
        %v452 = vsel %vm450, %v442, 0
        %v455 = vsel %vm450, %v443, 0
        %457 = vmatprep.subr.mxu0 0.0
        %458 = vmatpush1.msra.mxu0 %v446
        %459 = vmatprep.subr.mxu0 0.0
        %460 = vmatpush1.msra.mxu0 %v449
        %461 = vmatprep.subr.mxu0 0.0
        %462 = vmatpush1.msra.mxu0 0.0
        %463 = vmatprep.subr.mxu0 0.0
        %464 = vmatpush1.msra.mxu0 0.0
        %465 = vmatprep.subr.mxu0 0.0
        %466 = vmatpush1.msra.mxu0 0.0
        %467 = vmatprep.subr.mxu0 0.0
        %468 = vmatpush1.msra.mxu0 0.0
        %469 = vmatprep.subr.mxu0 0.0
        %470 = vmatpush1.msra.mxu0 0.0
        %471 = vmatprep.subr.mxu0 0.0
        %472 = vmatpush1.msra.mxu0 0.0
        %473 = vmatprep.subr.mxu0 0.0
        %474 = vmatpush1.msra.mxu0 0.0
        %475 = vmatprep.subr.mxu0 0.0
        %476 = vmatpush1.msra.mxu0 0.0
        %477 = vmatprep.subr.mxu0 0.0
        %478 = vmatpush1.msra.mxu0 0.0
        %479 = vmatprep.subr.mxu0 0.0
        %480 = vmatpush1.msra.mxu0 0.0
        %481 = vmatprep.subr.mxu0 0.0
        %482 = vmatpush1.msra.mxu0 0.0
        %483 = vmatprep.subr.mxu0 0.0
        %484 = vmatpush1.msra.mxu0 0.0
        %485 = vmatprep.subr.mxu0 0.0
        %486 = vmatpush1.msra.mxu0 0.0
        %487 = vmatprep.subr.mxu0 0.0
        %488 = vmatpush1.msra.mxu0 0.0
        %489 = vmatprep.subr.mxu0 0.0
        %490 = vmatpush1.msra.mxu0 0.0
        %491 = vmatprep.subr.mxu0 0.0
        %492 = vmatpush1.msra.mxu0 0.0
        %493 = vmatprep.subr.mxu0 0.0
        %494 = vmatpush1.msra.mxu0 0.0
        %495 = vmatprep.subr.mxu0 0.0
        %496 = vmatpush1.msra.mxu0 0.0
        %497 = vmatprep.subr.mxu0 0.0
        %498 = vmatpush1.msra.mxu0 0.0
        %499 = vmatprep.subr.mxu0 0.0
        %500 = vmatpush1.msra.mxu0 0.0
        %501 = vmatprep.subr.mxu0 0.0
        %502 = vmatpush1.msra.mxu0 0.0
        %503 = vmatprep.subr.mxu0 0.0
        %504 = vmatpush1.msra.mxu0 0.0
        %505 = vmatprep.subr.mxu0 0.0
        %506 = vmatpush1.msra.mxu0 0.0
        %507 = vmatprep.subr.mxu0 0.0
        %508 = vmatpush1.msra.mxu0 0.0
        %509 = vmatprep.subr.mxu0 0.0
        %510 = vmatpush1.msra.mxu0 0.0
        %511 = vmatprep.subr.mxu0 0.0
        %512 = vmatpush1.msra.mxu0 0.0
        %513 = vmatprep.subr.mxu0 0.0
        %514 = vmatpush1.msra.mxu0 0.0
        %515 = vmatprep.subr.mxu0 0.0
        %516 = vmatpush1.msra.mxu0 0.0
        %517 = vmatprep.subr.mxu0 0.0
        %518 = vmatpush1.msra.mxu0 0.0
        %519 = vmatprep.subr.mxu0 0.0
        %520 = vmatpush1.msra.mxu0 0.0
        %521 = vmatprep.mubr.f32.mxu0 0.0
        %522 = vmatmul.mubr.f32.gmra.mrb[0].mxu0 %v452
        %v523 = vpop.f32.mrb[0].mxu0
        %v524 = vadd.f32 0.0, %v523
        %v525 = vpop.f32.mrb[0].mxu0
        %526 = vmatprep.mubr.f32.mxu0 0.0
        %527 = vmatmul.mubr.f32.gmra.mrb[0].mxu0 %v455
        %v528 = vpop.f32.mrb[0].mxu0
        %v529 = vadd.f32 0.0, %v528
        %v530 = vpop.f32.mrb[0].mxu0
        %531 = vdwg.mxu0
        %533 = vset.pattern.permute.xlu0 0
        %534 = vperm.xlu0 %533, %v524
        %v535 = vpop.permute.xlu0 %534
        %538 = vset.pattern.permute.xlu0 0
        %539 = vperm.xlu0 %538, %v529
        %v540 = vpop.permute.xlu0 %539
        %v542 = vsub.f32 %v427, %v535
        %v543 = vsub.f32 %v428, %v535
        %v544 = vsub.f32 %v429, %v540
        %v545 = vsub.f32 %v430, %v540
        %v546 = vmul.f32 %v542, %v542
        %v547 = vmul.f32 %v543, %v543
        %v548 = vmul.f32 %v544, %v544
        %v549 = vmul.f32 %v545, %v545
        %v550 = vadd.f32 %v546, %v547
        %551 = vadd.xlane.f32.xlu0 %v550
        %v552 = vpop.xlane.xlu0 %551
        %v553 = vadd.f32 %v548, %v549
        %554 = vadd.xlane.f32.xlu0 %v553
        %v555 = vpop.xlane.xlu0 %554
        %556 = vmatprep.subr.mxu0 0.0
        %557 = vmatpush1.msra.mxu0 %v552
        %558 = vmatprep.subr.mxu0 0.0
        %559 = vmatpush1.msra.mxu0 %v555
        %560 = vmatprep.subr.mxu0 0.0
        %561 = vmatpush1.msra.mxu0 0.0
        %562 = vmatprep.subr.mxu0 0.0
        %563 = vmatpush1.msra.mxu0 0.0
        %564 = vmatprep.subr.mxu0 0.0
        %565 = vmatpush1.msra.mxu0 0.0
        %566 = vmatprep.subr.mxu0 0.0
        %567 = vmatpush1.msra.mxu0 0.0
        %568 = vmatprep.subr.mxu0 0.0
        %569 = vmatpush1.msra.mxu0 0.0
        %570 = vmatprep.subr.mxu0 0.0
        %571 = vmatpush1.msra.mxu0 0.0
        %572 = vmatprep.subr.mxu0 0.0
        %573 = vmatpush1.msra.mxu0 0.0
        %574 = vmatprep.subr.mxu0 0.0
        %575 = vmatpush1.msra.mxu0 0.0
        %576 = vmatprep.subr.mxu0 0.0
        %577 = vmatpush1.msra.mxu0 0.0
        %578 = vmatprep.subr.mxu0 0.0
        %579 = vmatpush1.msra.mxu0 0.0
        %580 = vmatprep.subr.mxu0 0.0
        %581 = vmatpush1.msra.mxu0 0.0
        %582 = vmatprep.subr.mxu0 0.0
        %583 = vmatpush1.msra.mxu0 0.0
        %584 = vmatprep.subr.mxu0 0.0
        %585 = vmatpush1.msra.mxu0 0.0
        %586 = vmatprep.subr.mxu0 0.0
        %587 = vmatpush1.msra.mxu0 0.0
        %588 = vmatprep.subr.mxu0 0.0
        %589 = vmatpush1.msra.mxu0 0.0
        %590 = vmatprep.subr.mxu0 0.0
        %591 = vmatpush1.msra.mxu0 0.0
        %592 = vmatprep.subr.mxu0 0.0
        %593 = vmatpush1.msra.mxu0 0.0
        %594 = vmatprep.subr.mxu0 0.0
        %595 = vmatpush1.msra.mxu0 0.0
        %596 = vmatprep.subr.mxu0 0.0
        %597 = vmatpush1.msra.mxu0 0.0
        %598 = vmatprep.subr.mxu0 0.0
        %599 = vmatpush1.msra.mxu0 0.0
        %600 = vmatprep.subr.mxu0 0.0
        %601 = vmatpush1.msra.mxu0 0.0
        %602 = vmatprep.subr.mxu0 0.0
        %603 = vmatpush1.msra.mxu0 0.0
        %604 = vmatprep.subr.mxu0 0.0
        %605 = vmatpush1.msra.mxu0 0.0
        %606 = vmatprep.subr.mxu0 0.0
        %607 = vmatpush1.msra.mxu0 0.0
        %608 = vmatprep.subr.mxu0 0.0
        %609 = vmatpush1.msra.mxu0 0.0
        %610 = vmatprep.subr.mxu0 0.0
        %611 = vmatpush1.msra.mxu0 0.0
        %612 = vmatprep.subr.mxu0 0.0
        %613 = vmatpush1.msra.mxu0 0.0
        %614 = vmatprep.subr.mxu0 0.0
        %615 = vmatpush1.msra.mxu0 0.0
        %616 = vmatprep.subr.mxu0 0.0
        %617 = vmatpush1.msra.mxu0 0.0
        %618 = vmatprep.subr.mxu0 0.0
        %619 = vmatpush1.msra.mxu0 0.0
        %620 = vmatprep.mubr.f32.mxu0 0.0
        %621 = vmatmul.mubr.f32.gmra.mrb[0].mxu0 %v452
        %v622 = vpop.f32.mrb[0].mxu0
        %v623 = vadd.f32 1e-05, %v622
        %v624 = vpop.f32.mrb[0].mxu0
        %625 = vmatprep.mubr.f32.mxu0 0.0
        %626 = vmatmul.mubr.f32.gmra.mrb[0].mxu0 %v455
        %v627 = vpop.f32.mrb[0].mxu0
        %v628 = vadd.f32 1e-05, %v627
        %v629 = vpop.f32.mrb[0].mxu0
        %630 = vdwg.mxu0
        %v631 = vrsqrt.pop %v623
        %v632 = vrsqrt.pop %v628
        %v633 = vmul.f32 %v631, %v440
        %v634 = vmul.f32 %v632, %v441
        %636 = vset.pattern.permute.xlu0 0
        %637 = vperm.xlu0 %636, %v633
        %v638 = vpop.permute.xlu0 %637
        %641 = vset.pattern.permute.xlu0 0
        %642 = vperm.xlu0 %641, %v634
        %v643 = vpop.permute.xlu0 %642
        %v645 = vmul.f32 %v542, %v638
        %v646 = vmul.f32 %v543, %v638
        %v647 = vmul.f32 %v544, %v643
        %v648 = vmul.f32 %v545, %v643
        %650 = vset.pattern.permute.xlu0 1
        %651 = vperm.xlu0 %650, %v440
        %v652 = vpop.permute.xlu0 %651
        %655 = vset.pattern.permute.xlu0 1
        %656 = vperm.xlu0 %655, %v441
        %v657 = vpop.permute.xlu0 %656
        %v659 = vadd.f32 %v645, %v652
        %v660 = vadd.f32 %v646, %v652
        %v661 = vadd.f32 %v647, %v657
        %v662 = vadd.f32 %v648, %v657
        %v663 = vxor.u32 %v659, 2147483648
        %v664 = vxor.u32 %v660, 2147483648
        %v665 = vxor.u32 %v661, 2147483648
        %v666 = vxor.u32 %v662, 2147483648
        %v667 = vmul.f32 %v663, 1.442695
        %v668 = vpow.pop %v667
        %v669 = vmul.f32 %v664, 1.442695
        %v670 = vpow.pop %v669
        %v671 = vmul.f32 %v665, 1.442695
        %v672 = vpow.pop %v671
        %v673 = vmul.f32 %v666, 1.442695
        %v674 = vpow.pop %v673
        %v675 = vadd.f32 %v668, 1.0
        %v676 = vadd.f32 %v670, 1.0
        %v677 = vadd.f32 %v672, 1.0
        %v678 = vadd.f32 %v674, 1.0
        %v679 = vrcp.pop %v675
        %v680 = vmul.f32 1.0, %v679
        %v681 = vrcp.pop %v676
        %v682 = vmul.f32 1.0, %v681
        %v683 = vrcp.pop %v677
        %v684 = vmul.f32 1.0, %v683
        %v685 = vrcp.pop %v678
        %v686 = vmul.f32 1.0, %v685
        %v687 = vmul.f32 %v659, %v680
        %v688 = vmul.f32 %v660, %v682
        %v689 = vmul.f32 %v661, %v684
        %v690 = vmul.f32 %v662, %v686
        %691 = vrot.lane.b32.xlu0 %v687, 1
        %v692 = vpop.permute.xlu0 %691
        %693 = vrot.lane.b32.xlu0 %v689, 1
        %v694 = vpop.permute.xlu0 %693
        %695 = vrot.lane.b32.xlu0 %v688, 1
        %v696 = vpop.permute.xlu0 %695
        %697 = vrot.lane.b32.xlu0 %v690, 1
        %v698 = vpop.permute.xlu0 %697
        %vm699 = vcmp.lt.s32.totalorder %v434, 1
        %v700 = vsel %vm699, %v692, %v696
        %v701 = vsel %vm699, %v694, %v698
        %v702 = vsel %vm699, %v696, %v692
        %v703 = vsel %vm699, %v698, %v694
        %v704 = vsel %vm436, 1, 0
        %v705 = vsel %vm437, 1, 0
        %vm706 = vcmp.eq.s32.totalorder %v704, 1
        %vm707 = vcmp.eq.s32.totalorder %v705, 1
        %v708 = vsel %vm706, %v702, 0.0
        %v709 = vsel %vm707, %v700, 0.0
        %v710 = vsel %vm706, %v703, 0.0
        %v711 = vsel %vm707, %v701, 0.0
        %712 = vrot.lane.b32.xlu0 %v687, 127
        %v713 = vpop.permute.xlu0 %712
        %714 = vrot.lane.b32.xlu0 %v689, 127
        %v715 = vpop.permute.xlu0 %714
        %716 = vrot.lane.b32.xlu0 %v688, 127
        %v717 = vpop.permute.xlu0 %716
        %718 = vrot.lane.b32.xlu0 %v690, 127
        %v719 = vpop.permute.xlu0 %718
        %vm720 = vcmp.lt.s32.totalorder %v434, 127
        %v721 = vsel %vm720, %v713, %v717
        %v722 = vsel %vm720, %v715, %v719
        %v723 = vsel %vm720, %v717, %v713
        %v724 = vsel %vm720, %v719, %v715
        %v725 = vsel %vm438, 1, 0
        %v726 = vsel %vm439, 1, 0
        %vm727 = vcmp.eq.s32.totalorder %v725, 1
        %vm728 = vcmp.eq.s32.totalorder %v726, 1
        %v729 = vsel %vm727, %v721, 0.0
        %v730 = vsel %vm728, %v723, 0.0
        %v731 = vsel %vm727, %v722, 0.0
        %v732 = vsel %vm728, %v724, 0.0
        %s733 = scalar_lea.vmem [#allocation8], 8
        %v734 = vld [vmem:[%s733] sm:$0xf]
        %v735 = vld [vmem:[%s733 + $0x4] sm:$0xf]
        %v736 = vpack.c.bf16 %v689, %v687
        %v737 = vpack.c.bf16 %v690, %v688
        %v738 = vld [vmem:[#allocation8] sm:$0xf]
        %v739 = vld [vmem:[#allocation8 + $0x4] sm:$0xf]
        %v740 = vpack.c.bf16 %v710, %v708
        %v741 = vpack.c.bf16 %v711, %v709
        %v744 = vunpack.c.l.b16 %v738
        %v745 = vunpack.c.l.b16 %v739
        %v746 = vpack.c.b16 %v745, %v744
        %v748 = vsel %vm450, %v746, 0
        %750 = vmatprep.subr.bf16.mxu0 %v741
        %751 = vmatpush1.bf16.msra.mxu0 %v740
        %752 = vmatprep.subr.bf16.mxu0 0
        %753 = vmatpush1.bf16.msra.mxu0 0
        %754 = vmatprep.subr.bf16.mxu0 0
        %755 = vmatpush1.bf16.msra.mxu0 0
        %756 = vmatprep.subr.bf16.mxu0 0
        %757 = vmatpush1.bf16.msra.mxu0 0
        %758 = vmatprep.subr.bf16.mxu0 0
        %759 = vmatpush1.bf16.msra.mxu0 0
        %760 = vmatprep.subr.bf16.mxu0 0
        %761 = vmatpush1.bf16.msra.mxu0 0
        %762 = vmatprep.subr.bf16.mxu0 0
        %763 = vmatpush1.bf16.msra.mxu0 0
        %764 = vmatprep.subr.bf16.mxu0 0
        %765 = vmatpush1.bf16.msra.mxu0 0
        %766 = vmatprep.subr.bf16.mxu0 0
        %767 = vmatpush1.bf16.msra.mxu0 0
        %768 = vmatprep.subr.bf16.mxu0 0
        %769 = vmatpush1.bf16.msra.mxu0 0
        %770 = vmatprep.subr.bf16.mxu0 0
        %771 = vmatpush1.bf16.msra.mxu0 0
        %772 = vmatprep.subr.bf16.mxu0 0
        %773 = vmatpush1.bf16.msra.mxu0 0
        %774 = vmatprep.subr.bf16.mxu0 0
        %775 = vmatpush1.bf16.msra.mxu0 0
        %776 = vmatprep.subr.bf16.mxu0 0
        %777 = vmatpush1.bf16.msra.mxu0 0
        %778 = vmatprep.subr.bf16.mxu0 0
        %779 = vmatpush1.bf16.msra.mxu0 0
        %780 = vmatprep.subr.bf16.mxu0 0
        %781 = vmatpush1.bf16.msra.mxu0 0
        %782 = vmatprep.mubr.bf16.mxu0 0
        %783 = vmatmul.mubr.bf16.gmra.mrb[0].mxu0 %v748
        %v784 = vpop.f32.mrb[0].mxu0
        %v785 = vadd.f32 0.0, %v784
        %v786 = vpop.f32.mrb[0].mxu0
        %v787 = vadd.f32 0.0, %v786
        %v788 = vpop.f32.mrb[0].mxu0
        %v789 = vadd.f32 0.0, %v788
        %v790 = vpop.f32.mrb[0].mxu0
        %v791 = vadd.f32 0.0, %v790
        %792 = vdwg.mxu0
        %v795 = vunpack.c.l.b16 %v734
        %v796 = vunpack.c.l.b16 %v735
        %v797 = vpack.c.b16 %v796, %v795
        %v799 = vsel %vm450, %v797, 0
        %801 = vmatprep.subr.bf16.mxu0 %v737
        %802 = vmatpush1.bf16.msra.mxu0 %v736
        %803 = vmatprep.subr.bf16.mxu0 0
        %804 = vmatpush1.bf16.msra.mxu0 0
        %805 = vmatprep.subr.bf16.mxu0 0
        %806 = vmatpush1.bf16.msra.mxu0 0
        %807 = vmatprep.subr.bf16.mxu0 0
        %808 = vmatpush1.bf16.msra.mxu0 0
        %809 = vmatprep.subr.bf16.mxu0 0
        %810 = vmatpush1.bf16.msra.mxu0 0
        %811 = vmatprep.subr.bf16.mxu0 0
        %812 = vmatpush1.bf16.msra.mxu0 0
        %813 = vmatprep.subr.bf16.mxu0 0
        %814 = vmatpush1.bf16.msra.mxu0 0
        %815 = vmatprep.subr.bf16.mxu0 0
        %816 = vmatpush1.bf16.msra.mxu0 0
        %817 = vmatprep.subr.bf16.mxu0 0
        %818 = vmatpush1.bf16.msra.mxu0 0
        %819 = vmatprep.subr.bf16.mxu0 0
        %820 = vmatpush1.bf16.msra.mxu0 0
        %821 = vmatprep.subr.bf16.mxu0 0
        %822 = vmatpush1.bf16.msra.mxu0 0
        %823 = vmatprep.subr.bf16.mxu0 0
        %824 = vmatpush1.bf16.msra.mxu0 0
        %825 = vmatprep.subr.bf16.mxu0 0
        %826 = vmatpush1.bf16.msra.mxu0 0
        %827 = vmatprep.subr.bf16.mxu0 0
        %828 = vmatpush1.bf16.msra.mxu0 0
        %829 = vmatprep.subr.bf16.mxu0 0
        %830 = vmatpush1.bf16.msra.mxu0 0
        %831 = vmatprep.subr.bf16.mxu0 0
        %832 = vmatpush1.bf16.msra.mxu0 0
        %833 = vmatprep.mubr.bf16.mxu0 0
        %834 = vmatmul.mubr.bf16.gmra.mrb[0].mxu0 %v799
        %v835 = vpop.f32.mrb[0].mxu0
        %v836 = vadd.f32 %v785, %v835
        %v837 = vpop.f32.mrb[0].mxu0
        %v838 = vadd.f32 %v787, %v837
        %v839 = vpop.f32.mrb[0].mxu0
        %v840 = vadd.f32 %v789, %v839
        %v841 = vpop.f32.mrb[0].mxu0
        %v842 = vadd.f32 %v791, %v841
        %843 = vdwg.mxu0
        %s844 = scalar_lea.vmem [#allocation8], 16
        %v845 = vld [vmem:[%s844] sm:$0xf]
        %v846 = vld [vmem:[%s844 + $0x4] sm:$0xf]
        %v847 = vpack.c.bf16 %v731, %v729
        %v848 = vpack.c.bf16 %v732, %v730
        %v851 = vunpack.c.l.b16 %v845
        %v852 = vunpack.c.l.b16 %v846
        %v853 = vpack.c.b16 %v852, %v851
        %v855 = vsel %vm450, %v853, 0
        %857 = vmatprep.subr.bf16.mxu0 %v848
        %858 = vmatpush1.bf16.msra.mxu0 %v847
        %859 = vmatprep.subr.bf16.mxu0 0
        %860 = vmatpush1.bf16.msra.mxu0 0
        %861 = vmatprep.subr.bf16.mxu0 0
        %862 = vmatpush1.bf16.msra.mxu0 0
        %863 = vmatprep.subr.bf16.mxu0 0
        %864 = vmatpush1.bf16.msra.mxu0 0
        %865 = vmatprep.subr.bf16.mxu0 0
        %866 = vmatpush1.bf16.msra.mxu0 0
        %867 = vmatprep.subr.bf16.mxu0 0
        %868 = vmatpush1.bf16.msra.mxu0 0
        %869 = vmatprep.subr.bf16.mxu0 0
        %870 = vmatpush1.bf16.msra.mxu0 0
        %871 = vmatprep.subr.bf16.mxu0 0
        %872 = vmatpush1.bf16.msra.mxu0 0
        %873 = vmatprep.subr.bf16.mxu0 0
        %874 = vmatpush1.bf16.msra.mxu0 0
        %875 = vmatprep.subr.bf16.mxu0 0
        %876 = vmatpush1.bf16.msra.mxu0 0
        %877 = vmatprep.subr.bf16.mxu0 0
        %878 = vmatpush1.bf16.msra.mxu0 0
        %879 = vmatprep.subr.bf16.mxu0 0
        %880 = vmatpush1.bf16.msra.mxu0 0
        %881 = vmatprep.subr.bf16.mxu0 0
        %882 = vmatpush1.bf16.msra.mxu0 0
        %883 = vmatprep.subr.bf16.mxu0 0
        %884 = vmatpush1.bf16.msra.mxu0 0
        %885 = vmatprep.subr.bf16.mxu0 0
        %886 = vmatpush1.bf16.msra.mxu0 0
        %887 = vmatprep.subr.bf16.mxu0 0
        %888 = vmatpush1.bf16.msra.mxu0 0
        %889 = vmatprep.mubr.bf16.mxu0 0
        %890 = vmatmul.mubr.bf16.gmra.mrb[0].mxu0 %v855
        %v891 = vpop.f32.mrb[0].mxu0
        %v892 = vadd.f32 0.0, %v891
        %v893 = vpop.f32.mrb[0].mxu0
        %v894 = vadd.f32 0.0, %v893
        %v895 = vpop.f32.mrb[0].mxu0
        %v896 = vadd.f32 0.0, %v895
        %v897 = vpop.f32.mrb[0].mxu0
        %v898 = vadd.f32 0.0, %v897
        %899 = vdwg.mxu0
        %v900 = vadd.f32 %v836, %v892
        %v901 = vadd.f32 %v838, %v894
        %v902 = vadd.f32 %v840, %v896
        %v903 = vadd.f32 %v842, %v898
        %905 = vset.pattern.permute.xlu0 0
        %906 = vperm.xlu0 %905, %v431
        %v907 = vpop.permute.xlu0 %906
        %910 = vset.pattern.permute.xlu0 0
        %911 = vperm.xlu0 %910, %v432
        %v912 = vpop.permute.xlu0 %911
        %v914 = vadd.f32 %v900, %v907
        %v915 = vadd.f32 %v901, %v907
        %v916 = vadd.f32 %v902, %v912
        %v917 = vadd.f32 %v903, %v912
        %v918 = vld [vmem:[#allocation10] sm:$0xff]
        %v919 = vld [vmem:[#allocation10 + $0x8] sm:$0xff]
        %v920 = vld [vmem:[#allocation11] sm:$0xff]
        %v921 = vld [vmem:[#allocation11 + $0x8] sm:$0xff]
        %v922 = vadd.f32 %v914, %v915
        %923 = vadd.xlane.f32.xlu0 %v922
        %v924 = vpop.xlane.xlu0 %923
        %v925 = vadd.f32 %v916, %v917
        %926 = vadd.xlane.f32.xlu0 %v925
        %v927 = vpop.xlane.xlu0 %926
        %v929 = vsel %vm450, %v920, 0
        %v932 = vsel %vm450, %v921, 0
        %934 = vmatprep.subr.mxu0 0.0
        %935 = vmatpush1.msra.mxu0 %v924
        %936 = vmatprep.subr.mxu0 0.0
        %937 = vmatpush1.msra.mxu0 %v927
        %938 = vmatprep.subr.mxu0 0.0
        %939 = vmatpush1.msra.mxu0 0.0
        %940 = vmatprep.subr.mxu0 0.0
        %941 = vmatpush1.msra.mxu0 0.0
        %942 = vmatprep.subr.mxu0 0.0
        %943 = vmatpush1.msra.mxu0 0.0
        %944 = vmatprep.subr.mxu0 0.0
        %945 = vmatpush1.msra.mxu0 0.0
        %946 = vmatprep.subr.mxu0 0.0
        %947 = vmatpush1.msra.mxu0 0.0
        %948 = vmatprep.subr.mxu0 0.0
        %949 = vmatpush1.msra.mxu0 0.0
        %950 = vmatprep.subr.mxu0 0.0
        %951 = vmatpush1.msra.mxu0 0.0
        %952 = vmatprep.subr.mxu0 0.0
        %953 = vmatpush1.msra.mxu0 0.0
        %954 = vmatprep.subr.mxu0 0.0
        %955 = vmatpush1.msra.mxu0 0.0
        %956 = vmatprep.subr.mxu0 0.0
        %957 = vmatpush1.msra.mxu0 0.0
        %958 = vmatprep.subr.mxu0 0.0
        %959 = vmatpush1.msra.mxu0 0.0
        %960 = vmatprep.subr.mxu0 0.0
        %961 = vmatpush1.msra.mxu0 0.0
        %962 = vmatprep.subr.mxu0 0.0
        %963 = vmatpush1.msra.mxu0 0.0
        %964 = vmatprep.subr.mxu0 0.0
        %965 = vmatpush1.msra.mxu0 0.0
        %966 = vmatprep.subr.mxu0 0.0
        %967 = vmatpush1.msra.mxu0 0.0
        %968 = vmatprep.subr.mxu0 0.0
        %969 = vmatpush1.msra.mxu0 0.0
        %970 = vmatprep.subr.mxu0 0.0
        %971 = vmatpush1.msra.mxu0 0.0
        %972 = vmatprep.subr.mxu0 0.0
        %973 = vmatpush1.msra.mxu0 0.0
        %974 = vmatprep.subr.mxu0 0.0
        %975 = vmatpush1.msra.mxu0 0.0
        %976 = vmatprep.subr.mxu0 0.0
        %977 = vmatpush1.msra.mxu0 0.0
        %978 = vmatprep.subr.mxu0 0.0
        %979 = vmatpush1.msra.mxu0 0.0
        %980 = vmatprep.subr.mxu0 0.0
        %981 = vmatpush1.msra.mxu0 0.0
        %982 = vmatprep.subr.mxu0 0.0
        %983 = vmatpush1.msra.mxu0 0.0
        %984 = vmatprep.subr.mxu0 0.0
        %985 = vmatpush1.msra.mxu0 0.0
        %986 = vmatprep.subr.mxu0 0.0
        %987 = vmatpush1.msra.mxu0 0.0
        %988 = vmatprep.subr.mxu0 0.0
        %989 = vmatpush1.msra.mxu0 0.0
        %990 = vmatprep.subr.mxu0 0.0
        %991 = vmatpush1.msra.mxu0 0.0
        %992 = vmatprep.subr.mxu0 0.0
        %993 = vmatpush1.msra.mxu0 0.0
        %994 = vmatprep.subr.mxu0 0.0
        %995 = vmatpush1.msra.mxu0 0.0
        %996 = vmatprep.subr.mxu0 0.0
        %997 = vmatpush1.msra.mxu0 0.0
        %998 = vmatprep.mubr.f32.mxu0 0.0
        %999 = vmatmul.mubr.f32.gmra.mrb[0].mxu0 %v929
        %v1000 = vpop.f32.mrb[0].mxu0
        %v1001 = vadd.f32 0.0, %v1000
        %v1002 = vpop.f32.mrb[0].mxu0
        %1003 = vmatprep.mubr.f32.mxu0 0.0
        %1004 = vmatmul.mubr.f32.gmra.mrb[0].mxu0 %v932
        %v1005 = vpop.f32.mrb[0].mxu0
        %v1006 = vadd.f32 0.0, %v1005
        %v1007 = vpop.f32.mrb[0].mxu0
        %1008 = vdwg.mxu0
        %1010 = vset.pattern.permute.xlu0 0
        %1011 = vperm.xlu0 %1010, %v1001
        %v1012 = vpop.permute.xlu0 %1011
        %1015 = vset.pattern.permute.xlu0 0
        %1016 = vperm.xlu0 %1015, %v1006
        %v1017 = vpop.permute.xlu0 %1016
        %v1019 = vsub.f32 %v914, %v1012
        %v1020 = vsub.f32 %v915, %v1012
        %v1021 = vsub.f32 %v916, %v1017
        %v1022 = vsub.f32 %v917, %v1017
        %v1023 = vmul.f32 %v1019, %v1019
        %v1024 = vmul.f32 %v1020, %v1020
        %v1025 = vmul.f32 %v1021, %v1021
        %v1026 = vmul.f32 %v1022, %v1022
        %v1027 = vadd.f32 %v1023, %v1024
        %1028 = vadd.xlane.f32.xlu0 %v1027
        %v1029 = vpop.xlane.xlu0 %1028
        %v1030 = vadd.f32 %v1025, %v1026
        %1031 = vadd.xlane.f32.xlu0 %v1030
        %v1032 = vpop.xlane.xlu0 %1031
        %1033 = vmatprep.subr.mxu0 0.0
        %1034 = vmatpush1.msra.mxu0 %v1029
        %1035 = vmatprep.subr.mxu0 0.0
        %1036 = vmatpush1.msra.mxu0 %v1032
        %1037 = vmatprep.subr.mxu0 0.0
        %1038 = vmatpush1.msra.mxu0 0.0
        %1039 = vmatprep.subr.mxu0 0.0
        %1040 = vmatpush1.msra.mxu0 0.0
        %1041 = vmatprep.subr.mxu0 0.0
        %1042 = vmatpush1.msra.mxu0 0.0
        %1043 = vmatprep.subr.mxu0 0.0
        %1044 = vmatpush1.msra.mxu0 0.0
        %1045 = vmatprep.subr.mxu0 0.0
        %1046 = vmatpush1.msra.mxu0 0.0
        %1047 = vmatprep.subr.mxu0 0.0
        %1048 = vmatpush1.msra.mxu0 0.0
        %1049 = vmatprep.subr.mxu0 0.0
        %1050 = vmatpush1.msra.mxu0 0.0
        %1051 = vmatprep.subr.mxu0 0.0
        %1052 = vmatpush1.msra.mxu0 0.0
        %1053 = vmatprep.subr.mxu0 0.0
        %1054 = vmatpush1.msra.mxu0 0.0
        %1055 = vmatprep.subr.mxu0 0.0
        %1056 = vmatpush1.msra.mxu0 0.0
        %1057 = vmatprep.subr.mxu0 0.0
        %1058 = vmatpush1.msra.mxu0 0.0
        %1059 = vmatprep.subr.mxu0 0.0
        %1060 = vmatpush1.msra.mxu0 0.0
        %1061 = vmatprep.subr.mxu0 0.0
        %1062 = vmatpush1.msra.mxu0 0.0
        %1063 = vmatprep.subr.mxu0 0.0
        %1064 = vmatpush1.msra.mxu0 0.0
        %1065 = vmatprep.subr.mxu0 0.0
        %1066 = vmatpush1.msra.mxu0 0.0
        %1067 = vmatprep.subr.mxu0 0.0
        %1068 = vmatpush1.msra.mxu0 0.0
        %1069 = vmatprep.subr.mxu0 0.0
        %1070 = vmatpush1.msra.mxu0 0.0
        %1071 = vmatprep.subr.mxu0 0.0
        %1072 = vmatpush1.msra.mxu0 0.0
        %1073 = vmatprep.subr.mxu0 0.0
        %1074 = vmatpush1.msra.mxu0 0.0
        %1075 = vmatprep.subr.mxu0 0.0
        %1076 = vmatpush1.msra.mxu0 0.0
        %1077 = vmatprep.subr.mxu0 0.0
        %1078 = vmatpush1.msra.mxu0 0.0
        %1079 = vmatprep.subr.mxu0 0.0
        %1080 = vmatpush1.msra.mxu0 0.0
        %1081 = vmatprep.subr.mxu0 0.0
        %1082 = vmatpush1.msra.mxu0 0.0
        %1083 = vmatprep.subr.mxu0 0.0
        %1084 = vmatpush1.msra.mxu0 0.0
        %1085 = vmatprep.subr.mxu0 0.0
        %1086 = vmatpush1.msra.mxu0 0.0
        %1087 = vmatprep.subr.mxu0 0.0
        %1088 = vmatpush1.msra.mxu0 0.0
        %1089 = vmatprep.subr.mxu0 0.0
        %1090 = vmatpush1.msra.mxu0 0.0
        %1091 = vmatprep.subr.mxu0 0.0
        %1092 = vmatpush1.msra.mxu0 0.0
        %1093 = vmatprep.subr.mxu0 0.0
        %1094 = vmatpush1.msra.mxu0 0.0
        %1095 = vmatprep.subr.mxu0 0.0
        %1096 = vmatpush1.msra.mxu0 0.0
        %1097 = vmatprep.mubr.f32.mxu0 0.0
        %1098 = vmatmul.mubr.f32.gmra.mrb[0].mxu0 %v929
        %v1099 = vpop.f32.mrb[0].mxu0
        %v1100 = vadd.f32 1e-05, %v1099
        %v1101 = vpop.f32.mrb[0].mxu0
        %1102 = vmatprep.mubr.f32.mxu0 0.0
        %1103 = vmatmul.mubr.f32.gmra.mrb[0].mxu0 %v932
        %v1104 = vpop.f32.mrb[0].mxu0
        %v1105 = vadd.f32 1e-05, %v1104
        %v1106 = vpop.f32.mrb[0].mxu0
        %1107 = vdwg.mxu0
        %v1108 = vrsqrt.pop %v1100
        %v1109 = vrsqrt.pop %v1105
        %v1110 = vmul.f32 %v1108, %v918
        %v1111 = vmul.f32 %v1109, %v919
        %1113 = vset.pattern.permute.xlu0 0
        %1114 = vperm.xlu0 %1113, %v1110
        %v1115 = vpop.permute.xlu0 %1114
        %1118 = vset.pattern.permute.xlu0 0
        %1119 = vperm.xlu0 %1118, %v1111
        %v1120 = vpop.permute.xlu0 %1119
        %v1122 = vmul.f32 %v1019, %v1115
        %v1123 = vmul.f32 %v1020, %v1115
        %v1124 = vmul.f32 %v1021, %v1120
        %v1125 = vmul.f32 %v1022, %v1120
        %1127 = vset.pattern.permute.xlu0 1
        %1128 = vperm.xlu0 %1127, %v918
        %v1129 = vpop.permute.xlu0 %1128
        %1132 = vset.pattern.permute.xlu0 1
        %1133 = vperm.xlu0 %1132, %v919
        %v1134 = vpop.permute.xlu0 %1133
        %v1136 = vadd.f32 %v1122, %v1129
        %v1137 = vadd.f32 %v1123, %v1129
        %v1138 = vadd.f32 %v1124, %v1134
        %v1139 = vadd.f32 %v1125, %v1134
        %v1140 = vxor.u32 %v1136, 2147483648
        %v1141 = vxor.u32 %v1137, 2147483648
        %v1142 = vxor.u32 %v1138, 2147483648
        %v1143 = vxor.u32 %v1139, 2147483648
        %v1144 = vmul.f32 %v1140, 1.442695
        %v1145 = vpow.pop %v1144
        %v1146 = vmul.f32 %v1141, 1.442695
        %v1147 = vpow.pop %v1146
        %v1148 = vmul.f32 %v1142, 1.442695
        %v1149 = vpow.pop %v1148
        %v1150 = vmul.f32 %v1143, 1.442695
        %v1151 = vpow.pop %v1150
        %v1152 = vadd.f32 %v1145, 1.0
        %v1153 = vadd.f32 %v1147, 1.0
        %v1154 = vadd.f32 %v1149, 1.0
        %v1155 = vadd.f32 %v1151, 1.0
        %v1156 = vrcp.pop %v1152
        %v1157 = vmul.f32 1.0, %v1156
        %v1158 = vrcp.pop %v1153
        %v1159 = vmul.f32 1.0, %v1158
        %v1160 = vrcp.pop %v1154
        %v1161 = vmul.f32 1.0, %v1160
        %v1162 = vrcp.pop %v1155
        %v1163 = vmul.f32 1.0, %v1162
        %v1164 = vmul.f32 %v1136, %v1157
        %v1165 = vmul.f32 %v1137, %v1159
        %v1166 = vmul.f32 %v1138, %v1161
        %v1167 = vmul.f32 %v1139, %v1163
        %1168 = vrot.lane.b32.xlu0 %v1164, 1
        %v1169 = vpop.permute.xlu0 %1168
        %1170 = vrot.lane.b32.xlu0 %v1166, 1
        %v1171 = vpop.permute.xlu0 %1170
        %1172 = vrot.lane.b32.xlu0 %v1165, 1
        %v1173 = vpop.permute.xlu0 %1172
        %1174 = vrot.lane.b32.xlu0 %v1167, 1
        %v1175 = vpop.permute.xlu0 %1174
        %v1176 = vsel %vm699, %v1169, %v1173
        %v1177 = vsel %vm699, %v1171, %v1175
        %v1178 = vsel %vm699, %v1173, %v1169
        %v1179 = vsel %vm699, %v1175, %v1171
        %v1180 = vsel %vm706, %v1178, 0.0
        %v1181 = vsel %vm707, %v1176, 0.0
        %v1182 = vsel %vm706, %v1179, 0.0
        %v1183 = vsel %vm707, %v1177, 0.0
        %1184 = vrot.lane.b32.xlu0 %v1164, 127
        %v1185 = vpop.permute.xlu0 %1184
        %1186 = vrot.lane.b32.xlu0 %v1166, 127
        %v1187 = vpop.permute.xlu0 %1186
        %1188 = vrot.lane.b32.xlu0 %v1165, 127
        %v1189 = vpop.permute.xlu0 %1188
        %1190 = vrot.lane.b32.xlu0 %v1167, 127
        %v1191 = vpop.permute.xlu0 %1190
        %v1192 = vsel %vm720, %v1185, %v1189
        %v1193 = vsel %vm720, %v1187, %v1191
        %v1194 = vsel %vm720, %v1189, %v1185
        %v1195 = vsel %vm720, %v1191, %v1187
        %v1196 = vsel %vm727, %v1192, 0.0
        %v1197 = vsel %vm728, %v1194, 0.0
        %v1198 = vsel %vm727, %v1193, 0.0
        %v1199 = vsel %vm728, %v1195, 0.0
        %s1200 = scalar_lea.vmem [#allocation13], 8
        %v1201 = vld [vmem:[%s1200] sm:$0xf]
        %v1202 = vld [vmem:[%s1200 + $0x4] sm:$0xf]
        %v1203 = vpack.c.bf16 %v1166, %v1164
        %v1204 = vpack.c.bf16 %v1167, %v1165
        %v1205 = vld [vmem:[#allocation13] sm:$0xf]
        %v1206 = vld [vmem:[#allocation13 + $0x4] sm:$0xf]
        %v1207 = vpack.c.bf16 %v1182, %v1180
        %v1208 = vpack.c.bf16 %v1183, %v1181
        %v1211 = vunpack.c.l.b16 %v1205
        %v1212 = vunpack.c.l.b16 %v1206
        %v1213 = vpack.c.b16 %v1212, %v1211
        %v1215 = vsel %vm450, %v1213, 0
        %1217 = vmatprep.subr.bf16.mxu0 %v1208
        %1218 = vmatpush1.bf16.msra.mxu0 %v1207
        %1219 = vmatprep.subr.bf16.mxu0 0
        %1220 = vmatpush1.bf16.msra.mxu0 0
        %1221 = vmatprep.subr.bf16.mxu0 0
        %1222 = vmatpush1.bf16.msra.mxu0 0
        %1223 = vmatprep.subr.bf16.mxu0 0
        %1224 = vmatpush1.bf16.msra.mxu0 0
        %1225 = vmatprep.subr.bf16.mxu0 0
        %1226 = vmatpush1.bf16.msra.mxu0 0
        %1227 = vmatprep.subr.bf16.mxu0 0
        %1228 = vmatpush1.bf16.msra.mxu0 0
        %1229 = vmatprep.subr.bf16.mxu0 0
        %1230 = vmatpush1.bf16.msra.mxu0 0
        %1231 = vmatprep.subr.bf16.mxu0 0
        %1232 = vmatpush1.bf16.msra.mxu0 0
        %1233 = vmatprep.subr.bf16.mxu0 0
        %1234 = vmatpush1.bf16.msra.mxu0 0
        %1235 = vmatprep.subr.bf16.mxu0 0
        %1236 = vmatpush1.bf16.msra.mxu0 0
        %1237 = vmatprep.subr.bf16.mxu0 0
        %1238 = vmatpush1.bf16.msra.mxu0 0
        %1239 = vmatprep.subr.bf16.mxu0 0
        %1240 = vmatpush1.bf16.msra.mxu0 0
        %1241 = vmatprep.subr.bf16.mxu0 0
        %1242 = vmatpush1.bf16.msra.mxu0 0
        %1243 = vmatprep.subr.bf16.mxu0 0
        %1244 = vmatpush1.bf16.msra.mxu0 0
        %1245 = vmatprep.subr.bf16.mxu0 0
        %1246 = vmatpush1.bf16.msra.mxu0 0
        %1247 = vmatprep.subr.bf16.mxu0 0
        %1248 = vmatpush1.bf16.msra.mxu0 0
        %1249 = vmatprep.mubr.bf16.mxu0 0
        %1250 = vmatmul.mubr.bf16.gmra.mrb[0].mxu0 %v1215
        %v1251 = vpop.f32.mrb[0].mxu0
        %v1252 = vadd.f32 0.0, %v1251
        %v1253 = vpop.f32.mrb[0].mxu0
        %v1254 = vadd.f32 0.0, %v1253
        %v1255 = vpop.f32.mrb[0].mxu0
        %v1256 = vadd.f32 0.0, %v1255
        %v1257 = vpop.f32.mrb[0].mxu0
        %v1258 = vadd.f32 0.0, %v1257
        %1259 = vdwg.mxu0
        %v1262 = vunpack.c.l.b16 %v1201
        %v1263 = vunpack.c.l.b16 %v1202
        %v1264 = vpack.c.b16 %v1263, %v1262
        %v1266 = vsel %vm450, %v1264, 0
        %1268 = vmatprep.subr.bf16.mxu0 %v1204
        %1269 = vmatpush1.bf16.msra.mxu0 %v1203
        %1270 = vmatprep.subr.bf16.mxu0 0
        %1271 = vmatpush1.bf16.msra.mxu0 0
        %1272 = vmatprep.subr.bf16.mxu0 0
        %1273 = vmatpush1.bf16.msra.mxu0 0
        %1274 = vmatprep.subr.bf16.mxu0 0
        %1275 = vmatpush1.bf16.msra.mxu0 0
        %1276 = vmatprep.subr.bf16.mxu0 0
        %1277 = vmatpush1.bf16.msra.mxu0 0
        %1278 = vmatprep.subr.bf16.mxu0 0
        %1279 = vmatpush1.bf16.msra.mxu0 0
        %1280 = vmatprep.subr.bf16.mxu0 0
        %1281 = vmatpush1.bf16.msra.mxu0 0
        %1282 = vmatprep.subr.bf16.mxu0 0
        %1283 = vmatpush1.bf16.msra.mxu0 0
        %1284 = vmatprep.subr.bf16.mxu0 0
        %1285 = vmatpush1.bf16.msra.mxu0 0
        %1286 = vmatprep.subr.bf16.mxu0 0
        %1287 = vmatpush1.bf16.msra.mxu0 0
        %1288 = vmatprep.subr.bf16.mxu0 0
        %1289 = vmatpush1.bf16.msra.mxu0 0
        %1290 = vmatprep.subr.bf16.mxu0 0
        %1291 = vmatpush1.bf16.msra.mxu0 0
        %1292 = vmatprep.subr.bf16.mxu0 0
        %1293 = vmatpush1.bf16.msra.mxu0 0
        %1294 = vmatprep.subr.bf16.mxu0 0
        %1295 = vmatpush1.bf16.msra.mxu0 0
        %1296 = vmatprep.subr.bf16.mxu0 0
        %1297 = vmatpush1.bf16.msra.mxu0 0
        %1298 = vmatprep.subr.bf16.mxu0 0
        %1299 = vmatpush1.bf16.msra.mxu0 0
        %1300 = vmatprep.mubr.bf16.mxu0 0
        %1301 = vmatmul.mubr.bf16.gmra.mrb[0].mxu0 %v1266
        %v1302 = vpop.f32.mrb[0].mxu0
        %v1303 = vadd.f32 %v1252, %v1302
        %v1304 = vpop.f32.mrb[0].mxu0
        %v1305 = vadd.f32 %v1254, %v1304
        %v1306 = vpop.f32.mrb[0].mxu0
        %v1307 = vadd.f32 %v1256, %v1306
        %v1308 = vpop.f32.mrb[0].mxu0
        %v1309 = vadd.f32 %v1258, %v1308
        %1310 = vdwg.mxu0
        %s1311 = scalar_lea.vmem [#allocation13], 16
        %v1312 = vld [vmem:[%s1311] sm:$0xf]
        %v1313 = vld [vmem:[%s1311 + $0x4] sm:$0xf]
        %v1314 = vpack.c.bf16 %v1198, %v1196
        %v1315 = vpack.c.bf16 %v1199, %v1197
        %v1318 = vunpack.c.l.b16 %v1312
        %v1319 = vunpack.c.l.b16 %v1313
        %v1320 = vpack.c.b16 %v1319, %v1318
        %v1322 = vsel %vm450, %v1320, 0
        %1324 = vmatprep.subr.bf16.mxu0 %v1315
        %1325 = vmatpush1.bf16.msra.mxu0 %v1314
        %1326 = vmatprep.subr.bf16.mxu0 0
        %1327 = vmatpush1.bf16.msra.mxu0 0
        %1328 = vmatprep.subr.bf16.mxu0 0
        %1329 = vmatpush1.bf16.msra.mxu0 0
        %1330 = vmatprep.subr.bf16.mxu0 0
        %1331 = vmatpush1.bf16.msra.mxu0 0
        %1332 = vmatprep.subr.bf16.mxu0 0
        %1333 = vmatpush1.bf16.msra.mxu0 0
        %1334 = vmatprep.subr.bf16.mxu0 0
        %1335 = vmatpush1.bf16.msra.mxu0 0
        %1336 = vmatprep.subr.bf16.mxu0 0
        %1337 = vmatpush1.bf16.msra.mxu0 0
        %1338 = vmatprep.subr.bf16.mxu0 0
        %1339 = vmatpush1.bf16.msra.mxu0 0
        %1340 = vmatprep.subr.bf16.mxu0 0
        %1341 = vmatpush1.bf16.msra.mxu0 0
        %1342 = vmatprep.subr.bf16.mxu0 0
        %1343 = vmatpush1.bf16.msra.mxu0 0
        %1344 = vmatprep.subr.bf16.mxu0 0
        %1345 = vmatpush1.bf16.msra.mxu0 0
        %1346 = vmatprep.subr.bf16.mxu0 0
        %1347 = vmatpush1.bf16.msra.mxu0 0
        %1348 = vmatprep.subr.bf16.mxu0 0
        %1349 = vmatpush1.bf16.msra.mxu0 0
        %1350 = vmatprep.subr.bf16.mxu0 0
        %1351 = vmatpush1.bf16.msra.mxu0 0
        %1352 = vmatprep.subr.bf16.mxu0 0
        %1353 = vmatpush1.bf16.msra.mxu0 0
        %1354 = vmatprep.subr.bf16.mxu0 0
        %1355 = vmatpush1.bf16.msra.mxu0 0
        %1356 = vmatprep.mubr.bf16.mxu0 0
        %1357 = vmatmul.mubr.bf16.gmra.mrb[0].mxu0 %v1322
        %v1358 = vpop.f32.mrb[0].mxu0
        %v1359 = vadd.f32 0.0, %v1358
        %v1360 = vpop.f32.mrb[0].mxu0
        %v1361 = vadd.f32 0.0, %v1360
        %v1362 = vpop.f32.mrb[0].mxu0
        %v1363 = vadd.f32 0.0, %v1362
        %v1364 = vpop.f32.mrb[0].mxu0
        %v1365 = vadd.f32 0.0, %v1364
        %1366 = vdwg.mxu0
        %v1367 = vadd.f32 %v1303, %v1359
        %v1368 = vadd.f32 %v1305, %v1361
        %v1369 = vadd.f32 %v1307, %v1363
        %v1370 = vadd.f32 %v1309, %v1365
        %1371 = vset.pattern.permute.xlu0 1
        %1372 = vperm.xlu0 %1371, %v431
        %v1373 = vpop.permute.xlu0 %1372
        %1375 = vset.pattern.permute.xlu0 1
        %1376 = vperm.xlu0 %1375, %v432
        %v1377 = vpop.permute.xlu0 %1376
        %v1379 = vadd.f32 %v1367, %v1373
        %v1380 = vadd.f32 %v1368, %v1373
        %v1381 = vadd.f32 %v1369, %v1377
        %v1382 = vadd.f32 %v1370, %v1377
        %v1383 = vadd.f32 %v1379, %v427
        %v1384 = vadd.f32 %v1380, %v428
        %v1385 = vadd.f32 %v1381, %v429
        %v1386 = vadd.f32 %v1382, %v430
        %1387 = vst [vmem:[%s425] sm:$0xff] %v1383
        %1388 = vst [vmem:[%s425 + $0x8] sm:$0xff] %v1384
        %1389 = vst [vmem:[%s425 + $0x10] sm:$0xff] %v1385
        %1390 = vst [vmem:[%s425 + $0x18] sm:$0xff] %v1386
        %s1391 = sand.u32 %s210, 1
        %s1392 = scalar_lea.sflag [#allocation4], %s1391
        %s1393 = sand.u32 %s210, 1
        %s1394 = smul.addr %s1393, 32
        %s1395 = scalar_lea.vmem [#allocation16], %s1394
        // Predicated region
        $region85: #{tpu_custom_call.1} parent=51 // pred_check
          %p1396 = pneg %p220
        $region86: #{tpu_custom_call.1} parent=51 // pred_check_branch
          %1398 = sbr.rel (%p1396) target = $region88
        $region87: #{tpu_custom_call.1} parent=51 // pred_region
          %s1400 = ssub.s32 512, 512
          %1401 = vsyncadd %s1392, %s1400
          %s1402 = smul.addr %s29, 4
          %s1403 = smul.addr %s1402, 128
          %s1404 = scalar_lea.hbm %s8, %s1403
          %s1405 = sshll.u32 %s1395, 4
          %s1406 = int_to_ptr.vmem [resolvable:$true] %s1405
          %1411 = dma.vmem_to_hbm [thread:$0]  %s1406, 512, %s1404, %s1392, 256, 256, 16
        $region88: #{tpu_custom_call.1} parent=51 // pred_fallthru
          _
      $region52: #{tpu_custom_call.1} parent=5 // pred_fallthru
        _
      %p1412 = scmp.le.s32.totalorder 2, %s24
      // Predicated region
      $region89: #{tpu_custom_call.1} parent=5 // pred_check
        %p1413 = pneg %p1412
      $region90: #{tpu_custom_call.1} parent=5 // pred_check_branch
        %1415 = sbr.rel (%p1413) target = $region92
      $region91: #{tpu_custom_call.1} parent=5 // pred_region
        %s1416 = ssub.s32 %s24, 2
        // Predicated region
        $region93: #{tpu_custom_call.1} parent=91 // pred_check
          %p1417 = pneg %p226
        $region94: #{tpu_custom_call.1} parent=91 // pred_check_branch
          %1419 = sbr.rel (%p1417) target = $region96
        $region95: #{tpu_custom_call.1} parent=91 // pred_region
          %s1420 = sand.u32 %s211, 1
          %s1421 = scalar_lea.sflag [#allocation4], %s1420
          %s1422 = sand.u32 %s211, 1
          %s1423 = smul.addr %s1422, 32
          %s1424 = scalar_lea.vmem [#allocation16], %s1423
          %1425 = dma.done %s1421, 512
        $region96: #{tpu_custom_call.1} parent=91 // pred_fallthru
          _
      $region92: #{tpu_custom_call.1} parent=5 // pred_fallthru
        _
    $region6: #{tpu_custom_call.1} parent=1 // loop_footer
      %s28 = sadd.s32 1, %s24
    $region7: #{tpu_custom_call.1} parent=1 // loop_footer_branch
      %23 = sbr.rel target = $region3
    $region8: #{tpu_custom_call.1} parent=1 // loop_exit
      _
    %1426 = vsyncpa [#allocation3], 1
    %s1427 = scalar_lea.sflag [#allocation3], 1
    %1428 = vsyncpa %s1427, 1
    %1429 = vsyncpa [#allocation6], 1
    %1430 = vsyncpa [#allocation9], 1
    %1431 = vsyncpa [#allocation12], 1
    %1432 = vsyncpa [#allocation15], 1
    %1433 = vsyncpa [#allocation4], 1
    %s1434 = scalar_lea.sflag [#allocation4], 1
    %1435 = vsyncpa %s1434, 1

</llo_original>
